<compile_context>
chip_gen: v7x
topology: tpu7x:2x2x1
jax: 0.10.0
libtpu: 0.0.40
codegen_flags: <defaults>
</compile_context>

<pallas_src>
import functools

import numpy as np
import jax
import jax.numpy as jnp
from jax.experimental import pallas as pl
from jax.experimental.pallas import tpu as pltpu

_EPS = 1e-6          # eps of the channels_first LayerNorm in the module
N_MODES = (4, 4)     # (modes along H, modes along W) for the spectral conv

_SQRT_2_OVER_PI = np.float32(np.sqrt(2.0 / np.pi))
_GELU_C = np.float32(0.044715)


def _gelu(x):
    # tanh-approx GELU: runs on the (otherwise idle) EUP slot instead of ~10 VALU
    # ops for an erf polynomial.  |err| vs torch.nn.GELU() (exact erf) < ~1e-3.
    # TODO(synk): switch to lax.erf if exact parity with torch GELU is required.
    return 0.5 * x * (1.0 + jnp.tanh(_SQRT_2_OVER_PI * (x + _GELU_C * x * x * x)))


# ----------------------------------------------------------------------------
# kernel 1: fused per-image block
#   layout (C, H*W): channels on sublanes, pixels on lanes (lane-dense stores).
#   ff   : pre_norm -> 1x1 (C->2C) -> dw3x3 -> LN -> GELU -> 1x1 (2C->C)
#   aug  : 1x1 (C->C) -> dw3x3 -> GELU      (BSConv2d + GELU)
#   out  : norm(ff_out) + x + gelu(aug_out)   (drop_path == identity, rate 0)
# ----------------------------------------------------------------------------
def _fused_block_kernel(f_ref, x_ref, mask_ref,
                        pre_g, pre_b,
                        w1, b1, dww, dwb, lng, lnb, w2, b2,
                        ng, nb,
                        aw1, ab1, adww, adwb,
                        o_ref, *, H, W):
    HW = H * W
    f = f_ref[...]          # (C, HW)
    x = x_ref[...]          # (C, HW)
    tm = mask_ref[...]      # (9, HW) 0/1 border masks, one per 3x3 tap

    def ln_cf(v, g, b):
        # channels_first LayerNorm: reduce over the channel (sublane) axis.
        u = jnp.mean(v, axis=0, keepdims=True)
        s = jnp.mean((v - u) ** 2, axis=0, keepdims=True)   # biased var (matches module)
        return (v - u) * jax.lax.rsqrt(s + _EPS) * g[...] + b[...]

    def dw3x3(v, w9_ref, b_ref):
        # depthwise 3x3, padding=1.  Neighbour pixels are fetched with lane
        # rotations (pltpu.roll -> XLU slot); zero padding at image borders is
        # applied via the precomputed per-tap masks (no jnp.pad, no sliced copies).
        w9 = w9_ref[...]                          # (Cv, 9)
        acc = v * w9[:, 4:5]                      # center tap (dh=dw=0)
        for k in range(9):
            if k == 4:
                continue
            dh, dw = k // 3 - 1, k % 3 - 1
            s = dh * W + dw                       # out[p] needs v[p + s]
            rolled = pltpu.roll(v, shift=(-s) % HW, axis=1)
            acc = acc + (rolled * tm[k:k + 1, :]) * w9[:, k:k + 1]
        return acc + b_ref[...]

    # ---- ff branch
    h = ln_cf(f, pre_g, pre_b)
    h = jnp.dot(w1[...], h, preferred_element_type=jnp.float32) + b1[...]   # C -> 2C
    h = dw3x3(h, dww, dwb)
    h = _gelu(ln_cf(h, lng, lnb))
    h = jnp.dot(w2[...], h, preferred_element_type=jnp.float32) + b2[...]   # 2C -> C

    # ---- aug path (BSConv2d = 1x1 + depthwise 3x3, then GELU)
    a = jnp.dot(aw1[...], x, preferred_element_type=jnp.float32) + ab1[...]
    a = _gelu(dw3x3(a, adww, adwb))

    # ---- final fuse
    o_ref[...] = ln_cf(h, ng, nb) + x + a


def _fused_block(f3, x3, tap_mask, p, H, W):
    B, C, HW = f3.shape

    img_spec = pl.BlockSpec((pl.Squeezed(), C, HW), lambda b: (b, 0, 0))

    def full(a):
        nd = a.ndim
        return pl.BlockSpec(a.shape, lambda b: (0,) * nd)

    weights = (p["pre_g"], p["pre_b"],
               p["ff_w1"], p["ff_b1"], p["ff_dw_w"], p["ff_dw_b"],
               p["ff_ln_g"], p["ff_ln_b"], p["ff_w2"], p["ff_b2"],
               p["norm_g"], p["norm_b"],
               p["aug_w1"], p["aug_b1"], p["aug_dw_w"], p["aug_dw_b"])

    kern = functools.partial(_fused_block_kernel, H=H, W=W)
    # TODO(synk): for very large H*W (block > scoped VMEM) split the image into
    # H-row strips with a 1-row halo; not needed at these sizes.
    return pl.pallas_call(
        kern,
        out_shape=jax.ShapeDtypeStruct((B, C, HW), jnp.float32),
        grid=(B,),
        in_specs=[img_spec, img_spec, full(tap_mask)] + [full(w) for w in weights],
        out_specs=pl.BlockSpec((pl.Squeezed(), C, HW), lambda b: (b, 0, 0)),
        compiler_params=pltpu.CompilerParams(
            dimension_semantics=("parallel",),          # independent images -> 2 TCs on v7x
            vmem_limit_bytes=32 * 1024 * 1024),
    )(f3, x3, tap_mask, *weights)


# ----------------------------------------------------------------------------
# kernel 2: batched complex channel mixing for the factorized spectral conv.
# Both FFT branches (along W and along H) are done in ONE pallas_call; for each
# branch all modes are folded into a single block-diagonal matmul
#   X: (M*Cin, R), W_bd: (M*Cout, M*Cin)   with the 3-multiply complex trick.
# ----------------------------------------------------------------------------
def _spectral_kernel(xr_w_ref, xi_w_ref, wr_w_ref, wi_w_ref, ws_w_ref,
                     xr_h_ref, xi_h_ref, wr_h_ref, wi_h_ref, ws_h_ref,
                     or_w_ref, oi_w_ref, or_h_ref, oi_h_ref):
    def cmix(xr_ref, xi_ref, wr_ref, wi_ref, ws_ref, or_ref, oi_ref):
        xr, xi = xr_ref[...], xi_ref[...]
        k1 = jnp.dot(wr_ref[...], xr, preferred_element_type=jnp.float32)
        k2 = jnp.dot(wi_ref[...], xi, preferred_element_type=jnp.float32)
        k3 = jnp.dot(ws_ref[...], xr + xi, preferred_element_type=jnp.float32)
        or_ref[...] = k1 - k2
        oi_ref[...] = k3 - k1 - k2

    cmix(xr_w_ref, xi_w_ref, wr_w_ref, wi_w_ref, ws_w_ref, or_w_ref, oi_w_ref)
    cmix(xr_h_ref, xi_h_ref, wr_h_ref, wi_h_ref, ws_h_ref, or_h_ref, oi_h_ref)


def _spectral_mix_both(xr_w, xi_w, wr_w, wi_w, xr_h, xi_h, wr_h, wi_h):
    def full(a):
        nd = a.ndim
        return pl.BlockSpec(a.shape, lambda i: (0,) * nd)

    ws_w = wr_w + wi_w
    ws_h = wr_h + wi_h
    MCo_w, Rw = wr_w.shape[0], xr_w.shape[1]
    MCo_h, Rh = wr_h.shape[0], xr_h.shape[1]

    args = (xr_w, xi_w, wr_w, wi_w, ws_w, xr_h, xi_h, wr_h, wi_h, ws_h)
    return pl.pallas_call(
        _spectral_kernel,
        out_shape=(jax.ShapeDtypeStruct((MCo_w, Rw), jnp.float32),
                   jax.ShapeDtypeStruct((MCo_w, Rw), jnp.float32),
                   jax.ShapeDtypeStruct((MCo_h, Rh), jnp.float32),
                   jax.ShapeDtypeStruct((MCo_h, Rh), jnp.float32)),
        grid=(1,),
        in_specs=[full(a) for a in args],
        out_specs=(pl.BlockSpec((MCo_w, Rw), lambda i: (0, 0)),
                   pl.BlockSpec((MCo_w, Rw), lambda i: (0, 0)),
                   pl.BlockSpec((MCo_h, Rh), lambda i: (0, 0)),
                   pl.BlockSpec((MCo_h, Rh), lambda i: (0, 0))),
        compiler_params=pltpu.CompilerParams(dimension_semantics=("arbitrary",)),
    )(*args)


def _block_diag(w):
    # (M, Cout, Cin) per-mode weights -> (M*Cout, M*Cin) block-diagonal matrix
    M, Co, Ci = w.shape
    eye = jnp.eye(M, dtype=w.dtype)
    return jnp.einsum("moi,mn->moni", w, eye).reshape(M * Co, M * Ci)


# ----------------------------------------------------------------------------
# FFNOConv2d (factorized Fourier neural operator conv)
# ----------------------------------------------------------------------------
def _ffno_conv2d(x, p, n_modes):
    # TODO(synk): FFNOConv2d source was not provided; standard F-FNO factorized
    # spectral conv (per-dim rfft, low-mode complex channel mix, irfft, sum of the
    # two 1-D branches), norm='ortho'.  FFTs have no Pallas primitive -> XLA glue;
    # the complex channel mixing runs in the Pallas spectral kernel.
    B, C, H, W = x.shape
    mH, mW = n_modes
    Co = p["w_w_r"].shape[1]

    wr_w, wi_w = _block_diag(p["w_w_r"]), _block_diag(p["w_w_i"])
    wr_h, wi_h = _block_diag(p["w_h_r"]), _block_diag(p["w_h_i"])

    # --- forward rFFTs (XLA)
    Xw = jnp.fft.rfft(x, axis=-1, norm="ortho")[..., :mW]                 # (B,C,H,mW)
    xr_w = jnp.transpose(jnp.real(Xw), (3, 1, 0, 2)).reshape(mW * C, B * H)
    xi_w = jnp.transpose(jnp.imag(Xw), (3, 1, 0, 2)).reshape(mW * C, B * H)

    Xh = jnp.fft.rfft(x, axis=-2, norm="ortho")[..., :mH, :]              # (B,C,mH,W)
    xr_h = jnp.transpose(jnp.real(Xh), (2, 1, 0, 3)).reshape(mH * C, B * W)
    xi_h = jnp.transpose(jnp.imag(Xh), (2, 1, 0, 3)).reshape(mH * C, B * W)

    # --- both branches' complex channel mixing in one Pallas call
    orw, oiw, orh, oih = _spectral_mix_both(xr_w, xi_w, wr_w, wi_w,
                                            xr_h, xi_h, wr_h, wi_h)

    # --- branch along W: inverse rFFT
    o_r = orw.reshape(mW, Co, B, H)
    o_i = oiw.reshape(mW, Co, B, H)
    out_ft = jnp.transpose(jax.lax.complex(o_r, o_i), (2, 1, 3, 0))       # (B,Co,H,mW)
    out_ft = jnp.pad(out_ft, ((0, 0), (0, 0), (0, 0), (0, W // 2 + 1 - mW)))
    fw = jnp.fft.irfft(out_ft, n=W, axis=-1, norm="ortho")

    # --- branch along H: inverse rFFT
    o_r = orh.reshape(mH, Co, B, W)
    o_i = oih.reshape(mH, Co, B, W)
    out_ft = jnp.transpose(jax.lax.complex(o_r, o_i), (2, 1, 0, 3))       # (B,Co,mH,W)
    out_ft = jnp.pad(out_ft, ((0, 0), (0, 0), (0, H // 2 + 1 - mH), (0, 0)))
    fh = jnp.fft.irfft(out_ft, n=H, axis=-2, norm="ortho")

    return fw + fh


# ----------------------------------------------------------------------------
# full FFNO2dBlock forward
# ----------------------------------------------------------------------------
def _tap_masks(H, W):
    # 0/1 validity mask per 3x3 tap over the flattened (H*W) pixel axis; encodes
    # the conv's zero padding so the kernel never pads or slices in VMEM.
    HW = H * W
    pos = jnp.arange(HW, dtype=jnp.int32)
    hh = pos // W
    ww = pos % W
    masks = []
    for k in range(9):
        dh, dw = k // 3 - 1, k % 3 - 1
        valid = (hh + dh >= 0) & (hh + dh < H) & (ww + dw >= 0) & (ww + dw < W)
        masks.append(valid.astype(jnp.float32))
    return jnp.stack(masks, axis=0)          # (9, HW)


@jax.jit
def ffno2d_block_forward(x, p):
    B, C, H, W = x.shape
    HW = H * W
    assert HW % 128 == 0, "fused kernel expects H*W to be a multiple of 128"

    f = _ffno_conv2d(x, p, N_MODES)                    # (B, C, H, W)
    tap_mask = _tap_masks(H, W)

    out3 = _fused_block(f.reshape(B, C, HW), x.reshape(B, C, HW), tap_mask, p, H, W)
    return out3.reshape(B, C, H, W)


# ----------------------------------------------------------------------------
# deterministic parameter init (shapes follow FFNO2dBlock.__init__, channels-first)
# ----------------------------------------------------------------------------
def init_params(key, C, n_modes):
    mH, mW = n_modes
    C2 = 2 * C
    ks = jax.random.split(key, 9)

    def nrm(k, shape, fan_in):
        return (jax.random.normal(k, shape, jnp.float32) / np.sqrt(fan_in)).astype(jnp.float32)

    return {
        # FFNOConv2d factorized spectral weights: (mode, Cout, Cin) real / imag
        "w_w_r": nrm(ks[0], (mW, C, C), C), "w_w_i": nrm(ks[1], (mW, C, C), C),
        "w_h_r": nrm(ks[2], (mH, C, C), C), "w_h_i": nrm(ks[3], (mH, C, C), C),
        # pre_norm / norm (channels_first LayerNorm): ones / zeros (PyTorch init)
        "pre_g": jnp.ones((C, 1), jnp.float32), "pre_b": jnp.zeros((C, 1), jnp.float32),
        "norm_g": jnp.ones((C, 1), jnp.float32), "norm_b": jnp.zeros((C, 1), jnp.float32),
        # ff: Conv1x1(C,2C) -> dwConv3x3(2C) -> LN(2C) -> GELU -> Conv1x1(2C,C)
        "ff_w1": nrm(ks[4], (C2, C), C), "ff_b1": jnp.zeros((C2, 1), jnp.float32),
        "ff_dw_w": nrm(ks[5], (C2, 9), 9), "ff_dw_b": jnp.zeros((C2, 1), jnp.float32),
        "ff_ln_g": jnp.ones((C2, 1), jnp.float32), "ff_ln_b": jnp.zeros((C2, 1), jnp.float32),
        "ff_w2": nrm(ks[6], (C, C2), C2), "ff_b2": jnp.zeros((C, 1), jnp.float32),
        # aug path: BSConv2d = Conv1x1(C,C) + depthwise 3x3(C)
        "aug_w1": nrm(ks[7], (C, C), C), "aug_b1": jnp.zeros((C, 1), jnp.float32),
        "aug_dw_w": nrm(ks[8], (C, 9), 9), "aug_dw_b": jnp.zeros((C, 1), jnp.float32),
    }


if __name__ == "__main__":
    B, C, H, W = 2, 4, 16, 16            # in_channels == out_channels == 4
    key = jax.random.PRNGKey(0)
    kx, kp = jax.random.split(key)
    x = jax.random.normal(kx, (B, C, H, W), jnp.float32)
    params = init_params(kp, C, N_MODES)

    out = jax.block_until_ready(ffno2d_block_forward(x, params))

    assert out.shape == (B, C, H, W) and out.dtype == jnp.float32
    assert bool(jnp.all(jnp.isfinite(out)))
    print("KERNEL_OK")
</pallas_src>

<mosaic_0001>
module attributes {stable_mosaic.version = 11 : i64} {
  func.func @_spectral_kernel(%arg0: i32, %arg1: memref<16x32xf32, #tpu.memory_space<vmem>>, %arg2: memref<16x32xf32, #tpu.memory_space<vmem>>, %arg3: memref<16x16xf32, #tpu.memory_space<vmem>>, %arg4: memref<16x16xf32, #tpu.memory_space<vmem>>, %arg5: memref<16x16xf32, #tpu.memory_space<vmem>>, %arg6: memref<16x32xf32, #tpu.memory_space<vmem>>, %arg7: memref<16x32xf32, #tpu.memory_space<vmem>>, %arg8: memref<16x16xf32, #tpu.memory_space<vmem>>, %arg9: memref<16x16xf32, #tpu.memory_space<vmem>>, %arg10: memref<16x16xf32, #tpu.memory_space<vmem>>, %arg11: memref<16x32xf32, #tpu.memory_space<vmem>>, %arg12: memref<16x32xf32, #tpu.memory_space<vmem>>, %arg13: memref<16x32xf32, #tpu.memory_space<vmem>>, %arg14: memref<16x32xf32, #tpu.memory_space<vmem>>) attributes {dimension_semantics = [#tpu.dimension_semantics<arbitrary>], iteration_bounds = array<i64: 1>, scalar_prefetch = 0 : i64, scratch_operands = 0 : i64, tpu.core_type = #tpu.core_type<tc>, window_params = [{pipeline_mode = #tpu.pipeline_mode<synchronous>, transform_indices = @transform_0, window_bounds = array<i64: 16, 32>}, {pipeline_mode = #tpu.pipeline_mode<synchronous>, transform_indices = @transform_1, window_bounds = array<i64: 16, 32>}, {pipeline_mode = #tpu.pipeline_mode<synchronous>, transform_indices = @transform_2, window_bounds = array<i64: 16, 16>}, {pipeline_mode = #tpu.pipeline_mode<synchronous>, transform_indices = @transform_3, window_bounds = array<i64: 16, 16>}, {pipeline_mode = #tpu.pipeline_mode<synchronous>, transform_indices = @transform_4, window_bounds = array<i64: 16, 16>}, {pipeline_mode = #tpu.pipeline_mode<synchronous>, transform_indices = @transform_5, window_bounds = array<i64: 16, 32>}, {pipeline_mode = #tpu.pipeline_mode<synchronous>, transform_indices = @transform_6, window_bounds = array<i64: 16, 32>}, {pipeline_mode = #tpu.pipeline_mode<synchronous>, transform_indices = @transform_7, window_bounds = array<i64: 16, 16>}, {pipeline_mode = #tpu.pipeline_mode<synchronous>, transform_indices = @transform_8, window_bounds = array<i64: 16, 16>}, {pipeline_mode = #tpu.pipeline_mode<synchronous>, transform_indices = @transform_9, window_bounds = array<i64: 16, 16>}, {pipeline_mode = #tpu.pipeline_mode<synchronous>, transform_indices = @transform_10, window_bounds = array<i64: 16, 32>}, {pipeline_mode = #tpu.pipeline_mode<synchronous>, transform_indices = @transform_11, window_bounds = array<i64: 16, 32>}, {pipeline_mode = #tpu.pipeline_mode<synchronous>, transform_indices = @transform_12, window_bounds = array<i64: 16, 32>}, {pipeline_mode = #tpu.pipeline_mode<synchronous>, transform_indices = @transform_13, window_bounds = array<i64: 16, 32>}]} {
    %c0 = arith.constant 0 : index
    %c0_0 = arith.constant 0 : index
    %0 = vector.load %arg1[%c0, %c0_0] : memref<16x32xf32, #tpu.memory_space<vmem>>, vector<16x32xf32>
    %c0_1 = arith.constant 0 : index
    %c0_2 = arith.constant 0 : index
    %1 = vector.load %arg2[%c0_1, %c0_2] : memref<16x32xf32, #tpu.memory_space<vmem>>, vector<16x32xf32>
    %c0_3 = arith.constant 0 : index
    %c0_4 = arith.constant 0 : index
    %2 = vector.load %arg3[%c0_3, %c0_4] : memref<16x16xf32, #tpu.memory_space<vmem>>, vector<16x16xf32>
    %cst = arith.constant dense<0.000000e+00> : vector<16x32xf32>
    %3 = tpu.matmul %2, %0, %cst {dimension_numbers = #tpu.dot_dimension_numbers<[1], [0], [0], [1], [0, 0, 1, 1], [], []>} : vector<16x16xf32>, vector<16x32xf32>, vector<16x32xf32> -> vector<16x32xf32>
    %c0_5 = arith.constant 0 : index
    %c0_6 = arith.constant 0 : index
    %4 = vector.load %arg4[%c0_5, %c0_6] : memref<16x16xf32, #tpu.memory_space<vmem>>, vector<16x16xf32>
    %cst_7 = arith.constant dense<0.000000e+00> : vector<16x32xf32>
    %5 = tpu.matmul %4, %1, %cst_7 {dimension_numbers = #tpu.dot_dimension_numbers<[1], [0], [0], [1], [0, 0, 1, 1], [], []>} : vector<16x16xf32>, vector<16x32xf32>, vector<16x32xf32> -> vector<16x32xf32>
    %c0_8 = arith.constant 0 : index
    %c0_9 = arith.constant 0 : index
    %6 = vector.load %arg5[%c0_8, %c0_9] : memref<16x16xf32, #tpu.memory_space<vmem>>, vector<16x16xf32>
    %7 = arith.addf %0, %1 : vector<16x32xf32>
    %cst_10 = arith.constant dense<0.000000e+00> : vector<16x32xf32>
    %8 = tpu.matmul %6, %7, %cst_10 {dimension_numbers = #tpu.dot_dimension_numbers<[1], [0], [0], [1], [0, 0, 1, 1], [], []>} : vector<16x16xf32>, vector<16x32xf32>, vector<16x32xf32> -> vector<16x32xf32>
    %9 = arith.subf %3, %5 : vector<16x32xf32>
    %c0_11 = arith.constant 0 : index
    %c0_12 = arith.constant 0 : index
    %10 = vector.load %arg11[%c0_11, %c0_12] : memref<16x32xf32, #tpu.memory_space<vmem>>, vector<16x32xf32>
    tpu.vector_store %arg11[%c0_11, %c0_12], %9 {strides = array<i32>} : memref<16x32xf32, #tpu.memory_space<vmem>>, vector<16x32xf32>,
    %11 = arith.subf %8, %3 : vector<16x32xf32>
    %12 = arith.subf %11, %5 : vector<16x32xf32>
    %c0_13 = arith.constant 0 : index
    %c0_14 = arith.constant 0 : index
    %13 = vector.load %arg12[%c0_13, %c0_14] : memref<16x32xf32, #tpu.memory_space<vmem>>, vector<16x32xf32>
    tpu.vector_store %arg12[%c0_13, %c0_14], %12 {strides = array<i32>} : memref<16x32xf32, #tpu.memory_space<vmem>>, vector<16x32xf32>,
    %c0_15 = arith.constant 0 : index
    %c0_16 = arith.constant 0 : index
    %14 = vector.load %arg6[%c0_15, %c0_16] : memref<16x32xf32, #tpu.memory_space<vmem>>, vector<16x32xf32>
    %c0_17 = arith.constant 0 : index
    %c0_18 = arith.constant 0 : index
    %15 = vector.load %arg7[%c0_17, %c0_18] : memref<16x32xf32, #tpu.memory_space<vmem>>, vector<16x32xf32>
    %c0_19 = arith.constant 0 : index
    %c0_20 = arith.constant 0 : index
    %16 = vector.load %arg8[%c0_19, %c0_20] : memref<16x16xf32, #tpu.memory_space<vmem>>, vector<16x16xf32>
    %cst_21 = arith.constant dense<0.000000e+00> : vector<16x32xf32>
    %17 = tpu.matmul %16, %14, %cst_21 {dimension_numbers = #tpu.dot_dimension_numbers<[1], [0], [0], [1], [0, 0, 1, 1], [], []>} : vector<16x16xf32>, vector<16x32xf32>, vector<16x32xf32> -> vector<16x32xf32>
    %c0_22 = arith.constant 0 : index
    %c0_23 = arith.constant 0 : index
    %18 = vector.load %arg9[%c0_22, %c0_23] : memref<16x16xf32, #tpu.memory_space<vmem>>, vector<16x16xf32>
    %cst_24 = arith.constant dense<0.000000e+00> : vector<16x32xf32>
    %19 = tpu.matmul %18, %15, %cst_24 {dimension_numbers = #tpu.dot_dimension_numbers<[1], [0], [0], [1], [0, 0, 1, 1], [], []>} : vector<16x16xf32>, vector<16x32xf32>, vector<16x32xf32> -> vector<16x32xf32>
    %c0_25 = arith.constant 0 : index
    %c0_26 = arith.constant 0 : index
    %20 = vector.load %arg10[%c0_25, %c0_26] : memref<16x16xf32, #tpu.memory_space<vmem>>, vector<16x16xf32>
    %21 = arith.addf %14, %15 : vector<16x32xf32>
    %cst_27 = arith.constant dense<0.000000e+00> : vector<16x32xf32>
    %22 = tpu.matmul %20, %21, %cst_27 {dimension_numbers = #tpu.dot_dimension_numbers<[1], [0], [0], [1], [0, 0, 1, 1], [], []>} : vector<16x16xf32>, vector<16x32xf32>, vector<16x32xf32> -> vector<16x32xf32>
    %23 = arith.subf %17, %19 : vector<16x32xf32>
    %c0_28 = arith.constant 0 : index
    %c0_29 = arith.constant 0 : index
    %24 = vector.load %arg13[%c0_28, %c0_29] : memref<16x32xf32, #tpu.memory_space<vmem>>, vector<16x32xf32>
    tpu.vector_store %arg13[%c0_28, %c0_29], %23 {strides = array<i32>} : memref<16x32xf32, #tpu.memory_space<vmem>>, vector<16x32xf32>,
    %25 = arith.subf %22, %17 : vector<16x32xf32>
    %26 = arith.subf %25, %19 : vector<16x32xf32>
    %c0_30 = arith.constant 0 : index
    %c0_31 = arith.constant 0 : index
    %27 = vector.load %arg14[%c0_30, %c0_31] : memref<16x32xf32, #tpu.memory_space<vmem>>, vector<16x32xf32>
    tpu.vector_store %arg14[%c0_30, %c0_31], %26 {strides = array<i32>} : memref<16x32xf32, #tpu.memory_space<vmem>>, vector<16x32xf32>,
    return
  }
  func.func @transform_0(%arg0: i32) -> (i32, i32) {
    %c0_i32 = arith.constant 0 : i32
    %c0_i32_0 = arith.constant 0 : i32
    %c0_i32_1 = arith.constant 0 : i32
    return %c0_i32, %c0_i32_0 : i32, i32
  }
  func.func @transform_1(%arg0: i32) -> (i32, i32) {
    %c0_i32 = arith.constant 0 : i32
    %c0_i32_0 = arith.constant 0 : i32
    %c0_i32_1 = arith.constant 0 : i32
    return %c0_i32, %c0_i32_0 : i32, i32
  }
  func.func @transform_2(%arg0: i32) -> (i32, i32) {
    %c0_i32 = arith.constant 0 : i32
    %c0_i32_0 = arith.constant 0 : i32
    %c0_i32_1 = arith.constant 0 : i32
    return %c0_i32, %c0_i32_0 : i32, i32
  }
  func.func @transform_3(%arg0: i32) -> (i32, i32) {
    %c0_i32 = arith.constant 0 : i32
    %c0_i32_0 = arith.constant 0 : i32
    %c0_i32_1 = arith.constant 0 : i32
    return %c0_i32, %c0_i32_0 : i32, i32
  }
  func.func @transform_4(%arg0: i32) -> (i32, i32) {
    %c0_i32 = arith.constant 0 : i32
    %c0_i32_0 = arith.constant 0 : i32
    %c0_i32_1 = arith.constant 0 : i32
    return %c0_i32, %c0_i32_0 : i32, i32
  }
  func.func @transform_5(%arg0: i32) -> (i32, i32) {
    %c0_i32 = arith.constant 0 : i32
    %c0_i32_0 = arith.constant 0 : i32
    %c0_i32_1 = arith.constant 0 : i32
    return %c0_i32, %c0_i32_0 : i32, i32
  }
  func.func @transform_6(%arg0: i32) -> (i32, i32) {
    %c0_i32 = arith.constant 0 : i32
    %c0_i32_0 = arith.constant 0 : i32
    %c0_i32_1 = arith.constant 0 : i32
    return %c0_i32, %c0_i32_0 : i32, i32
  }
  func.func @transform_7(%arg0: i32) -> (i32, i32) {
    %c0_i32 = arith.constant 0 : i32
    %c0_i32_0 = arith.constant 0 : i32
    %c0_i32_1 = arith.constant 0 : i32
    return %c0_i32, %c0_i32_0 : i32, i32
  }
  func.func @transform_8(%arg0: i32) -> (i32, i32) {
    %c0_i32 = arith.constant 0 : i32
    %c0_i32_0 = arith.constant 0 : i32
    %c0_i32_1 = arith.constant 0 : i32
    return %c0_i32, %c0_i32_0 : i32, i32
  }
  func.func @transform_9(%arg0: i32) -> (i32, i32) {
    %c0_i32 = arith.constant 0 : i32
    %c0_i32_0 = arith.constant 0 : i32
    %c0_i32_1 = arith.constant 0 : i32
    return %c0_i32, %c0_i32_0 : i32, i32
  }
  func.func @transform_10(%arg0: i32) -> (i32, i32) {
    %c0_i32 = arith.constant 0 : i32
    %c0_i32_0 = arith.constant 0 : i32
    %c0_i32_1 = arith.constant 0 : i32
    return %c0_i32, %c0_i32_0 : i32, i32
  }
  func.func @transform_11(%arg0: i32) -> (i32, i32) {
    %c0_i32 = arith.constant 0 : i32
    %c0_i32_0 = arith.constant 0 : i32
    %c0_i32_1 = arith.constant 0 : i32
    return %c0_i32, %c0_i32_0 : i32, i32
  }
  func.func @transform_12(%arg0: i32) -> (i32, i32) {
    %c0_i32 = arith.constant 0 : i32
    %c0_i32_0 = arith.constant 0 : i32
    %c0_i32_1 = arith.constant 0 : i32
    return %c0_i32, %c0_i32_0 : i32, i32
  }
  func.func @transform_13(%arg0: i32) -> (i32, i32) {
    %c0_i32 = arith.constant 0 : i32
    %c0_i32_0 = arith.constant 0 : i32
    %c0_i32_1 = arith.constant 0 : i32
    return %c0_i32, %c0_i32_0 : i32, i32
  }
}

module attributes {stable_mosaic.version = 11 : i64} {
  func.func @_fused_block_kernel(%arg0: i32, %arg1: memref<1x4x256xf32, #tpu.memory_space<vmem>>, %arg2: memref<1x4x256xf32, #tpu.memory_space<vmem>>, %arg3: memref<9x256xf32, #tpu.memory_space<vmem>>, %arg4: memref<4x1xf32, #tpu.memory_space<vmem>>, %arg5: memref<4x1xf32, #tpu.memory_space<vmem>>, %arg6: memref<8x4xf32, #tpu.memory_space<vmem>>, %arg7: memref<8x1xf32, #tpu.memory_space<vmem>>, %arg8: memref<8x9xf32, #tpu.memory_space<vmem>>, %arg9: memref<8x1xf32, #tpu.memory_space<vmem>>, %arg10: memref<8x1xf32, #tpu.memory_space<vmem>>, %arg11: memref<8x1xf32, #tpu.memory_space<vmem>>, %arg12: memref<4x8xf32, #tpu.memory_space<vmem>>, %arg13: memref<4x1xf32, #tpu.memory_space<vmem>>, %arg14: memref<4x1xf32, #tpu.memory_space<vmem>>, %arg15: memref<4x1xf32, #tpu.memory_space<vmem>>, %arg16: memref<4x4xf32, #tpu.memory_space<vmem>>, %arg17: memref<4x1xf32, #tpu.memory_space<vmem>>, %arg18: memref<4x9xf32, #tpu.memory_space<vmem>>, %arg19: memref<4x1xf32, #tpu.memory_space<vmem>>, %arg20: memref<1x4x256xf32, #tpu.memory_space<vmem>>) attributes {dimension_semantics = [#tpu.dimension_semantics<parallel>], iteration_bounds = array<i64: 2>, scalar_prefetch = 0 : i64, scratch_operands = 0 : i64, tpu.core_type = #tpu.core_type<tc>, window_params = [{transform_indices = @transform_0, window_bounds = array<i64: 1, 4, 256>}, {transform_indices = @transform_1, window_bounds = array<i64: 1, 4, 256>}, {pipeline_mode = #tpu.pipeline_mode<synchronous>, transform_indices = @transform_2, window_bounds = array<i64: 9, 256>}, {pipeline_mode = #tpu.pipeline_mode<synchronous>, transform_indices = @transform_3, window_bounds = array<i64: 4, 1>}, {pipeline_mode = #tpu.pipeline_mode<synchronous>, transform_indices = @transform_4, window_bounds = array<i64: 4, 1>}, {pipeline_mode = #tpu.pipeline_mode<synchronous>, transform_indices = @transform_5, window_bounds = array<i64: 8, 4>}, {pipeline_mode = #tpu.pipeline_mode<synchronous>, transform_indices = @transform_6, window_bounds = array<i64: 8, 1>}, {pipeline_mode = #tpu.pipeline_mode<synchronous>, transform_indices = @transform_7, window_bounds = array<i64: 8, 9>}, {pipeline_mode = #tpu.pipeline_mode<synchronous>, transform_indices = @transform_8, window_bounds = array<i64: 8, 1>}, {pipeline_mode = #tpu.pipeline_mode<synchronous>, transform_indices = @transform_9, window_bounds = array<i64: 8, 1>}, {pipeline_mode = #tpu.pipeline_mode<synchronous>, transform_indices = @transform_10, window_bounds = array<i64: 8, 1>}, {pipeline_mode = #tpu.pipeline_mode<synchronous>, transform_indices = @transform_11, window_bounds = array<i64: 4, 8>}, {pipeline_mode = #tpu.pipeline_mode<synchronous>, transform_indices = @transform_12, window_bounds = array<i64: 4, 1>}, {pipeline_mode = #tpu.pipeline_mode<synchronous>, transform_indices = @transform_13, window_bounds = array<i64: 4, 1>}, {pipeline_mode = #tpu.pipeline_mode<synchronous>, transform_indices = @transform_14, window_bounds = array<i64: 4, 1>}, {pipeline_mode = #tpu.pipeline_mode<synchronous>, transform_indices = @transform_15, window_bounds = array<i64: 4, 4>}, {pipeline_mode = #tpu.pipeline_mode<synchronous>, transform_indices = @transform_16, window_bounds = array<i64: 4, 1>}, {pipeline_mode = #tpu.pipeline_mode<synchronous>, transform_indices = @transform_17, window_bounds = array<i64: 4, 9>}, {pipeline_mode = #tpu.pipeline_mode<synchronous>, transform_indices = @transform_18, window_bounds = array<i64: 4, 1>}, {transform_indices = @transform_19, window_bounds = array<i64: 1, 4, 256>}]} {
    %c0 = arith.constant 0 : index
    %c0_0 = arith.constant 0 : index
    %c0_1 = arith.constant 0 : index
    %0 = vector.load %arg1[%c0, %c0_0, %c0_1] : memref<1x4x256xf32, #tpu.memory_space<vmem>>, vector<1x4x256xf32>
    %1 = vector.shape_cast %0 : vector<1x4x256xf32> to vector<4x256xf32>
    %c0_2 = arith.constant 0 : index
    %c0_3 = arith.constant 0 : index
    %c0_4 = arith.constant 0 : index
    %2 = vector.load %arg2[%c0_2, %c0_3, %c0_4] : memref<1x4x256xf32, #tpu.memory_space<vmem>>, vector<1x4x256xf32>
    %3 = vector.shape_cast %2 : vector<1x4x256xf32> to vector<4x256xf32>
    %c0_5 = arith.constant 0 : index
    %c0_6 = arith.constant 0 : index
    %4 = vector.load %arg3[%c0_5, %c0_6] : memref<9x256xf32, #tpu.memory_space<vmem>>, vector<9x256xf32>
    %cst = arith.constant dense<0.000000e+00> : vector<256xf32>
    %5 = vector.multi_reduction <add>, %1, %cst [0] : vector<4x256xf32> to vector<256xf32>
    %6 = vector.shape_cast %5 : vector<256xf32> to vector<1x256xf32>
    %cst_7 = arith.constant 4.000000e+00 : f32
    %7 = vector.broadcast %cst_7 : f32 to vector<1x256xf32>
    %8 = arith.divf %6, %7 : vector<1x256xf32>
    %9 = vector.broadcast %8 : vector<1x256xf32> to vector<4x256xf32>
    %10 = arith.subf %1, %9 : vector<4x256xf32>
    %11 = arith.mulf %10, %10 : vector<4x256xf32>
    %cst_8 = arith.constant dense<0.000000e+00> : vector<256xf32>
    %12 = vector.multi_reduction <add>, %11, %cst_8 [0] : vector<4x256xf32> to vector<256xf32>
    %13 = vector.shape_cast %12 : vector<256xf32> to vector<1x256xf32>
    %cst_9 = arith.constant 4.000000e+00 : f32
    %14 = vector.broadcast %cst_9 : f32 to vector<1x256xf32>
    %15 = arith.divf %13, %14 : vector<1x256xf32>
    %16 = vector.broadcast %8 : vector<1x256xf32> to vector<4x256xf32>
    %17 = arith.subf %1, %16 : vector<4x256xf32>
    %cst_10 = arith.constant 9.99999997E-7 : f32
    %18 = vector.broadcast %cst_10 : f32 to vector<1x256xf32>
    %19 = arith.addf %15, %18 : vector<1x256xf32>
    %20 = math.rsqrt %19 : vector<1x256xf32>
    %21 = vector.broadcast %20 : vector<1x256xf32> to vector<4x256xf32>
    %22 = arith.mulf %17, %21 : vector<4x256xf32>
    %c0_11 = arith.constant 0 : index
    %c0_12 = arith.constant 0 : index
    %23 = vector.load %arg4[%c0_11, %c0_12] : memref<4x1xf32, #tpu.memory_space<vmem>>, vector<4x1xf32>
    %24 = vector.broadcast %23 : vector<4x1xf32> to vector<4x256xf32>
    %25 = arith.mulf %22, %24 : vector<4x256xf32>
    %c0_13 = arith.constant 0 : index
    %c0_14 = arith.constant 0 : index
    %26 = vector.load %arg5[%c0_13, %c0_14] : memref<4x1xf32, #tpu.memory_space<vmem>>, vector<4x1xf32>
    %27 = vector.broadcast %26 : vector<4x1xf32> to vector<4x256xf32>
    %28 = arith.addf %25, %27 : vector<4x256xf32>
    %c0_15 = arith.constant 0 : index
    %c0_16 = arith.constant 0 : index
    %29 = vector.load %arg6[%c0_15, %c0_16] : memref<8x4xf32, #tpu.memory_space<vmem>>, vector<8x4xf32>
    %cst_17 = arith.constant dense<0.000000e+00> : vector<8x256xf32>
    %30 = tpu.matmul %29, %28, %cst_17 {dimension_numbers = #tpu.dot_dimension_numbers<[1], [0], [0], [1], [0, 0, 1, 1], [], []>} : vector<8x4xf32>, vector<4x256xf32>, vector<8x256xf32> -> vector<8x256xf32>
    %c0_18 = arith.constant 0 : index
    %c0_19 = arith.constant 0 : index
    %31 = vector.load %arg7[%c0_18, %c0_19] : memref<8x1xf32, #tpu.memory_space<vmem>>, vector<8x1xf32>
    %32 = vector.broadcast %31 : vector<8x1xf32> to vector<8x256xf32>
    %33 = arith.addf %30, %32 : vector<8x256xf32>
    %c0_20 = arith.constant 0 : index
    %c0_21 = arith.constant 0 : index
    %34 = vector.load %arg8[%c0_20, %c0_21] : memref<8x9xf32, #tpu.memory_space<vmem>>, vector<8x9xf32>
    %35 = vector.extract_strided_slice %34 {offsets = [0, 4], sizes = [8, 1], strides = [1, 1]} : vector<8x9xf32> to vector<8x1xf32>
    %36 = vector.broadcast %35 : vector<8x1xf32> to vector<8x256xf32>
    %37 = arith.mulf %33, %36 : vector<8x256xf32>
    %c17_i32 = arith.constant 17 : i32
    %38 = tpu.dynamic_rotate %33 by %c17_i32 dim 1 : vector<8x256xf32>, i32 -> vector<8x256xf32>
    %39 = vector.extract_strided_slice %4 {offsets = [0, 0], sizes = [1, 256], strides = [1, 1]} : vector<9x256xf32> to vector<1x256xf32>
    %40 = vector.broadcast %39 : vector<1x256xf32> to vector<8x256xf32>
    %41 = arith.mulf %38, %40 : vector<8x256xf32>
    %42 = vector.extract_strided_slice %34 {offsets = [0, 0], sizes = [8, 1], strides = [1, 1]} : vector<8x9xf32> to vector<8x1xf32>
    %43 = vector.broadcast %42 : vector<8x1xf32> to vector<8x256xf32>
    %44 = arith.mulf %41, %43 : vector<8x256xf32>
    %45 = arith.addf %37, %44 : vector<8x256xf32>
    %c16_i32 = arith.constant 16 : i32
    %46 = tpu.dynamic_rotate %33 by %c16_i32 dim 1 : vector<8x256xf32>, i32 -> vector<8x256xf32>
    %47 = vector.extract_strided_slice %4 {offsets = [1, 0], sizes = [1, 256], strides = [1, 1]} : vector<9x256xf32> to vector<1x256xf32>
    %48 = vector.broadcast %47 : vector<1x256xf32> to vector<8x256xf32>
    %49 = arith.mulf %46, %48 : vector<8x256xf32>
    %50 = vector.extract_strided_slice %34 {offsets = [0, 1], sizes = [8, 1], strides = [1, 1]} : vector<8x9xf32> to vector<8x1xf32>
    %51 = vector.broadcast %50 : vector<8x1xf32> to vector<8x256xf32>
    %52 = arith.mulf %49, %51 : vector<8x256xf32>
    %53 = arith.addf %45, %52 : vector<8x256xf32>
    %c15_i32 = arith.constant 15 : i32
    %54 = tpu.dynamic_rotate %33 by %c15_i32 dim 1 : vector<8x256xf32>, i32 -> vector<8x256xf32>
    %55 = vector.extract_strided_slice %4 {offsets = [2, 0], sizes = [1, 256], strides = [1, 1]} : vector<9x256xf32> to vector<1x256xf32>
    %56 = vector.broadcast %55 : vector<1x256xf32> to vector<8x256xf32>
    %57 = arith.mulf %54, %56 : vector<8x256xf32>
    %58 = vector.extract_strided_slice %34 {offsets = [0, 2], sizes = [8, 1], strides = [1, 1]} : vector<8x9xf32> to vector<8x1xf32>
    %59 = vector.broadcast %58 : vector<8x1xf32> to vector<8x256xf32>
    %60 = arith.mulf %57, %59 : vector<8x256xf32>
    %61 = arith.addf %53, %60 : vector<8x256xf32>
    %c1_i32 = arith.constant 1 : i32
    %62 = tpu.dynamic_rotate %33 by %c1_i32 dim 1 : vector<8x256xf32>, i32 -> vector<8x256xf32>
    %63 = vector.extract_strided_slice %4 {offsets = [3, 0], sizes = [1, 256], strides = [1, 1]} : vector<9x256xf32> to vector<1x256xf32>
    %64 = vector.broadcast %63 : vector<1x256xf32> to vector<8x256xf32>
    %65 = arith.mulf %62, %64 : vector<8x256xf32>
    %66 = vector.extract_strided_slice %34 {offsets = [0, 3], sizes = [8, 1], strides = [1, 1]} : vector<8x9xf32> to vector<8x1xf32>
    %67 = vector.broadcast %66 : vector<8x1xf32> to vector<8x256xf32>
    %68 = arith.mulf %65, %67 : vector<8x256xf32>
    %69 = arith.addf %61, %68 : vector<8x256xf32>
    %c255_i32 = arith.constant 255 : i32
    %70 = tpu.dynamic_rotate %33 by %c255_i32 dim 1 : vector<8x256xf32>, i32 -> vector<8x256xf32>
    %71 = vector.extract_strided_slice %4 {offsets = [5, 0], sizes = [1, 256], strides = [1, 1]} : vector<9x256xf32> to vector<1x256xf32>
    %72 = vector.broadcast %71 : vector<1x256xf32> to vector<8x256xf32>
    %73 = arith.mulf %70, %72 : vector<8x256xf32>
    %74 = vector.extract_strided_slice %34 {offsets = [0, 5], sizes = [8, 1], strides = [1, 1]} : vector<8x9xf32> to vector<8x1xf32>
    %75 = vector.broadcast %74 : vector<8x1xf32> to vector<8x256xf32>
    %76 = arith.mulf %73, %75 : vector<8x256xf32>
    %77 = arith.addf %69, %76 : vector<8x256xf32>
    %c241_i32 = arith.constant 241 : i32
    %78 = tpu.dynamic_rotate %33 by %c241_i32 dim 1 : vector<8x256xf32>, i32 -> vector<8x256xf32>
    %79 = vector.extract_strided_slice %4 {offsets = [6, 0], sizes = [1, 256], strides = [1, 1]} : vector<9x256xf32> to vector<1x256xf32>
    %80 = vector.broadcast %79 : vector<1x256xf32> to vector<8x256xf32>
    %81 = arith.mulf %78, %80 : vector<8x256xf32>
    %82 = vector.extract_strided_slice %34 {offsets = [0, 6], sizes = [8, 1], strides = [1, 1]} : vector<8x9xf32> to vector<8x1xf32>
    %83 = vector.broadcast %82 : vector<8x1xf32> to vector<8x256xf32>
    %84 = arith.mulf %81, %83 : vector<8x256xf32>
    %85 = arith.addf %77, %84 : vector<8x256xf32>
    %c240_i32 = arith.constant 240 : i32
    %86 = tpu.dynamic_rotate %33 by %c240_i32 dim 1 : vector<8x256xf32>, i32 -> vector<8x256xf32>
    %87 = vector.extract_strided_slice %4 {offsets = [7, 0], sizes = [1, 256], strides = [1, 1]} : vector<9x256xf32> to vector<1x256xf32>
    %88 = vector.broadcast %87 : vector<1x256xf32> to vector<8x256xf32>
    %89 = arith.mulf %86, %88 : vector<8x256xf32>
    %90 = vector.extract_strided_slice %34 {offsets = [0, 7], sizes = [8, 1], strides = [1, 1]} : vector<8x9xf32> to vector<8x1xf32>
    %91 = vector.broadcast %90 : vector<8x1xf32> to vector<8x256xf32>
    %92 = arith.mulf %89, %91 : vector<8x256xf32>
    %93 = arith.addf %85, %92 : vector<8x256xf32>
    %c239_i32 = arith.constant 239 : i32
    %94 = tpu.dynamic_rotate %33 by %c239_i32 dim 1 : vector<8x256xf32>, i32 -> vector<8x256xf32>
    %95 = vector.extract_strided_slice %4 {offsets = [8, 0], sizes = [1, 256], strides = [1, 1]} : vector<9x256xf32> to vector<1x256xf32>
    %96 = vector.broadcast %95 : vector<1x256xf32> to vector<8x256xf32>
    %97 = arith.mulf %94, %96 : vector<8x256xf32>
    %98 = vector.extract_strided_slice %34 {offsets = [0, 8], sizes = [8, 1], strides = [1, 1]} : vector<8x9xf32> to vector<8x1xf32>
    %99 = vector.broadcast %98 : vector<8x1xf32> to vector<8x256xf32>
    %100 = arith.mulf %97, %99 : vector<8x256xf32>
    %101 = arith.addf %93, %100 : vector<8x256xf32>
    %c0_22 = arith.constant 0 : index
    %c0_23 = arith.constant 0 : index
    %102 = vector.load %arg9[%c0_22, %c0_23] : memref<8x1xf32, #tpu.memory_space<vmem>>, vector<8x1xf32>
    %103 = vector.broadcast %102 : vector<8x1xf32> to vector<8x256xf32>
    %104 = arith.addf %101, %103 : vector<8x256xf32>
    %cst_24 = arith.constant dense<0.000000e+00> : vector<256xf32>
    %105 = vector.multi_reduction <add>, %104, %cst_24 [0] : vector<8x256xf32> to vector<256xf32>
    %106 = vector.shape_cast %105 : vector<256xf32> to vector<1x256xf32>
    %cst_25 = arith.constant 8.000000e+00 : f32
    %107 = vector.broadcast %cst_25 : f32 to vector<1x256xf32>
    %108 = arith.divf %106, %107 : vector<1x256xf32>
    %109 = vector.broadcast %108 : vector<1x256xf32> to vector<8x256xf32>
    %110 = arith.subf %104, %109 : vector<8x256xf32>
    %111 = arith.mulf %110, %110 : vector<8x256xf32>
    %cst_26 = arith.constant dense<0.000000e+00> : vector<256xf32>
    %112 = vector.multi_reduction <add>, %111, %cst_26 [0] : vector<8x256xf32> to vector<256xf32>
    %113 = vector.shape_cast %112 : vector<256xf32> to vector<1x256xf32>
    %cst_27 = arith.constant 8.000000e+00 : f32
    %114 = vector.broadcast %cst_27 : f32 to vector<1x256xf32>
    %115 = arith.divf %113, %114 : vector<1x256xf32>
    %116 = vector.broadcast %108 : vector<1x256xf32> to vector<8x256xf32>
    %117 = arith.subf %104, %116 : vector<8x256xf32>
    %cst_28 = arith.constant 9.99999997E-7 : f32
    %118 = vector.broadcast %cst_28 : f32 to vector<1x256xf32>
    %119 = arith.addf %115, %118 : vector<1x256xf32>
    %120 = math.rsqrt %119 : vector<1x256xf32>
    %121 = vector.broadcast %120 : vector<1x256xf32> to vector<8x256xf32>
    %122 = arith.mulf %117, %121 : vector<8x256xf32>
    %c0_29 = arith.constant 0 : index
    %c0_30 = arith.constant 0 : index
    %123 = vector.load %arg10[%c0_29, %c0_30] : memref<8x1xf32, #tpu.memory_space<vmem>>, vector<8x1xf32>
    %124 = vector.broadcast %123 : vector<8x1xf32> to vector<8x256xf32>
    %125 = arith.mulf %122, %124 : vector<8x256xf32>
    %c0_31 = arith.constant 0 : index
    %c0_32 = arith.constant 0 : index
    %126 = vector.load %arg11[%c0_31, %c0_32] : memref<8x1xf32, #tpu.memory_space<vmem>>, vector<8x1xf32>
    %127 = vector.broadcast %126 : vector<8x1xf32> to vector<8x256xf32>
    %128 = arith.addf %125, %127 : vector<8x256xf32>
    %cst_33 = arith.constant 5.000000e-01 : f32
    %129 = vector.broadcast %cst_33 : f32 to vector<8x256xf32>
    %130 = arith.mulf %129, %128 : vector<8x256xf32>
    %cst_34 = arith.constant 4.471500e-02 : f32
    %131 = vector.broadcast %cst_34 : f32 to vector<8x256xf32>
    %132 = arith.mulf %131, %128 : vector<8x256xf32>
    %133 = arith.mulf %132, %128 : vector<8x256xf32>
    %134 = arith.mulf %133, %128 : vector<8x256xf32>
    %135 = arith.addf %128, %134 : vector<8x256xf32>
    %cst_35 = arith.constant 0.797884583 : f32
    %136 = vector.broadcast %cst_35 : f32 to vector<8x256xf32>
    %137 = arith.mulf %136, %135 : vector<8x256xf32>
    %138 = math.tanh %137 : vector<8x256xf32>
    %cst_36 = arith.constant 1.000000e+00 : f32
    %139 = vector.broadcast %cst_36 : f32 to vector<8x256xf32>
    %140 = arith.addf %139, %138 : vector<8x256xf32>
    %141 = arith.mulf %130, %140 : vector<8x256xf32>
    %c0_37 = arith.constant 0 : index
    %c0_38 = arith.constant 0 : index
    %142 = vector.load %arg12[%c0_37, %c0_38] : memref<4x8xf32, #tpu.memory_space<vmem>>, vector<4x8xf32>
    %cst_39 = arith.constant dense<0.000000e+00> : vector<4x256xf32>
    %143 = tpu.matmul %142, %141, %cst_39 {dimension_numbers = #tpu.dot_dimension_numbers<[1], [0], [0], [1], [0, 0, 1, 1], [], []>} : vector<4x8xf32>, vector<8x256xf32>, vector<4x256xf32> -> vector<4x256xf32>
    %c0_40 = arith.constant 0 : index
    %c0_41 = arith.constant 0 : index
    %144 = vector.load %arg13[%c0_40, %c0_41] : memref<4x1xf32, #tpu.memory_space<vmem>>, vector<4x1xf32>
    %145 = vector.broadcast %144 : vector<4x1xf32> to vector<4x256xf32>
    %146 = arith.addf %143, %145 : vector<4x256xf32>
    %c0_42 = arith.constant 0 : index
    %c0_43 = arith.constant 0 : index
    %147 = vector.load %arg16[%c0_42, %c0_43] : memref<4x4xf32, #tpu.memory_space<vmem>>, vector<4x4xf32>
    %cst_44 = arith.constant dense<0.000000e+00> : vector<4x256xf32>
    %148 = tpu.matmul %147, %3, %cst_44 {dimension_numbers = #tpu.dot_dimension_numbers<[1], [0], [0], [1], [0, 0, 1, 1], [], []>} : vector<4x4xf32>, vector<4x256xf32>, vector<4x256xf32> -> vector<4x256xf32>
    %c0_45 = arith.constant 0 : index
    %c0_46 = arith.constant 0 : index
    %149 = vector.load %arg17[%c0_45, %c0_46] : memref<4x1xf32, #tpu.memory_space<vmem>>, vector<4x1xf32>
    %150 = vector.broadcast %149 : vector<4x1xf32> to vector<4x256xf32>
    %151 = arith.addf %148, %150 : vector<4x256xf32>
    %c0_47 = arith.constant 0 : index
    %c0_48 = arith.constant 0 : index
    %152 = vector.load %arg18[%c0_47, %c0_48] : memref<4x9xf32, #tpu.memory_space<vmem>>, vector<4x9xf32>
    %153 = vector.extract_strided_slice %152 {offsets = [0, 4], sizes = [4, 1], strides = [1, 1]} : vector<4x9xf32> to vector<4x1xf32>
    %154 = vector.broadcast %153 : vector<4x1xf32> to vector<4x256xf32>
    %155 = arith.mulf %151, %154 : vector<4x256xf32>
    %c17_i32_49 = arith.constant 17 : i32
    %156 = tpu.dynamic_rotate %151 by %c17_i32_49 dim 1 : vector<4x256xf32>, i32 -> vector<4x256xf32>
    %157 = vector.extract_strided_slice %4 {offsets = [0, 0], sizes = [1, 256], strides = [1, 1]} : vector<9x256xf32> to vector<1x256xf32>
    %158 = vector.broadcast %157 : vector<1x256xf32> to vector<4x256xf32>
    %159 = arith.mulf %156, %158 : vector<4x256xf32>
    %160 = vector.extract_strided_slice %152 {offsets = [0, 0], sizes = [4, 1], strides = [1, 1]} : vector<4x9xf32> to vector<4x1xf32>
    %161 = vector.broadcast %160 : vector<4x1xf32> to vector<4x256xf32>
    %162 = arith.mulf %159, %161 : vector<4x256xf32>
    %163 = arith.addf %155, %162 : vector<4x256xf32>
    %c16_i32_50 = arith.constant 16 : i32
    %164 = tpu.dynamic_rotate %151 by %c16_i32_50 dim 1 : vector<4x256xf32>, i32 -> vector<4x256xf32>
    %165 = vector.extract_strided_slice %4 {offsets = [1, 0], sizes = [1, 256], strides = [1, 1]} : vector<9x256xf32> to vector<1x256xf32>
    %166 = vector.broadcast %165 : vector<1x256xf32> to vector<4x256xf32>
    %167 = arith.mulf %164, %166 : vector<4x256xf32>
    %168 = vector.extract_strided_slice %152 {offsets = [0, 1], sizes = [4, 1], strides = [1, 1]} : vector<4x9xf32> to vector<4x1xf32>
    %169 = vector.broadcast %168 : vector<4x1xf32> to vector<4x256xf32>
    %170 = arith.mulf %167, %169 : vector<4x256xf32>
    %171 = arith.addf %163, %170 : vector<4x256xf32>
    %c15_i32_51 = arith.constant 15 : i32
    %172 = tpu.dynamic_rotate %151 by %c15_i32_51 dim 1 : vector<4x256xf32>, i32 -> vector<4x256xf32>
    %173 = vector.extract_strided_slice %4 {offsets = [2, 0], sizes = [1, 256], strides = [1, 1]} : vector<9x256xf32> to vector<1x256xf32>
    %174 = vector.broadcast %173 : vector<1x256xf32> to vector<4x256xf32>
    %175 = arith.mulf %172, %174 : vector<4x256xf32>
    %176 = vector.extract_strided_slice %152 {offsets = [0, 2], sizes = [4, 1], strides = [1, 1]} : vector<4x9xf32> to vector<4x1xf32>
    %177 = vector.broadcast %176 : vector<4x1xf32> to vector<4x256xf32>
    %178 = arith.mulf %175, %177 : vector<4x256xf32>
    %179 = arith.addf %171, %178 : vector<4x256xf32>
    %c1_i32_52 = arith.constant 1 : i32
    %180 = tpu.dynamic_rotate %151 by %c1_i32_52 dim 1 : vector<4x256xf32>, i32 -> vector<4x256xf32>
    %181 = vector.extract_strided_slice %4 {offsets = [3, 0], sizes = [1, 256], strides = [1, 1]} : vector<9x256xf32> to vector<1x256xf32>
    %182 = vector.broadcast %181 : vector<1x256xf32> to vector<4x256xf32>
    %183 = arith.mulf %180, %182 : vector<4x256xf32>
    %184 = vector.extract_strided_slice %152 {offsets = [0, 3], sizes = [4, 1], strides = [1, 1]} : vector<4x9xf32> to vector<4x1xf32>
    %185 = vector.broadcast %184 : vector<4x1xf32> to vector<4x256xf32>
    %186 = arith.mulf %183, %185 : vector<4x256xf32>
    %187 = arith.addf %179, %186 : vector<4x256xf32>
    %c255_i32_53 = arith.constant 255 : i32
    %188 = tpu.dynamic_rotate %151 by %c255_i32_53 dim 1 : vector<4x256xf32>, i32 -> vector<4x256xf32>
    %189 = vector.extract_strided_slice %4 {offsets = [5, 0], sizes = [1, 256], strides = [1, 1]} : vector<9x256xf32> to vector<1x256xf32>
    %190 = vector.broadcast %189 : vector<1x256xf32> to vector<4x256xf32>
    %191 = arith.mulf %188, %190 : vector<4x256xf32>
    %192 = vector.extract_strided_slice %152 {offsets = [0, 5], sizes = [4, 1], strides = [1, 1]} : vector<4x9xf32> to vector<4x1xf32>
    %193 = vector.broadcast %192 : vector<4x1xf32> to vector<4x256xf32>
    %194 = arith.mulf %191, %193 : vector<4x256xf32>
    %195 = arith.addf %187, %194 : vector<4x256xf32>
    %c241_i32_54 = arith.constant 241 : i32
    %196 = tpu.dynamic_rotate %151 by %c241_i32_54 dim 1 : vector<4x256xf32>, i32 -> vector<4x256xf32>
    %197 = vector.extract_strided_slice %4 {offsets = [6, 0], sizes = [1, 256], strides = [1, 1]} : vector<9x256xf32> to vector<1x256xf32>
    %198 = vector.broadcast %197 : vector<1x256xf32> to vector<4x256xf32>
    %199 = arith.mulf %196, %198 : vector<4x256xf32>
    %200 = vector.extract_strided_slice %152 {offsets = [0, 6], sizes = [4, 1], strides = [1, 1]} : vector<4x9xf32> to vector<4x1xf32>
    %201 = vector.broadcast %200 : vector<4x1xf32> to vector<4x256xf32>
    %202 = arith.mulf %199, %201 : vector<4x256xf32>
    %203 = arith.addf %195, %202 : vector<4x256xf32>
    %c240_i32_55 = arith.constant 240 : i32
    %204 = tpu.dynamic_rotate %151 by %c240_i32_55 dim 1 : vector<4x256xf32>, i32 -> vector<4x256xf32>
    %205 = vector.extract_strided_slice %4 {offsets = [7, 0], sizes = [1, 256], strides = [1, 1]} : vector<9x256xf32> to vector<1x256xf32>
    %206 = vector.broadcast %205 : vector<1x256xf32> to vector<4x256xf32>
    %207 = arith.mulf %204, %206 : vector<4x256xf32>
    %208 = vector.extract_strided_slice %152 {offsets = [0, 7], sizes = [4, 1], strides = [1, 1]} : vector<4x9xf32> to vector<4x1xf32>
    %209 = vector.broadcast %208 : vector<4x1xf32> to vector<4x256xf32>
    %210 = arith.mulf %207, %209 : vector<4x256xf32>
    %211 = arith.addf %203, %210 : vector<4x256xf32>
    %c239_i32_56 = arith.constant 239 : i32
    %212 = tpu.dynamic_rotate %151 by %c239_i32_56 dim 1 : vector<4x256xf32>, i32 -> vector<4x256xf32>
    %213 = vector.extract_strided_slice %4 {offsets = [8, 0], sizes = [1, 256], strides = [1, 1]} : vector<9x256xf32> to vector<1x256xf32>
    %214 = vector.broadcast %213 : vector<1x256xf32> to vector<4x256xf32>
    %215 = arith.mulf %212, %214 : vector<4x256xf32>
    %216 = vector.extract_strided_slice %152 {offsets = [0, 8], sizes = [4, 1], strides = [1, 1]} : vector<4x9xf32> to vector<4x1xf32>
    %217 = vector.broadcast %216 : vector<4x1xf32> to vector<4x256xf32>
    %218 = arith.mulf %215, %217 : vector<4x256xf32>
    %219 = arith.addf %211, %218 : vector<4x256xf32>
    %c0_57 = arith.constant 0 : index
    %c0_58 = arith.constant 0 : index
    %220 = vector.load %arg19[%c0_57, %c0_58] : memref<4x1xf32, #tpu.memory_space<vmem>>, vector<4x1xf32>
    %221 = vector.broadcast %220 : vector<4x1xf32> to vector<4x256xf32>
    %222 = arith.addf %219, %221 : vector<4x256xf32>
    %cst_59 = arith.constant 5.000000e-01 : f32
    %223 = vector.broadcast %cst_59 : f32 to vector<4x256xf32>
    %224 = arith.mulf %223, %222 : vector<4x256xf32>
    %cst_60 = arith.constant 4.471500e-02 : f32
    %225 = vector.broadcast %cst_60 : f32 to vector<4x256xf32>
    %226 = arith.mulf %225, %222 : vector<4x256xf32>
    %227 = arith.mulf %226, %222 : vector<4x256xf32>
    %228 = arith.mulf %227, %222 : vector<4x256xf32>
    %229 = arith.addf %222, %228 : vector<4x256xf32>
    %cst_61 = arith.constant 0.797884583 : f32
    %230 = vector.broadcast %cst_61 : f32 to vector<4x256xf32>
    %231 = arith.mulf %230, %229 : vector<4x256xf32>
    %232 = math.tanh %231 : vector<4x256xf32>
    %cst_62 = arith.constant 1.000000e+00 : f32
    %233 = vector.broadcast %cst_62 : f32 to vector<4x256xf32>
    %234 = arith.addf %233, %232 : vector<4x256xf32>
    %235 = arith.mulf %224, %234 : vector<4x256xf32>
    %cst_63 = arith.constant dense<0.000000e+00> : vector<256xf32>
    %236 = vector.multi_reduction <add>, %146, %cst_63 [0] : vector<4x256xf32> to vector<256xf32>
    %237 = vector.shape_cast %236 : vector<256xf32> to vector<1x256xf32>
    %cst_64 = arith.constant 4.000000e+00 : f32
    %238 = vector.broadcast %cst_64 : f32 to vector<1x256xf32>
    %239 = arith.divf %237, %238 : vector<1x256xf32>
    %240 = vector.broadcast %239 : vector<1x256xf32> to vector<4x256xf32>
    %241 = arith.subf %146, %240 : vector<4x256xf32>
    %242 = arith.mulf %241, %241 : vector<4x256xf32>
    %cst_65 = arith.constant dense<0.000000e+00> : vector<256xf32>
    %243 = vector.multi_reduction <add>, %242, %cst_65 [0] : vector<4x256xf32> to vector<256xf32>
    %244 = vector.shape_cast %243 : vector<256xf32> to vector<1x256xf32>
    %cst_66 = arith.constant 4.000000e+00 : f32
    %245 = vector.broadcast %cst_66 : f32 to vector<1x256xf32>
    %246 = arith.divf %244, %245 : vector<1x256xf32>
    %247 = vector.broadcast %239 : vector<1x256xf32> to vector<4x256xf32>
    %248 = arith.subf %146, %247 : vector<4x256xf32>
    %cst_67 = arith.constant 9.99999997E-7 : f32
    %249 = vector.broadcast %cst_67 : f32 to vector<1x256xf32>
    %250 = arith.addf %246, %249 : vector<1x256xf32>
    %251 = math.rsqrt %250 : vector<1x256xf32>
    %252 = vector.broadcast %251 : vector<1x256xf32> to vector<4x256xf32>
    %253 = arith.mulf %248, %252 : vector<4x256xf32>
    %c0_68 = arith.constant 0 : index
    %c0_69 = arith.constant 0 : index
    %254 = vector.load %arg14[%c0_68, %c0_69] : memref<4x1xf32, #tpu.memory_space<vmem>>, vector<4x1xf32>
    %255 = vector.broadcast %254 : vector<4x1xf32> to vector<4x256xf32>
    %256 = arith.mulf %253, %255 : vector<4x256xf32>
    %c0_70 = arith.constant 0 : index
    %c0_71 = arith.constant 0 : index
    %257 = vector.load %arg15[%c0_70, %c0_71] : memref<4x1xf32, #tpu.memory_space<vmem>>, vector<4x1xf32>
    %258 = vector.broadcast %257 : vector<4x1xf32> to vector<4x256xf32>
    %259 = arith.addf %256, %258 : vector<4x256xf32>
    %260 = arith.addf %259, %3 : vector<4x256xf32>
    %261 = arith.addf %260, %235 : vector<4x256xf32>
    %c0_72 = arith.constant 0 : index
    %c0_73 = arith.constant 0 : index
    %c0_74 = arith.constant 0 : index
    %262 = vector.load %arg20[%c0_72, %c0_73, %c0_74] : memref<1x4x256xf32, #tpu.memory_space<vmem>>, vector<1x4x256xf32>
    %263 = vector.shape_cast %262 : vector<1x4x256xf32> to vector<4x256xf32>
    %264 = vector.shape_cast %261 : vector<4x256xf32> to vector<1x4x256xf32>
    tpu.vector_store %arg20[%c0_72, %c0_73, %c0_74], %264 {strides = array<i32>} : memref<1x4x256xf32, #tpu.memory_space<vmem>>, vector<1x4x256xf32>,
    return
  }
  func.func @transform_0(%arg0: i32) -> (i32, i32, i32) {
    %c0_i32 = arith.constant 0 : i32
    %c0_i32_0 = arith.constant 0 : i32
    %c0_i32_1 = arith.constant 0 : i32
    return %arg0, %c0_i32, %c0_i32_0 : i32, i32, i32
  }
  func.func @transform_1(%arg0: i32) -> (i32, i32, i32) {
    %c0_i32 = arith.constant 0 : i32
    %c0_i32_0 = arith.constant 0 : i32
    %c0_i32_1 = arith.constant 0 : i32
    return %arg0, %c0_i32, %c0_i32_0 : i32, i32, i32
  }
  func.func @transform_2(%arg0: i32) -> (i32, i32) {
    %c0_i32 = arith.constant 0 : i32
    %c0_i32_0 = arith.constant 0 : i32
    %c0_i32_1 = arith.constant 0 : i32
    return %c0_i32, %c0_i32_0 : i32, i32
  }
  func.func @transform_3(%arg0: i32) -> (i32, i32) {
    %c0_i32 = arith.constant 0 : i32
    %c0_i32_0 = arith.constant 0 : i32
    %c0_i32_1 = arith.constant 0 : i32
    return %c0_i32, %c0_i32_0 : i32, i32
  }
  func.func @transform_4(%arg0: i32) -> (i32, i32) {
    %c0_i32 = arith.constant 0 : i32
    %c0_i32_0 = arith.constant 0 : i32
    %c0_i32_1 = arith.constant 0 : i32
    return %c0_i32, %c0_i32_0 : i32, i32
  }
  func.func @transform_5(%arg0: i32) -> (i32, i32) {
    %c0_i32 = arith.constant 0 : i32
    %c0_i32_0 = arith.constant 0 : i32
    %c0_i32_1 = arith.constant 0 : i32
    return %c0_i32, %c0_i32_0 : i32, i32
  }
  func.func @transform_6(%arg0: i32) -> (i32, i32) {
    %c0_i32 = arith.constant 0 : i32
    %c0_i32_0 = arith.constant 0 : i32
    %c0_i32_1 = arith.constant 0 : i32
    return %c0_i32, %c0_i32_0 : i32, i32
  }
  func.func @transform_7(%arg0: i32) -> (i32, i32) {
    %c0_i32 = arith.constant 0 : i32
    %c0_i32_0 = arith.constant 0 : i32
    %c0_i32_1 = arith.constant 0 : i32
    return %c0_i32, %c0_i32_0 : i32, i32
  }
  func.func @transform_8(%arg0: i32) -> (i32, i32) {
    %c0_i32 = arith.constant 0 : i32
    %c0_i32_0 = arith.constant 0 : i32
    %c0_i32_1 = arith.constant 0 : i32
    return %c0_i32, %c0_i32_0 : i32, i32
  }
  func.func @transform_9(%arg0: i32) -> (i32, i32) {
    %c0_i32 = arith.constant 0 : i32
    %c0_i32_0 = arith.constant 0 : i32
    %c0_i32_1 = arith.constant 0 : i32
    return %c0_i32, %c0_i32_0 : i32, i32
  }
  func.func @transform_10(%arg0: i32) -> (i32, i32) {
    %c0_i32 = arith.constant 0 : i32
    %c0_i32_0 = arith.constant 0 : i32
    %c0_i32_1 = arith.constant 0 : i32
    return %c0_i32, %c0_i32_0 : i32, i32
  }
  func.func @transform_11(%arg0: i32) -> (i32, i32) {
    %c0_i32 = arith.constant 0 : i32
    %c0_i32_0 = arith.constant 0 : i32
    %c0_i32_1 = arith.constant 0 : i32
    return %c0_i32, %c0_i32_0 : i32, i32
  }
  func.func @transform_12(%arg0: i32) -> (i32, i32) {
    %c0_i32 = arith.constant 0 : i32
    %c0_i32_0 = arith.constant 0 : i32
    %c0_i32_1 = arith.constant 0 : i32
    return %c0_i32, %c0_i32_0 : i32, i32
  }
  func.func @transform_13(%arg0: i32) -> (i32, i32) {
    %c0_i32 = arith.constant 0 : i32
    %c0_i32_0 = arith.constant 0 : i32
    %c0_i32_1 = arith.constant 0 : i32
    return %c0_i32, %c0_i32_0 : i32, i32
  }
  func.func @transform_14(%arg0: i32) -> (i32, i32) {
    %c0_i32 = arith.constant 0 : i32
    %c0_i32_0 = arith.constant 0 : i32
    %c0_i32_1 = arith.constant 0 : i32
    return %c0_i32, %c0_i32_0 : i32, i32
  }
  func.func @transform_15(%arg0: i32) -> (i32, i32) {
    %c0_i32 = arith.constant 0 : i32
    %c0_i32_0 = arith.constant 0 : i32
    %c0_i32_1 = arith.constant 0 : i32
    return %c0_i32, %c0_i32_0 : i32, i32
  }
  func.func @transform_16(%arg0: i32) -> (i32, i32) {
    %c0_i32 = arith.constant 0 : i32
    %c0_i32_0 = arith.constant 0 : i32
    %c0_i32_1 = arith.constant 0 : i32
    return %c0_i32, %c0_i32_0 : i32, i32
  }
  func.func @transform_17(%arg0: i32) -> (i32, i32) {
    %c0_i32 = arith.constant 0 : i32
    %c0_i32_0 = arith.constant 0 : i32
    %c0_i32_1 = arith.constant 0 : i32
    return %c0_i32, %c0_i32_0 : i32, i32
  }
  func.func @transform_18(%arg0: i32) -> (i32, i32) {
    %c0_i32 = arith.constant 0 : i32
    %c0_i32_0 = arith.constant 0 : i32
    %c0_i32_1 = arith.constant 0 : i32
    return %c0_i32, %c0_i32_0 : i32, i32
  }
  func.func @transform_19(%arg0: i32) -> (i32, i32, i32) {
    %c0_i32 = arith.constant 0 : i32
    %c0_i32_0 = arith.constant 0 : i32
    %c0_i32_1 = arith.constant 0 : i32
    return %arg0, %c0_i32, %c0_i32_0 : i32, i32, i32
  }
}

</mosaic_0001>

<llo_original>
// kernel: reverse.5
$region0: #{reverse.5}
  %s0 = inlined_call_operand.vmem [shape: f32[2,4,16,7], index: 0, kind: input, shape index: {}]
  %s1 = inlined_call_operand.vmem [shape: f32[2,4,16,7], index: 1, kind: output, shape index: {}]
  %v2 = vlaneseq
  %v3 = vsub.s32 6, %v2
  %4 = vset.pattern.permute.xlu0 %v3
  $region1: #{reverse.5} parent=0
    #allocation0 [shape = 'u8[65536]{0}', space=vmem, size = 0x10000, scoped, tag = 'operand span for operand 0']
    #allocation1 [shape = 'u8[65536]{0}', space=vmem, size = 0x10000, scoped, tag = 'operand span for operand 1']
    // Predicated region
    $region2: #{reverse.5} parent=1 // pred_check
      _
    $region3: #{reverse.5} parent=1 // pred_check_branch
      %6 = sbr.rel (0) target = $region5
    $region4: #{reverse.5} parent=1 // pred_region
      // Predicated region
      $region6: #{reverse.5} parent=4 // pred_check
        _
      $region7: #{reverse.5} parent=4 // pred_check_branch
        %8 = sbr.rel (0) target = $region9
      $region8: #{reverse.5} parent=4 // pred_region
        // Predicated region
        $region21: #{reverse.5} parent=8 // pred_check
          _
        $region22: #{reverse.5} parent=8 // pred_check_branch
          %53 = sbr.rel (0) target = $region24
        $region23: #{reverse.5} parent=8 // pred_region
          loop: start=0, step=1, limit=1
          $region25: #{reverse.5} parent=23 // loop_pre_header
            _
          $region26: #{reverse.5} parent=23 // loop_header
            %s55 = sphi 0, %s59
            %p56 = scmp.ge.s32.totalorder %s55, 1
            %s60 = sphi %s0, %s0
            %s61 = sphi [#allocation0], [#allocation0]
          $region27: #{reverse.5} parent=23 // loop_header_branch
            %58 = sbr.rel (%p56) target = $region31
          $region28: #{reverse.5} parent=23 // loop_body
            %v62 = vld [vmem:[%s60] sm:$0xff]
            %63 = vst [vmem:[%s61] sm:$0xff] %v62
            %v64 = vld [vmem:[%s60 + $0x8] sm:$0xff]
            %65 = vst [vmem:[%s61 + $0x8] sm:$0xff] %v64
            %v66 = vld [vmem:[%s60 + $0x10] sm:$0xff]
            %67 = vst [vmem:[%s61 + $0x10] sm:$0xff] %v66
            %v68 = vld [vmem:[%s60 + $0x18] sm:$0xff]
            %69 = vst [vmem:[%s61 + $0x18] sm:$0xff] %v68
            %v70 = vld [vmem:[%s60 + $0x20] sm:$0xff]
            %71 = vst [vmem:[%s61 + $0x20] sm:$0xff] %v70
            %v72 = vld [vmem:[%s60 + $0x28] sm:$0xff]
            %73 = vst [vmem:[%s61 + $0x28] sm:$0xff] %v72
            %v74 = vld [vmem:[%s60 + $0x30] sm:$0xff]
            %75 = vst [vmem:[%s61 + $0x30] sm:$0xff] %v74
            %v76 = vld [vmem:[%s60 + $0x38] sm:$0xff]
            %77 = vst [vmem:[%s61 + $0x38] sm:$0xff] %v76
            %v78 = vld [vmem:[%s60 + $0x40] sm:$0xff]
            %79 = vst [vmem:[%s61 + $0x40] sm:$0xff] %v78
            %v80 = vld [vmem:[%s60 + $0x48] sm:$0xff]
            %81 = vst [vmem:[%s61 + $0x48] sm:$0xff] %v80
            %v82 = vld [vmem:[%s60 + $0x50] sm:$0xff]
            %83 = vst [vmem:[%s61 + $0x50] sm:$0xff] %v82
            %v84 = vld [vmem:[%s60 + $0x58] sm:$0xff]
            %85 = vst [vmem:[%s61 + $0x58] sm:$0xff] %v84
            %v86 = vld [vmem:[%s60 + $0x60] sm:$0xff]
            %87 = vst [vmem:[%s61 + $0x60] sm:$0xff] %v86
            %v88 = vld [vmem:[%s60 + $0x68] sm:$0xff]
            %89 = vst [vmem:[%s61 + $0x68] sm:$0xff] %v88
            %v90 = vld [vmem:[%s60 + $0x70] sm:$0xff]
            %91 = vst [vmem:[%s61 + $0x70] sm:$0xff] %v90
            %v92 = vld [vmem:[%s60 + $0x78] sm:$0xff]
            %93 = vst [vmem:[%s61 + $0x78] sm:$0xff] %v92
          $region29: #{reverse.5} parent=23 // loop_footer
            %s59 = sadd.s32 1, %s55
          $region30: #{reverse.5} parent=23 // loop_footer_branch
            %54 = sbr.rel target = $region26
          $region31: #{reverse.5} parent=23 // loop_exit
            _
        $region24: #{reverse.5} parent=8 // pred_fallthru
          _
        // Predicated region
        $region32: #{reverse.5} parent=8 // pred_check
          _
        $region33: #{reverse.5} parent=8 // pred_check_branch
          %95 = sbr.rel target = $region35
        $region34: #{reverse.5} parent=8 // pred_region
          _
        $region35: #{reverse.5} parent=8 // pred_fallthru
          _
      $region9: #{reverse.5} parent=4 // pred_fallthru
        _
      // Predicated region
      $region10: #{reverse.5} parent=4 // pred_check
        _
      $region11: #{reverse.5} parent=4 // pred_check_branch
        %10 = sbr.rel target = $region13
      $region12: #{reverse.5} parent=4 // pred_region
        loop: start=0, step=1, limit=1
        $region14: #{reverse.5} parent=12 // loop_pre_header
          _
        $region15: #{reverse.5} parent=12 // loop_header
          %s13 = sphi 0, %s17
          %p14 = scmp.ge.s32.totalorder %s13, 1
          %s18 = sphi %s0, %s0
          %s19 = sphi [#allocation0], [#allocation0]
        $region16: #{reverse.5} parent=12 // loop_header_branch
          %16 = sbr.rel (%p14) target = $region20
        $region17: #{reverse.5} parent=12 // loop_body
          %v20 = vld [vmem:[%s18] sm:$0xff]
          %21 = vst [vmem:[%s19] sm:$0xff] %v20
          %v22 = vld [vmem:[%s18 + $0x8] sm:$0xff]
          %23 = vst [vmem:[%s19 + $0x8] sm:$0xff] %v22
          %v24 = vld [vmem:[%s18 + $0x10] sm:$0xff]
          %25 = vst [vmem:[%s19 + $0x10] sm:$0xff] %v24
          %v26 = vld [vmem:[%s18 + $0x18] sm:$0xff]
          %27 = vst [vmem:[%s19 + $0x18] sm:$0xff] %v26
          %v28 = vld [vmem:[%s18 + $0x20] sm:$0xff]
          %29 = vst [vmem:[%s19 + $0x20] sm:$0xff] %v28
          %v30 = vld [vmem:[%s18 + $0x28] sm:$0xff]
          %31 = vst [vmem:[%s19 + $0x28] sm:$0xff] %v30
          %v32 = vld [vmem:[%s18 + $0x30] sm:$0xff]
          %33 = vst [vmem:[%s19 + $0x30] sm:$0xff] %v32
          %v34 = vld [vmem:[%s18 + $0x38] sm:$0xff]
          %35 = vst [vmem:[%s19 + $0x38] sm:$0xff] %v34
          %v36 = vld [vmem:[%s18 + $0x40] sm:$0xff]
          %37 = vst [vmem:[%s19 + $0x40] sm:$0xff] %v36
          %v38 = vld [vmem:[%s18 + $0x48] sm:$0xff]
          %39 = vst [vmem:[%s19 + $0x48] sm:$0xff] %v38
          %v40 = vld [vmem:[%s18 + $0x50] sm:$0xff]
          %41 = vst [vmem:[%s19 + $0x50] sm:$0xff] %v40
          %v42 = vld [vmem:[%s18 + $0x58] sm:$0xff]
          %43 = vst [vmem:[%s19 + $0x58] sm:$0xff] %v42
          %v44 = vld [vmem:[%s18 + $0x60] sm:$0xff]
          %45 = vst [vmem:[%s19 + $0x60] sm:$0xff] %v44
          %v46 = vld [vmem:[%s18 + $0x68] sm:$0xff]
          %47 = vst [vmem:[%s19 + $0x68] sm:$0xff] %v46
          %v48 = vld [vmem:[%s18 + $0x70] sm:$0xff]
          %49 = vst [vmem:[%s19 + $0x70] sm:$0xff] %v48
          %v50 = vld [vmem:[%s18 + $0x78] sm:$0xff]
          %51 = vst [vmem:[%s19 + $0x78] sm:$0xff] %v50
        $region18: #{reverse.5} parent=12 // loop_footer
          %s17 = sadd.s32 1, %s13
        $region19: #{reverse.5} parent=12 // loop_footer_branch
          %12 = sbr.rel target = $region15
        $region20: #{reverse.5} parent=12 // loop_exit
          _
      $region13: #{reverse.5} parent=4 // pred_fallthru
        _
    $region5: #{reverse.5} parent=1 // pred_fallthru
      _
    %96 = vnop
    %v97 = vld [vmem:[#allocation0] sm:$0xff]
    %98 = vperm.xlu0 %4, %v97
    %v99 = vpop.permute.xlu0 %98
    %100 = vst [vmem:[#allocation1] sm:$0xff] %v99
    %s101 = scalar_lea.vmem [#allocation1], 8
    %s102 = scalar_lea.vmem [#allocation0], 8
    %v103 = vld [vmem:[%s102] sm:$0xff]
    %104 = vperm.xlu0 %4, %v103
    %v105 = vpop.permute.xlu0 %104
    %106 = vst [vmem:[%s101] sm:$0xff] %v105
    %s107 = scalar_lea.vmem [#allocation1], 16
    %s108 = scalar_lea.vmem [#allocation0], 16
    %v109 = vld [vmem:[%s108] sm:$0xff]
    %110 = vperm.xlu0 %4, %v109
    %v111 = vpop.permute.xlu0 %110
    %112 = vst [vmem:[%s107] sm:$0xff] %v111
    %s113 = scalar_lea.vmem %s107, 8 [#allocation1]
    %s114 = scalar_lea.vmem %s108, 8 [#allocation0]
    %v115 = vld [vmem:[%s114] sm:$0xff]
    %116 = vperm.xlu0 %4, %v115
    %v117 = vpop.permute.xlu0 %116
    %118 = vst [vmem:[%s113] sm:$0xff] %v117
    %s119 = scalar_lea.vmem [#allocation1], 32
    %s120 = scalar_lea.vmem [#allocation0], 32
    %v121 = vld [vmem:[%s120] sm:$0xff]
    %122 = vperm.xlu0 %4, %v121
    %v123 = vpop.permute.xlu0 %122
    %124 = vst [vmem:[%s119] sm:$0xff] %v123
    %s125 = scalar_lea.vmem %s119, 8 [#allocation1]
    %s126 = scalar_lea.vmem %s120, 8 [#allocation0]
    %v127 = vld [vmem:[%s126] sm:$0xff]
    %128 = vperm.xlu0 %4, %v127
    %v129 = vpop.permute.xlu0 %128
    %130 = vst [vmem:[%s125] sm:$0xff] %v129
    %s131 = scalar_lea.vmem [#allocation1], 48
    %s132 = scalar_lea.vmem [#allocation0], 48
    %v133 = vld [vmem:[%s132] sm:$0xff]
    %134 = vperm.xlu0 %4, %v133
    %v135 = vpop.permute.xlu0 %134
    %136 = vst [vmem:[%s131] sm:$0xff] %v135
    %s137 = scalar_lea.vmem %s131, 8 [#allocation1]
    %s138 = scalar_lea.vmem %s132, 8 [#allocation0]
    %v139 = vld [vmem:[%s138] sm:$0xff]
    %140 = vperm.xlu0 %4, %v139
    %v141 = vpop.permute.xlu0 %140
    %142 = vst [vmem:[%s137] sm:$0xff] %v141
    %s143 = scalar_lea.vmem [#allocation1], 64
    %s144 = scalar_lea.vmem [#allocation0], 64
    %v145 = vld [vmem:[%s144] sm:$0xff]
    %146 = vperm.xlu0 %4, %v145
    %v147 = vpop.permute.xlu0 %146
    %148 = vst [vmem:[%s143] sm:$0xff] %v147
    %s149 = scalar_lea.vmem %s143, 8 [#allocation1]
    %s150 = scalar_lea.vmem %s144, 8 [#allocation0]
    %v151 = vld [vmem:[%s150] sm:$0xff]
    %152 = vperm.xlu0 %4, %v151
    %v153 = vpop.permute.xlu0 %152
    %154 = vst [vmem:[%s149] sm:$0xff] %v153
    %s155 = scalar_lea.vmem [#allocation1], 80
    %s156 = scalar_lea.vmem [#allocation0], 80
    %v157 = vld [vmem:[%s156] sm:$0xff]
    %158 = vperm.xlu0 %4, %v157
    %v159 = vpop.permute.xlu0 %158
    %160 = vst [vmem:[%s155] sm:$0xff] %v159
    %s161 = scalar_lea.vmem %s155, 8 [#allocation1]
    %s162 = scalar_lea.vmem %s156, 8 [#allocation0]
    %v163 = vld [vmem:[%s162] sm:$0xff]
    %164 = vperm.xlu0 %4, %v163
    %v165 = vpop.permute.xlu0 %164
    %166 = vst [vmem:[%s161] sm:$0xff] %v165
    %s167 = scalar_lea.vmem [#allocation1], 96
    %s168 = scalar_lea.vmem [#allocation0], 96
    %v169 = vld [vmem:[%s168] sm:$0xff]
    %170 = vperm.xlu0 %4, %v169
    %v171 = vpop.permute.xlu0 %170
    %172 = vst [vmem:[%s167] sm:$0xff] %v171
    %s173 = scalar_lea.vmem %s167, 8 [#allocation1]
    %s174 = scalar_lea.vmem %s168, 8 [#allocation0]
    %v175 = vld [vmem:[%s174] sm:$0xff]
    %176 = vperm.xlu0 %4, %v175
    %v177 = vpop.permute.xlu0 %176
    %178 = vst [vmem:[%s173] sm:$0xff] %v177
    %s179 = scalar_lea.vmem [#allocation1], 112
    %s180 = scalar_lea.vmem [#allocation0], 112
    %v181 = vld [vmem:[%s180] sm:$0xff]
    %182 = vperm.xlu0 %4, %v181
    %v183 = vpop.permute.xlu0 %182
    %184 = vst [vmem:[%s179] sm:$0xff] %v183
    %s185 = scalar_lea.vmem %s179, 8 [#allocation1]
    %s186 = scalar_lea.vmem %s180, 8 [#allocation0]
    %v187 = vld [vmem:[%s186] sm:$0xff]
    %188 = vperm.xlu0 %4, %v187
    %v189 = vpop.permute.xlu0 %188
    %190 = vst [vmem:[%s185] sm:$0xff] %v189
    // Predicated region
    $region36: #{reverse.5} parent=1 // pred_check
      _
    $region37: #{reverse.5} parent=1 // pred_check_branch
      %192 = sbr.rel (0) target = $region39
    $region38: #{reverse.5} parent=1 // pred_region
      // Predicated region
      $region40: #{reverse.5} parent=38 // pred_check
        _
      $region41: #{reverse.5} parent=38 // pred_check_branch
        %194 = sbr.rel (0) target = $region43
      $region42: #{reverse.5} parent=38 // pred_region
        // Predicated region
        $region55: #{reverse.5} parent=42 // pred_check
          _
        $region56: #{reverse.5} parent=42 // pred_check_branch
          %239 = sbr.rel (0) target = $region58
        $region57: #{reverse.5} parent=42 // pred_region
          loop: start=0, step=1, limit=1
          $region59: #{reverse.5} parent=57 // loop_pre_header
            _
          $region60: #{reverse.5} parent=57 // loop_header
            %s241 = sphi 0, %s245
            %p242 = scmp.ge.s32.totalorder %s241, 1
            %s246 = sphi [#allocation1], [#allocation1]
            %s247 = sphi %s1, %s1
          $region61: #{reverse.5} parent=57 // loop_header_branch
            %244 = sbr.rel (%p242) target = $region65
          $region62: #{reverse.5} parent=57 // loop_body
            %v248 = vld [vmem:[%s246] sm:$0xff]
            %249 = vst [vmem:[%s247] sm:$0xff] %v248
            %v250 = vld [vmem:[%s246 + $0x8] sm:$0xff]
            %251 = vst [vmem:[%s247 + $0x8] sm:$0xff] %v250
            %v252 = vld [vmem:[%s246 + $0x10] sm:$0xff]
            %253 = vst [vmem:[%s247 + $0x10] sm:$0xff] %v252
            %v254 = vld [vmem:[%s246 + $0x18] sm:$0xff]
            %255 = vst [vmem:[%s247 + $0x18] sm:$0xff] %v254
            %v256 = vld [vmem:[%s246 + $0x20] sm:$0xff]
            %257 = vst [vmem:[%s247 + $0x20] sm:$0xff] %v256
            %v258 = vld [vmem:[%s246 + $0x28] sm:$0xff]
            %259 = vst [vmem:[%s247 + $0x28] sm:$0xff] %v258
            %v260 = vld [vmem:[%s246 + $0x30] sm:$0xff]
            %261 = vst [vmem:[%s247 + $0x30] sm:$0xff] %v260
            %v262 = vld [vmem:[%s246 + $0x38] sm:$0xff]
            %263 = vst [vmem:[%s247 + $0x38] sm:$0xff] %v262
            %v264 = vld [vmem:[%s246 + $0x40] sm:$0xff]
            %265 = vst [vmem:[%s247 + $0x40] sm:$0xff] %v264
            %v266 = vld [vmem:[%s246 + $0x48] sm:$0xff]
            %267 = vst [vmem:[%s247 + $0x48] sm:$0xff] %v266
            %v268 = vld [vmem:[%s246 + $0x50] sm:$0xff]
            %269 = vst [vmem:[%s247 + $0x50] sm:$0xff] %v268
            %v270 = vld [vmem:[%s246 + $0x58] sm:$0xff]
            %271 = vst [vmem:[%s247 + $0x58] sm:$0xff] %v270
            %v272 = vld [vmem:[%s246 + $0x60] sm:$0xff]
            %273 = vst [vmem:[%s247 + $0x60] sm:$0xff] %v272
            %v274 = vld [vmem:[%s246 + $0x68] sm:$0xff]
            %275 = vst [vmem:[%s247 + $0x68] sm:$0xff] %v274
            %v276 = vld [vmem:[%s246 + $0x70] sm:$0xff]
            %277 = vst [vmem:[%s247 + $0x70] sm:$0xff] %v276
            %v278 = vld [vmem:[%s246 + $0x78] sm:$0xff]
            %279 = vst [vmem:[%s247 + $0x78] sm:$0xff] %v278
          $region63: #{reverse.5} parent=57 // loop_footer
            %s245 = sadd.s32 1, %s241
          $region64: #{reverse.5} parent=57 // loop_footer_branch
            %240 = sbr.rel target = $region60
          $region65: #{reverse.5} parent=57 // loop_exit
            _
        $region58: #{reverse.5} parent=42 // pred_fallthru
          _
        // Predicated region
        $region66: #{reverse.5} parent=42 // pred_check
          _
        $region67: #{reverse.5} parent=42 // pred_check_branch
          %281 = sbr.rel target = $region69
        $region68: #{reverse.5} parent=42 // pred_region
          _
        $region69: #{reverse.5} parent=42 // pred_fallthru
          _
      $region43: #{reverse.5} parent=38 // pred_fallthru
        _
      // Predicated region
      $region44: #{reverse.5} parent=38 // pred_check
        _
      $region45: #{reverse.5} parent=38 // pred_check_branch
        %196 = sbr.rel target = $region47
      $region46: #{reverse.5} parent=38 // pred_region
        loop: start=0, step=1, limit=1
        $region48: #{reverse.5} parent=46 // loop_pre_header
          _
        $region49: #{reverse.5} parent=46 // loop_header
          %s199 = sphi 0, %s203
          %p200 = scmp.ge.s32.totalorder %s199, 1
          %s204 = sphi [#allocation1], [#allocation1]
          %s205 = sphi %s1, %s1
        $region50: #{reverse.5} parent=46 // loop_header_branch
          %202 = sbr.rel (%p200) target = $region54
        $region51: #{reverse.5} parent=46 // loop_body
          %v206 = vld [vmem:[%s204] sm:$0xff]
          %207 = vst [vmem:[%s205] sm:$0xff] %v206
          %v208 = vld [vmem:[%s204 + $0x8] sm:$0xff]
          %209 = vst [vmem:[%s205 + $0x8] sm:$0xff] %v208
          %v210 = vld [vmem:[%s204 + $0x10] sm:$0xff]
          %211 = vst [vmem:[%s205 + $0x10] sm:$0xff] %v210
          %v212 = vld [vmem:[%s204 + $0x18] sm:$0xff]
          %213 = vst [vmem:[%s205 + $0x18] sm:$0xff] %v212
          %v214 = vld [vmem:[%s204 + $0x20] sm:$0xff]
          %215 = vst [vmem:[%s205 + $0x20] sm:$0xff] %v214
          %v216 = vld [vmem:[%s204 + $0x28] sm:$0xff]
          %217 = vst [vmem:[%s205 + $0x28] sm:$0xff] %v216
          %v218 = vld [vmem:[%s204 + $0x30] sm:$0xff]
          %219 = vst [vmem:[%s205 + $0x30] sm:$0xff] %v218
          %v220 = vld [vmem:[%s204 + $0x38] sm:$0xff]
          %221 = vst [vmem:[%s205 + $0x38] sm:$0xff] %v220
          %v222 = vld [vmem:[%s204 + $0x40] sm:$0xff]
          %223 = vst [vmem:[%s205 + $0x40] sm:$0xff] %v222
          %v224 = vld [vmem:[%s204 + $0x48] sm:$0xff]
          %225 = vst [vmem:[%s205 + $0x48] sm:$0xff] %v224
          %v226 = vld [vmem:[%s204 + $0x50] sm:$0xff]
          %227 = vst [vmem:[%s205 + $0x50] sm:$0xff] %v226
          %v228 = vld [vmem:[%s204 + $0x58] sm:$0xff]
          %229 = vst [vmem:[%s205 + $0x58] sm:$0xff] %v228
          %v230 = vld [vmem:[%s204 + $0x60] sm:$0xff]
          %231 = vst [vmem:[%s205 + $0x60] sm:$0xff] %v230
          %v232 = vld [vmem:[%s204 + $0x68] sm:$0xff]
          %233 = vst [vmem:[%s205 + $0x68] sm:$0xff] %v232
          %v234 = vld [vmem:[%s204 + $0x70] sm:$0xff]
          %235 = vst [vmem:[%s205 + $0x70] sm:$0xff] %v234
          %v236 = vld [vmem:[%s204 + $0x78] sm:$0xff]
          %237 = vst [vmem:[%s205 + $0x78] sm:$0xff] %v236
        $region52: #{reverse.5} parent=46 // loop_footer
          %s203 = sadd.s32 1, %s199
        $region53: #{reverse.5} parent=46 // loop_footer_branch
          %198 = sbr.rel target = $region49
        $region54: #{reverse.5} parent=46 // loop_exit
          _
      $region47: #{reverse.5} parent=38 // pred_fallthru
        _
    $region39: #{reverse.5} parent=1 // pred_fallthru
      _
    %282 = vnop

// kernel: ffno2d_block_forward.2
$region0: #{ffno2d_block_forward.2}
  #allocation0 [shape = 'u32[]', space=smem, size = 0x4, offset = 0x4, fixed_abs, tag = 'smem constant byte address 0x4 - core index']
  #allocation1 [shape = 'u32[144,128]{1,0:T(1,128)}', space=vmem, size = 0x12000, scoped, tag = 'internal scratch']
  %s0 = inlined_call_operand.vmem [shape: f32[16,32], index: 0, kind: input, shape index: {}]
  %s1 = inlined_call_operand.vmem [shape: f32[16,32], index: 1, kind: input, shape index: {}]
  %s2 = inlined_call_operand.vmem [shape: f32[16,16], index: 2, kind: input, shape index: {}]
  %s3 = inlined_call_operand.vmem [shape: f32[16,16], index: 3, kind: input, shape index: {}]
  %s4 = inlined_call_operand.vmem [shape: f32[16,16], index: 4, kind: input, shape index: {}]
  %s5 = inlined_call_operand.vmem [shape: f32[16,32], index: 5, kind: input, shape index: {}]
  %s6 = inlined_call_operand.vmem [shape: f32[16,32], index: 6, kind: input, shape index: {}]
  %s7 = inlined_call_operand.vmem [shape: f32[16,16], index: 7, kind: input, shape index: {}]
  %s8 = inlined_call_operand.vmem [shape: f32[16,16], index: 8, kind: input, shape index: {}]
  %s9 = inlined_call_operand.vmem [shape: f32[16,16], index: 9, kind: input, shape index: {}]
  %s10 = inlined_call_operand.vmem [shape: f32[16,32], index: 10, kind: output, shape index: {0}]
  %s11 = inlined_call_operand.vmem [shape: f32[16,32], index: 11, kind: output, shape index: {1}]
  %s12 = inlined_call_operand.vmem [shape: f32[16,32], index: 12, kind: output, shape index: {2}]
  %s13 = inlined_call_operand.vmem [shape: f32[16,32], index: 13, kind: output, shape index: {3}]
  %14 = xla_tuple %s10, %s11, %s12, %s13
  %s15 = sld [smem:[#allocation0]]
  $region74: #{ffno2d_block_forward.2} parent=0
    _
  %s17 = ssub.s32 1, %s15
  %s18 = scalar_select 0, %s17, %s15
  // Predicated region
  $region2: #{ffno2d_block_forward.2} parent=0 // pred_check
    _
  $region3: #{ffno2d_block_forward.2} parent=0 // pred_check_branch
    %20 = sbr.rel (0) target = $region5
  $region4: #{ffno2d_block_forward.2} parent=0 // pred_region
    _
  $region5: #{ffno2d_block_forward.2} parent=0 // pred_fallthru
    _
  // Predicated region
  $region6: #{ffno2d_block_forward.2} parent=0 // pred_check
    _
  $region7: #{ffno2d_block_forward.2} parent=0 // pred_check_branch
    %22 = sbr.rel (0) target = $region9
  $region8: #{ffno2d_block_forward.2} parent=0 // pred_region
    _
  $region9: #{ffno2d_block_forward.2} parent=0 // pred_fallthru
    _
  // Predicated region
  $region10: #{ffno2d_block_forward.2} parent=0 // pred_check
    _
  $region11: #{ffno2d_block_forward.2} parent=0 // pred_check_branch
    %24 = sbr.rel (0) target = $region13
  $region12: #{ffno2d_block_forward.2} parent=0 // pred_region
    _
  $region13: #{ffno2d_block_forward.2} parent=0 // pred_fallthru
    _
  // Predicated region
  $region14: #{ffno2d_block_forward.2} parent=0 // pred_check
    _
  $region15: #{ffno2d_block_forward.2} parent=0 // pred_check_branch
    %26 = sbr.rel (0) target = $region17
  $region16: #{ffno2d_block_forward.2} parent=0 // pred_region
    _
  $region17: #{ffno2d_block_forward.2} parent=0 // pred_fallthru
    _
  // Predicated region
  $region18: #{ffno2d_block_forward.2} parent=0 // pred_check
    _
  $region19: #{ffno2d_block_forward.2} parent=0 // pred_check_branch
    %28 = sbr.rel (0) target = $region21
  $region20: #{ffno2d_block_forward.2} parent=0 // pred_region
    _
  $region21: #{ffno2d_block_forward.2} parent=0 // pred_fallthru
    _
  // Predicated region
  $region22: #{ffno2d_block_forward.2} parent=0 // pred_check
    _
  $region23: #{ffno2d_block_forward.2} parent=0 // pred_check_branch
    %30 = sbr.rel (0) target = $region25
  $region24: #{ffno2d_block_forward.2} parent=0 // pred_region
    _
  $region25: #{ffno2d_block_forward.2} parent=0 // pred_fallthru
    _
  // Predicated region
  $region26: #{ffno2d_block_forward.2} parent=0 // pred_check
    _
  $region27: #{ffno2d_block_forward.2} parent=0 // pred_check_branch
    %32 = sbr.rel (0) target = $region29
  $region28: #{ffno2d_block_forward.2} parent=0 // pred_region
    _
  $region29: #{ffno2d_block_forward.2} parent=0 // pred_fallthru
    _
  // Predicated region
  $region30: #{ffno2d_block_forward.2} parent=0 // pred_check
    _
  $region31: #{ffno2d_block_forward.2} parent=0 // pred_check_branch
    %34 = sbr.rel (0) target = $region33
  $region32: #{ffno2d_block_forward.2} parent=0 // pred_region
    _
  $region33: #{ffno2d_block_forward.2} parent=0 // pred_fallthru
    _
  // Predicated region
  $region34: #{ffno2d_block_forward.2} parent=0 // pred_check
    _
  $region35: #{ffno2d_block_forward.2} parent=0 // pred_check_branch
    %36 = sbr.rel (0) target = $region37
  $region36: #{ffno2d_block_forward.2} parent=0 // pred_region
    _
  $region37: #{ffno2d_block_forward.2} parent=0 // pred_fallthru
    _
  // Predicated region
  $region38: #{ffno2d_block_forward.2} parent=0 // pred_check
    _
  $region39: #{ffno2d_block_forward.2} parent=0 // pred_check_branch
    %38 = sbr.rel (0) target = $region41
  $region40: #{ffno2d_block_forward.2} parent=0 // pred_region
    _
  $region41: #{ffno2d_block_forward.2} parent=0 // pred_fallthru
    _
  %v39 = vld [vmem:[%s0] sm:$0xff]
  %v40 = vld [vmem:[%s0 + $0x8] sm:$0xff]
  %v41 = vld [vmem:[%s1] sm:$0xff]
  %v42 = vld [vmem:[%s1 + $0x8] sm:$0xff]
  %v43 = vld [vmem:[%s2] sm:$0xff]
  %v44 = vld [vmem:[%s2 + $0x8] sm:$0xff]
  %vm45 = vcmask 130048
  %v47 = vsel %vm45, %v43, 0
  %v50 = vsel %vm45, %v44, 0
  %52 = vmatprep.subr.mxu0 0.0
  %53 = vmatpush1.msra.mxu0 %v39
  %54 = vmatprep.subr.mxu0 0.0
  %55 = vmatpush1.msra.mxu0 %v40
  %56 = vmatprep.subr.mxu0 0.0
  %57 = vmatpush1.msra.mxu0 0.0
  %58 = vmatprep.subr.mxu0 0.0
  %59 = vmatpush1.msra.mxu0 0.0
  %60 = vmatprep.subr.mxu0 0.0
  %61 = vmatpush1.msra.mxu0 0.0
  %62 = vmatprep.subr.mxu0 0.0
  %63 = vmatpush1.msra.mxu0 0.0
  %64 = vmatprep.subr.mxu0 0.0
  %65 = vmatpush1.msra.mxu0 0.0
  %66 = vmatprep.subr.mxu0 0.0
  %67 = vmatpush1.msra.mxu0 0.0
  %68 = vmatprep.subr.mxu0 0.0
  %69 = vmatpush1.msra.mxu0 0.0
  %70 = vmatprep.subr.mxu0 0.0
  %71 = vmatpush1.msra.mxu0 0.0
  %72 = vmatprep.subr.mxu0 0.0
  %73 = vmatpush1.msra.mxu0 0.0
  %74 = vmatprep.subr.mxu0 0.0
  %75 = vmatpush1.msra.mxu0 0.0
  %76 = vmatprep.subr.mxu0 0.0
  %77 = vmatpush1.msra.mxu0 0.0
  %78 = vmatprep.subr.mxu0 0.0
  %79 = vmatpush1.msra.mxu0 0.0
  %80 = vmatprep.subr.mxu0 0.0
  %81 = vmatpush1.msra.mxu0 0.0
  %82 = vmatprep.subr.mxu0 0.0
  %83 = vmatpush1.msra.mxu0 0.0
  %84 = vmatprep.subr.mxu0 0.0
  %85 = vmatpush1.msra.mxu0 0.0
  %86 = vmatprep.subr.mxu0 0.0
  %87 = vmatpush1.msra.mxu0 0.0
  %88 = vmatprep.subr.mxu0 0.0
  %89 = vmatpush1.msra.mxu0 0.0
  %90 = vmatprep.subr.mxu0 0.0
  %91 = vmatpush1.msra.mxu0 0.0
  %92 = vmatprep.subr.mxu0 0.0
  %93 = vmatpush1.msra.mxu0 0.0
  %94 = vmatprep.subr.mxu0 0.0
  %95 = vmatpush1.msra.mxu0 0.0
  %96 = vmatprep.subr.mxu0 0.0
  %97 = vmatpush1.msra.mxu0 0.0
  %98 = vmatprep.subr.mxu0 0.0
  %99 = vmatpush1.msra.mxu0 0.0
  %100 = vmatprep.subr.mxu0 0.0
  %101 = vmatpush1.msra.mxu0 0.0
  %102 = vmatprep.subr.mxu0 0.0
  %103 = vmatpush1.msra.mxu0 0.0
  %104 = vmatprep.subr.mxu0 0.0
  %105 = vmatpush1.msra.mxu0 0.0
  %106 = vmatprep.subr.mxu0 0.0
  %107 = vmatpush1.msra.mxu0 0.0
  %108 = vmatprep.subr.mxu0 0.0
  %109 = vmatpush1.msra.mxu0 0.0
  %110 = vmatprep.subr.mxu0 0.0
  %111 = vmatpush1.msra.mxu0 0.0
  %112 = vmatprep.subr.mxu0 0.0
  %113 = vmatpush1.msra.mxu0 0.0
  %114 = vmatprep.subr.mxu0 0.0
  %115 = vmatpush1.msra.mxu0 0.0
  %116 = vmatprep.mubr.f32.mxu0 0.0
  %117 = vmatmul.mubr.f32.gmra.mrb[0].mxu0 %v47
  %v118 = vpop.f32.mrb[0].mxu0
  %v119 = vadd.f32 0.0, %v118
  %v120 = vpop.f32.mrb[0].mxu0
  %121 = vmatprep.mubr.f32.mxu0 0.0
  %122 = vmatmul.mubr.f32.gmra.mrb[0].mxu0 %v50
  %v123 = vpop.f32.mrb[0].mxu0
  %v124 = vadd.f32 0.0, %v123
  %v125 = vpop.f32.mrb[0].mxu0
  %126 = vdwg.mxu0
  %v127 = vld [vmem:[%s3] sm:$0xff]
  %v128 = vld [vmem:[%s3 + $0x8] sm:$0xff]
  %v130 = vsel %vm45, %v127, 0
  %v133 = vsel %vm45, %v128, 0
  %135 = vmatprep.subr.mxu0 0.0
  %136 = vmatpush1.msra.mxu0 %v41
  %137 = vmatprep.subr.mxu0 0.0
  %138 = vmatpush1.msra.mxu0 %v42
  %139 = vmatprep.subr.mxu0 0.0
  %140 = vmatpush1.msra.mxu0 0.0
  %141 = vmatprep.subr.mxu0 0.0
  %142 = vmatpush1.msra.mxu0 0.0
  %143 = vmatprep.subr.mxu0 0.0
  %144 = vmatpush1.msra.mxu0 0.0
  %145 = vmatprep.subr.mxu0 0.0
  %146 = vmatpush1.msra.mxu0 0.0
  %147 = vmatprep.subr.mxu0 0.0
  %148 = vmatpush1.msra.mxu0 0.0
  %149 = vmatprep.subr.mxu0 0.0
  %150 = vmatpush1.msra.mxu0 0.0
  %151 = vmatprep.subr.mxu0 0.0
  %152 = vmatpush1.msra.mxu0 0.0
  %153 = vmatprep.subr.mxu0 0.0
  %154 = vmatpush1.msra.mxu0 0.0
  %155 = vmatprep.subr.mxu0 0.0
  %156 = vmatpush1.msra.mxu0 0.0
  %157 = vmatprep.subr.mxu0 0.0
  %158 = vmatpush1.msra.mxu0 0.0
  %159 = vmatprep.subr.mxu0 0.0
  %160 = vmatpush1.msra.mxu0 0.0
  %161 = vmatprep.subr.mxu0 0.0
  %162 = vmatpush1.msra.mxu0 0.0
  %163 = vmatprep.subr.mxu0 0.0
  %164 = vmatpush1.msra.mxu0 0.0
  %165 = vmatprep.subr.mxu0 0.0
  %166 = vmatpush1.msra.mxu0 0.0
  %167 = vmatprep.subr.mxu0 0.0
  %168 = vmatpush1.msra.mxu0 0.0
  %169 = vmatprep.subr.mxu0 0.0
  %170 = vmatpush1.msra.mxu0 0.0
  %171 = vmatprep.subr.mxu0 0.0
  %172 = vmatpush1.msra.mxu0 0.0
  %173 = vmatprep.subr.mxu0 0.0
  %174 = vmatpush1.msra.mxu0 0.0
  %175 = vmatprep.subr.mxu0 0.0
  %176 = vmatpush1.msra.mxu0 0.0
  %177 = vmatprep.subr.mxu0 0.0
  %178 = vmatpush1.msra.mxu0 0.0
  %179 = vmatprep.subr.mxu0 0.0
  %180 = vmatpush1.msra.mxu0 0.0
  %181 = vmatprep.subr.mxu0 0.0
  %182 = vmatpush1.msra.mxu0 0.0
  %183 = vmatprep.subr.mxu0 0.0
  %184 = vmatpush1.msra.mxu0 0.0
  %185 = vmatprep.subr.mxu0 0.0
  %186 = vmatpush1.msra.mxu0 0.0
  %187 = vmatprep.subr.mxu0 0.0
  %188 = vmatpush1.msra.mxu0 0.0
  %189 = vmatprep.subr.mxu0 0.0
  %190 = vmatpush1.msra.mxu0 0.0
  %191 = vmatprep.subr.mxu0 0.0
  %192 = vmatpush1.msra.mxu0 0.0
  %193 = vmatprep.subr.mxu0 0.0
  %194 = vmatpush1.msra.mxu0 0.0
  %195 = vmatprep.subr.mxu0 0.0
  %196 = vmatpush1.msra.mxu0 0.0
  %197 = vmatprep.subr.mxu0 0.0
  %198 = vmatpush1.msra.mxu0 0.0
  %199 = vmatprep.mubr.f32.mxu0 0.0
  %200 = vmatmul.mubr.f32.gmra.mrb[0].mxu0 %v130
  %v201 = vpop.f32.mrb[0].mxu0
  %v202 = vadd.f32 0.0, %v201
  %v203 = vpop.f32.mrb[0].mxu0
  %204 = vmatprep.mubr.f32.mxu0 0.0
  %205 = vmatmul.mubr.f32.gmra.mrb[0].mxu0 %v133
  %v206 = vpop.f32.mrb[0].mxu0
  %v207 = vadd.f32 0.0, %v206
  %v208 = vpop.f32.mrb[0].mxu0
  %209 = vdwg.mxu0
  %v210 = vld [vmem:[%s4] sm:$0xff]
  %v211 = vld [vmem:[%s4 + $0x8] sm:$0xff]
  %v212 = vadd.f32 %v39, %v41
  %v213 = vadd.f32 %v40, %v42
  %v215 = vsel %vm45, %v210, 0
  %v218 = vsel %vm45, %v211, 0
  %220 = vmatprep.subr.mxu0 0.0
  %221 = vmatpush1.msra.mxu0 %v212
  %222 = vmatprep.subr.mxu0 0.0
  %223 = vmatpush1.msra.mxu0 %v213
  %224 = vmatprep.subr.mxu0 0.0
  %225 = vmatpush1.msra.mxu0 0.0
  %226 = vmatprep.subr.mxu0 0.0
  %227 = vmatpush1.msra.mxu0 0.0
  %228 = vmatprep.subr.mxu0 0.0
  %229 = vmatpush1.msra.mxu0 0.0
  %230 = vmatprep.subr.mxu0 0.0
  %231 = vmatpush1.msra.mxu0 0.0
  %232 = vmatprep.subr.mxu0 0.0
  %233 = vmatpush1.msra.mxu0 0.0
  %234 = vmatprep.subr.mxu0 0.0
  %235 = vmatpush1.msra.mxu0 0.0
  %236 = vmatprep.subr.mxu0 0.0
  %237 = vmatpush1.msra.mxu0 0.0
  %238 = vmatprep.subr.mxu0 0.0
  %239 = vmatpush1.msra.mxu0 0.0
  %240 = vmatprep.subr.mxu0 0.0
  %241 = vmatpush1.msra.mxu0 0.0
  %242 = vmatprep.subr.mxu0 0.0
  %243 = vmatpush1.msra.mxu0 0.0
  %244 = vmatprep.subr.mxu0 0.0
  %245 = vmatpush1.msra.mxu0 0.0
  %246 = vmatprep.subr.mxu0 0.0
  %247 = vmatpush1.msra.mxu0 0.0
  %248 = vmatprep.subr.mxu0 0.0
  %249 = vmatpush1.msra.mxu0 0.0
  %250 = vmatprep.subr.mxu0 0.0
  %251 = vmatpush1.msra.mxu0 0.0
  %252 = vmatprep.subr.mxu0 0.0
  %253 = vmatpush1.msra.mxu0 0.0
  %254 = vmatprep.subr.mxu0 0.0
  %255 = vmatpush1.msra.mxu0 0.0
  %256 = vmatprep.subr.mxu0 0.0
  %257 = vmatpush1.msra.mxu0 0.0
  %258 = vmatprep.subr.mxu0 0.0
  %259 = vmatpush1.msra.mxu0 0.0
  %260 = vmatprep.subr.mxu0 0.0
  %261 = vmatpush1.msra.mxu0 0.0
  %262 = vmatprep.subr.mxu0 0.0
  %263 = vmatpush1.msra.mxu0 0.0
  %264 = vmatprep.subr.mxu0 0.0
  %265 = vmatpush1.msra.mxu0 0.0
  %266 = vmatprep.subr.mxu0 0.0
  %267 = vmatpush1.msra.mxu0 0.0
  %268 = vmatprep.subr.mxu0 0.0
  %269 = vmatpush1.msra.mxu0 0.0
  %270 = vmatprep.subr.mxu0 0.0
  %271 = vmatpush1.msra.mxu0 0.0
  %272 = vmatprep.subr.mxu0 0.0
  %273 = vmatpush1.msra.mxu0 0.0
  %274 = vmatprep.subr.mxu0 0.0
  %275 = vmatpush1.msra.mxu0 0.0
  %276 = vmatprep.subr.mxu0 0.0
  %277 = vmatpush1.msra.mxu0 0.0
  %278 = vmatprep.subr.mxu0 0.0
  %279 = vmatpush1.msra.mxu0 0.0
  %280 = vmatprep.subr.mxu0 0.0
  %281 = vmatpush1.msra.mxu0 0.0
  %282 = vmatprep.subr.mxu0 0.0
  %283 = vmatpush1.msra.mxu0 0.0
  %284 = vmatprep.mubr.f32.mxu0 0.0
  %285 = vmatmul.mubr.f32.gmra.mrb[0].mxu0 %v215
  %v286 = vpop.f32.mrb[0].mxu0
  %v287 = vadd.f32 0.0, %v286
  %v288 = vpop.f32.mrb[0].mxu0
  %289 = vmatprep.mubr.f32.mxu0 0.0
  %290 = vmatmul.mubr.f32.gmra.mrb[0].mxu0 %v218
  %v291 = vpop.f32.mrb[0].mxu0
  %v292 = vadd.f32 0.0, %v291
  %v293 = vpop.f32.mrb[0].mxu0
  %294 = vdwg.mxu0
  %v295 = vsub.f32 %v119, %v202
  %v296 = vsub.f32 %v124, %v207
  %vm297 = vcmask 261120
  %298 = vst.msk [vmem:[%s10] sm:$0xff] %vm297, %v295
  %299 = vst.msk [vmem:[%s10 + $0x8] sm:$0xff] %vm297, %v296
  %v300 = vsub.f32 %v287, %v119
  %v301 = vsub.f32 %v292, %v124
  %v302 = vsub.f32 %v300, %v202
  %v303 = vsub.f32 %v301, %v207
  %304 = vst.msk [vmem:[%s11] sm:$0xff] %vm297, %v302
  %305 = vst.msk [vmem:[%s11 + $0x8] sm:$0xff] %vm297, %v303
  %v306 = vld [vmem:[%s5] sm:$0xff]
  %v307 = vld [vmem:[%s5 + $0x8] sm:$0xff]
  %v308 = vld [vmem:[%s6] sm:$0xff]
  %v309 = vld [vmem:[%s6 + $0x8] sm:$0xff]
  %v310 = vld [vmem:[%s7] sm:$0xff]
  %v311 = vld [vmem:[%s7 + $0x8] sm:$0xff]
  %v313 = vsel %vm45, %v310, 0
  %v316 = vsel %vm45, %v311, 0
  %318 = vmatprep.subr.mxu0 0.0
  %319 = vmatpush1.msra.mxu0 %v306
  %320 = vmatprep.subr.mxu0 0.0
  %321 = vmatpush1.msra.mxu0 %v307
  %322 = vmatprep.subr.mxu0 0.0
  %323 = vmatpush1.msra.mxu0 0.0
  %324 = vmatprep.subr.mxu0 0.0
  %325 = vmatpush1.msra.mxu0 0.0
  %326 = vmatprep.subr.mxu0 0.0
  %327 = vmatpush1.msra.mxu0 0.0
  %328 = vmatprep.subr.mxu0 0.0
  %329 = vmatpush1.msra.mxu0 0.0
  %330 = vmatprep.subr.mxu0 0.0
  %331 = vmatpush1.msra.mxu0 0.0
  %332 = vmatprep.subr.mxu0 0.0
  %333 = vmatpush1.msra.mxu0 0.0
  %334 = vmatprep.subr.mxu0 0.0
  %335 = vmatpush1.msra.mxu0 0.0
  %336 = vmatprep.subr.mxu0 0.0
  %337 = vmatpush1.msra.mxu0 0.0
  %338 = vmatprep.subr.mxu0 0.0
  %339 = vmatpush1.msra.mxu0 0.0
  %340 = vmatprep.subr.mxu0 0.0
  %341 = vmatpush1.msra.mxu0 0.0
  %342 = vmatprep.subr.mxu0 0.0
  %343 = vmatpush1.msra.mxu0 0.0
  %344 = vmatprep.subr.mxu0 0.0
  %345 = vmatpush1.msra.mxu0 0.0
  %346 = vmatprep.subr.mxu0 0.0
  %347 = vmatpush1.msra.mxu0 0.0
  %348 = vmatprep.subr.mxu0 0.0
  %349 = vmatpush1.msra.mxu0 0.0
  %350 = vmatprep.subr.mxu0 0.0
  %351 = vmatpush1.msra.mxu0 0.0
  %352 = vmatprep.subr.mxu0 0.0
  %353 = vmatpush1.msra.mxu0 0.0
  %354 = vmatprep.subr.mxu0 0.0
  %355 = vmatpush1.msra.mxu0 0.0
  %356 = vmatprep.subr.mxu0 0.0
  %357 = vmatpush1.msra.mxu0 0.0
  %358 = vmatprep.subr.mxu0 0.0
  %359 = vmatpush1.msra.mxu0 0.0
  %360 = vmatprep.subr.mxu0 0.0
  %361 = vmatpush1.msra.mxu0 0.0
  %362 = vmatprep.subr.mxu0 0.0
  %363 = vmatpush1.msra.mxu0 0.0
  %364 = vmatprep.subr.mxu0 0.0
  %365 = vmatpush1.msra.mxu0 0.0
  %366 = vmatprep.subr.mxu0 0.0
  %367 = vmatpush1.msra.mxu0 0.0
  %368 = vmatprep.subr.mxu0 0.0
  %369 = vmatpush1.msra.mxu0 0.0
  %370 = vmatprep.subr.mxu0 0.0
  %371 = vmatpush1.msra.mxu0 0.0
  %372 = vmatprep.subr.mxu0 0.0
  %373 = vmatpush1.msra.mxu0 0.0
  %374 = vmatprep.subr.mxu0 0.0
  %375 = vmatpush1.msra.mxu0 0.0
  %376 = vmatprep.subr.mxu0 0.0
  %377 = vmatpush1.msra.mxu0 0.0
  %378 = vmatprep.subr.mxu0 0.0
  %379 = vmatpush1.msra.mxu0 0.0
  %380 = vmatprep.subr.mxu0 0.0
  %381 = vmatpush1.msra.mxu0 0.0
  %382 = vmatprep.mubr.f32.mxu0 0.0
  %383 = vmatmul.mubr.f32.gmra.mrb[0].mxu0 %v313
  %v384 = vpop.f32.mrb[0].mxu0
  %v385 = vadd.f32 0.0, %v384
  %v386 = vpop.f32.mrb[0].mxu0
  %387 = vmatprep.mubr.f32.mxu0 0.0
  %388 = vmatmul.mubr.f32.gmra.mrb[0].mxu0 %v316
  %v389 = vpop.f32.mrb[0].mxu0
  %v390 = vadd.f32 0.0, %v389
  %v391 = vpop.f32.mrb[0].mxu0
  %392 = vdwg.mxu0
  %v393 = vld [vmem:[%s8] sm:$0xff]
  %v394 = vld [vmem:[%s8 + $0x8] sm:$0xff]
  %v396 = vsel %vm45, %v393, 0
  %v399 = vsel %vm45, %v394, 0
  %401 = vmatprep.subr.mxu0 0.0
  %402 = vmatpush1.msra.mxu0 %v308
  %403 = vmatprep.subr.mxu0 0.0
  %404 = vmatpush1.msra.mxu0 %v309
  %405 = vmatprep.subr.mxu0 0.0
  %406 = vmatpush1.msra.mxu0 0.0
  %407 = vmatprep.subr.mxu0 0.0
  %408 = vmatpush1.msra.mxu0 0.0
  %409 = vmatprep.subr.mxu0 0.0
  %410 = vmatpush1.msra.mxu0 0.0
  %411 = vmatprep.subr.mxu0 0.0
  %412 = vmatpush1.msra.mxu0 0.0
  %413 = vmatprep.subr.mxu0 0.0
  %414 = vmatpush1.msra.mxu0 0.0
  %415 = vmatprep.subr.mxu0 0.0
  %416 = vmatpush1.msra.mxu0 0.0
  %417 = vmatprep.subr.mxu0 0.0
  %418 = vmatpush1.msra.mxu0 0.0
  %419 = vmatprep.subr.mxu0 0.0
  %420 = vmatpush1.msra.mxu0 0.0
  %421 = vmatprep.subr.mxu0 0.0
  %422 = vmatpush1.msra.mxu0 0.0
  %423 = vmatprep.subr.mxu0 0.0
  %424 = vmatpush1.msra.mxu0 0.0
  %425 = vmatprep.subr.mxu0 0.0
  %426 = vmatpush1.msra.mxu0 0.0
  %427 = vmatprep.subr.mxu0 0.0
  %428 = vmatpush1.msra.mxu0 0.0
  %429 = vmatprep.subr.mxu0 0.0
  %430 = vmatpush1.msra.mxu0 0.0
  %431 = vmatprep.subr.mxu0 0.0
  %432 = vmatpush1.msra.mxu0 0.0
  %433 = vmatprep.subr.mxu0 0.0
  %434 = vmatpush1.msra.mxu0 0.0
  %435 = vmatprep.subr.mxu0 0.0
  %436 = vmatpush1.msra.mxu0 0.0
  %437 = vmatprep.subr.mxu0 0.0
  %438 = vmatpush1.msra.mxu0 0.0
  %439 = vmatprep.subr.mxu0 0.0
  %440 = vmatpush1.msra.mxu0 0.0
  %441 = vmatprep.subr.mxu0 0.0
  %442 = vmatpush1.msra.mxu0 0.0
  %443 = vmatprep.subr.mxu0 0.0
  %444 = vmatpush1.msra.mxu0 0.0
  %445 = vmatprep.subr.mxu0 0.0
  %446 = vmatpush1.msra.mxu0 0.0
  %447 = vmatprep.subr.mxu0 0.0
  %448 = vmatpush1.msra.mxu0 0.0
  %449 = vmatprep.subr.mxu0 0.0
  %450 = vmatpush1.msra.mxu0 0.0
  %451 = vmatprep.subr.mxu0 0.0
  %452 = vmatpush1.msra.mxu0 0.0
  %453 = vmatprep.subr.mxu0 0.0
  %454 = vmatpush1.msra.mxu0 0.0
  %455 = vmatprep.subr.mxu0 0.0
  %456 = vmatpush1.msra.mxu0 0.0
  %457 = vmatprep.subr.mxu0 0.0
  %458 = vmatpush1.msra.mxu0 0.0
  %459 = vmatprep.subr.mxu0 0.0
  %460 = vmatpush1.msra.mxu0 0.0
  %461 = vmatprep.subr.mxu0 0.0
  %462 = vmatpush1.msra.mxu0 0.0
  %463 = vmatprep.subr.mxu0 0.0
  %464 = vmatpush1.msra.mxu0 0.0
  %465 = vmatprep.mubr.f32.mxu0 0.0
  %466 = vmatmul.mubr.f32.gmra.mrb[0].mxu0 %v396
  %v467 = vpop.f32.mrb[0].mxu0
  %v468 = vadd.f32 0.0, %v467
  %v469 = vpop.f32.mrb[0].mxu0
  %470 = vmatprep.mubr.f32.mxu0 0.0
  %471 = vmatmul.mubr.f32.gmra.mrb[0].mxu0 %v399
  %v472 = vpop.f32.mrb[0].mxu0
  %v473 = vadd.f32 0.0, %v472
  %v474 = vpop.f32.mrb[0].mxu0
  %475 = vdwg.mxu0
  %v476 = vld [vmem:[%s9] sm:$0xff]
  %v477 = vld [vmem:[%s9 + $0x8] sm:$0xff]
  %v478 = vadd.f32 %v306, %v308
  %v479 = vadd.f32 %v307, %v309
  %v481 = vsel %vm45, %v476, 0
  %v484 = vsel %vm45, %v477, 0
  %486 = vmatprep.subr.mxu0 0.0
  %487 = vmatpush1.msra.mxu0 %v478
  %488 = vmatprep.subr.mxu0 0.0
  %489 = vmatpush1.msra.mxu0 %v479
  %490 = vmatprep.subr.mxu0 0.0
  %491 = vmatpush1.msra.mxu0 0.0
  %492 = vmatprep.subr.mxu0 0.0
  %493 = vmatpush1.msra.mxu0 0.0
  %494 = vmatprep.subr.mxu0 0.0
  %495 = vmatpush1.msra.mxu0 0.0
  %496 = vmatprep.subr.mxu0 0.0
  %497 = vmatpush1.msra.mxu0 0.0
  %498 = vmatprep.subr.mxu0 0.0
  %499 = vmatpush1.msra.mxu0 0.0
  %500 = vmatprep.subr.mxu0 0.0
  %501 = vmatpush1.msra.mxu0 0.0
  %502 = vmatprep.subr.mxu0 0.0
  %503 = vmatpush1.msra.mxu0 0.0
  %504 = vmatprep.subr.mxu0 0.0
  %505 = vmatpush1.msra.mxu0 0.0
  %506 = vmatprep.subr.mxu0 0.0
  %507 = vmatpush1.msra.mxu0 0.0
  %508 = vmatprep.subr.mxu0 0.0
  %509 = vmatpush1.msra.mxu0 0.0
  %510 = vmatprep.subr.mxu0 0.0
  %511 = vmatpush1.msra.mxu0 0.0
  %512 = vmatprep.subr.mxu0 0.0
  %513 = vmatpush1.msra.mxu0 0.0
  %514 = vmatprep.subr.mxu0 0.0
  %515 = vmatpush1.msra.mxu0 0.0
  %516 = vmatprep.subr.mxu0 0.0
  %517 = vmatpush1.msra.mxu0 0.0
  %518 = vmatprep.subr.mxu0 0.0
  %519 = vmatpush1.msra.mxu0 0.0
  %520 = vmatprep.subr.mxu0 0.0
  %521 = vmatpush1.msra.mxu0 0.0
  %522 = vmatprep.subr.mxu0 0.0
  %523 = vmatpush1.msra.mxu0 0.0
  %524 = vmatprep.subr.mxu0 0.0
  %525 = vmatpush1.msra.mxu0 0.0
  %526 = vmatprep.subr.mxu0 0.0
  %527 = vmatpush1.msra.mxu0 0.0
  %528 = vmatprep.subr.mxu0 0.0
  %529 = vmatpush1.msra.mxu0 0.0
  %530 = vmatprep.subr.mxu0 0.0
  %531 = vmatpush1.msra.mxu0 0.0
  %532 = vmatprep.subr.mxu0 0.0
  %533 = vmatpush1.msra.mxu0 0.0
  %534 = vmatprep.subr.mxu0 0.0
  %535 = vmatpush1.msra.mxu0 0.0
  %536 = vmatprep.subr.mxu0 0.0
  %537 = vmatpush1.msra.mxu0 0.0
  %538 = vmatprep.subr.mxu0 0.0
  %539 = vmatpush1.msra.mxu0 0.0
  %540 = vmatprep.subr.mxu0 0.0
  %541 = vmatpush1.msra.mxu0 0.0
  %542 = vmatprep.subr.mxu0 0.0
  %543 = vmatpush1.msra.mxu0 0.0
  %544 = vmatprep.subr.mxu0 0.0
  %545 = vmatpush1.msra.mxu0 0.0
  %546 = vmatprep.subr.mxu0 0.0
  %547 = vmatpush1.msra.mxu0 0.0
  %548 = vmatprep.subr.mxu0 0.0
  %549 = vmatpush1.msra.mxu0 0.0
  %550 = vmatprep.mubr.f32.mxu0 0.0
  %551 = vmatmul.mubr.f32.gmra.mrb[0].mxu0 %v481
  %v552 = vpop.f32.mrb[0].mxu0
  %v553 = vadd.f32 0.0, %v552
  %v554 = vpop.f32.mrb[0].mxu0
  %555 = vmatprep.mubr.f32.mxu0 0.0
  %556 = vmatmul.mubr.f32.gmra.mrb[0].mxu0 %v484
  %v557 = vpop.f32.mrb[0].mxu0
  %v558 = vadd.f32 0.0, %v557
  %v559 = vpop.f32.mrb[0].mxu0
  %560 = vdwg.mxu0
  %v561 = vsub.f32 %v385, %v468
  %v562 = vsub.f32 %v390, %v473
  %563 = vst.msk [vmem:[%s12] sm:$0xff] %vm297, %v561
  %564 = vst.msk [vmem:[%s12 + $0x8] sm:$0xff] %vm297, %v562
  %v565 = vsub.f32 %v553, %v385
  %v566 = vsub.f32 %v558, %v390
  %v567 = vsub.f32 %v565, %v468
  %v568 = vsub.f32 %v566, %v473
  %569 = vst.msk [vmem:[%s13] sm:$0xff] %vm297, %v567
  %570 = vst.msk [vmem:[%s13 + $0x8] sm:$0xff] %vm297, %v568
  // Predicated region
  $region42: #{ffno2d_block_forward.2} parent=0 // pred_check
    _
  $region43: #{ffno2d_block_forward.2} parent=0 // pred_check_branch
    %572 = sbr.rel (0) target = $region45
  $region44: #{ffno2d_block_forward.2} parent=0 // pred_region
    _
  $region45: #{ffno2d_block_forward.2} parent=0 // pred_fallthru
    _
  // Predicated region
  $region46: #{ffno2d_block_forward.2} parent=0 // pred_check
    _
  $region47: #{ffno2d_block_forward.2} parent=0 // pred_check_branch
    %574 = sbr.rel (0) target = $region49
  $region48: #{ffno2d_block_forward.2} parent=0 // pred_region
    _
  $region49: #{ffno2d_block_forward.2} parent=0 // pred_fallthru
    _
  // Predicated region
  $region50: #{ffno2d_block_forward.2} parent=0 // pred_check
    _
  $region51: #{ffno2d_block_forward.2} parent=0 // pred_check_branch
    %576 = sbr.rel (0) target = $region53
  $region52: #{ffno2d_block_forward.2} parent=0 // pred_region
    _
  $region53: #{ffno2d_block_forward.2} parent=0 // pred_fallthru
    _
  // Predicated region
  $region54: #{ffno2d_block_forward.2} parent=0 // pred_check
    _
  $region55: #{ffno2d_block_forward.2} parent=0 // pred_check_branch
    %578 = sbr.rel (0) target = $region57
  $region56: #{ffno2d_block_forward.2} parent=0 // pred_region
    _
  $region57: #{ffno2d_block_forward.2} parent=0 // pred_fallthru
    _
  // Predicated region
  $region58: #{ffno2d_block_forward.2} parent=0 // pred_check
    _
  $region59: #{ffno2d_block_forward.2} parent=0 // pred_check_branch
    %580 = sbr.rel (0) target = $region61
  $region60: #{ffno2d_block_forward.2} parent=0 // pred_region
    _
  $region61: #{ffno2d_block_forward.2} parent=0 // pred_fallthru
    _
  // Predicated region
  $region62: #{ffno2d_block_forward.2} parent=0 // pred_check
    _
  $region63: #{ffno2d_block_forward.2} parent=0 // pred_check_branch
    %582 = sbr.rel (0) target = $region65
  $region64: #{ffno2d_block_forward.2} parent=0 // pred_region
    _
  $region65: #{ffno2d_block_forward.2} parent=0 // pred_fallthru
    _
  // Predicated region
  $region66: #{ffno2d_block_forward.2} parent=0 // pred_check
    _
  $region67: #{ffno2d_block_forward.2} parent=0 // pred_check_branch
    %584 = sbr.rel (0) target = $region69
  $region68: #{ffno2d_block_forward.2} parent=0 // pred_region
    _
  $region69: #{ffno2d_block_forward.2} parent=0 // pred_fallthru
    _
  // Predicated region
  $region70: #{ffno2d_block_forward.2} parent=0 // pred_check
    _
  $region71: #{ffno2d_block_forward.2} parent=0 // pred_check_branch
    %586 = sbr.rel (0) target = $region73
  $region72: #{ffno2d_block_forward.2} parent=0 // pred_region
    _
  $region73: #{ffno2d_block_forward.2} parent=0 // pred_fallthru
    _

// kernel: ffno2d_block_forward.3
$region0: #{ffno2d_block_forward.3}
  #allocation0 [shape = 'u32[]', space=smem, size = 0x4, offset = 0x4, fixed_abs, tag = 'smem constant byte address 0x4 - core index']
  #allocation1 [shape = 'u32[144,128]{1,0:T(1,128)}', space=vmem, size = 0x12000, scoped, tag = 'internal scratch']
  %s0 = inlined_call_operand.vmem [shape: f32[2,4,256], index: 0, kind: input, shape index: {}]
  %s1 = inlined_call_operand.vmem [shape: f32[2,4,256], index: 1, kind: input, shape index: {}]
  %s2 = inlined_call_operand.vmem [shape: f32[9,256], index: 2, kind: input, shape index: {}]
  %s3 = inlined_call_operand.vmem [shape: f32[4,1], index: 3, kind: input, shape index: {}]
  %s4 = inlined_call_operand.vmem [shape: f32[4,1], index: 4, kind: input, shape index: {}]
  %s5 = inlined_call_operand.vmem [shape: f32[8,4], index: 5, kind: input, shape index: {}]
  %s6 = inlined_call_operand.vmem [shape: f32[8,1], index: 6, kind: input, shape index: {}]
  %s7 = inlined_call_operand.vmem [shape: f32[8,9], index: 7, kind: input, shape index: {}]
  %s8 = inlined_call_operand.vmem [shape: f32[8,1], index: 8, kind: input, shape index: {}]
  %s9 = inlined_call_operand.vmem [shape: f32[8,1], index: 9, kind: input, shape index: {}]
  %s10 = inlined_call_operand.vmem [shape: f32[8,1], index: 10, kind: input, shape index: {}]
  %s11 = inlined_call_operand.vmem [shape: f32[4,8], index: 11, kind: input, shape index: {}]
  %s12 = inlined_call_operand.vmem [shape: f32[4,1], index: 12, kind: input, shape index: {}]
  %s13 = inlined_call_operand.vmem [shape: f32[4,1], index: 13, kind: input, shape index: {}]
  %s14 = inlined_call_operand.vmem [shape: f32[4,1], index: 14, kind: input, shape index: {}]
  %s15 = inlined_call_operand.vmem [shape: f32[4,4], index: 15, kind: input, shape index: {}]
  %s16 = inlined_call_operand.vmem [shape: f32[4,1], index: 16, kind: input, shape index: {}]
  %s17 = inlined_call_operand.vmem [shape: f32[4,9], index: 17, kind: input, shape index: {}]
  %s18 = inlined_call_operand.vmem [shape: f32[4,1], index: 18, kind: input, shape index: {}]
  %s19 = inlined_call_operand.vmem [shape: f32[2,4,256], index: 19, kind: output, shape index: {}]
  %s20 = sld [smem:[#allocation0]]
  $region109: #{ffno2d_block_forward.3} parent=0
    _
  %s22 = ssub.s32 1, %s20
  %s23 = scalar_select 0, %s22, %s20
  loop: start=0, step=1, limit=4
  $region2: #{ffno2d_block_forward.3} parent=0 // loop_pre_header
    _
  $region3: #{ffno2d_block_forward.3} parent=0 // loop_header
    %s25 = sphi 0, %s29
    %p26 = scmp.ge.s32.totalorder %s25, 4
    %s35 = sphi 0, %s37
    %s38 = sphi 0, %s35
    %s39 = sphi 0, %s38
    %s55 = sphi 0, %s39
    %s61 = sphi 0, %s63
    %s64 = sphi 0, %s61
    %s65 = sphi 0, %s64
    %s81 = sphi 0, %s65
    %s85 = sphi 0, %s85
    %s87 = sphi 0, %s85
    %s88 = sphi 0, %s87
    %s102 = sphi 0, %s88
    %s106 = sphi 0, %s106
    %s108 = sphi 0, %s106
    %s109 = sphi 0, %s108
    %s123 = sphi 0, %s109
    %s127 = sphi 0, %s127
    %s129 = sphi 0, %s127
    %s130 = sphi 0, %s129
    %s144 = sphi 0, %s130
    %s148 = sphi 0, %s148
    %s150 = sphi 0, %s148
    %s151 = sphi 0, %s150
    %s165 = sphi 0, %s151
    %s169 = sphi 0, %s169
    %s171 = sphi 0, %s169
    %s172 = sphi 0, %s171
    %s186 = sphi 0, %s172
    %s190 = sphi 0, %s190
    %s192 = sphi 0, %s190
    %s193 = sphi 0, %s192
    %s207 = sphi 0, %s193
    %s211 = sphi 0, %s211
    %s213 = sphi 0, %s211
    %s214 = sphi 0, %s213
    %s228 = sphi 0, %s214
    %s232 = sphi 0, %s232
    %s234 = sphi 0, %s232
    %s235 = sphi 0, %s234
    %s249 = sphi 0, %s235
    %s253 = sphi 0, %s253
    %s255 = sphi 0, %s253
    %s256 = sphi 0, %s255
    %s270 = sphi 0, %s256
    %s274 = sphi 0, %s274
    %s276 = sphi 0, %s274
    %s277 = sphi 0, %s276
    %s291 = sphi 0, %s277
    %s295 = sphi 0, %s295
    %s297 = sphi 0, %s295
    %s298 = sphi 0, %s297
    %s312 = sphi 0, %s298
    %s316 = sphi 0, %s316
    %s318 = sphi 0, %s316
    %s319 = sphi 0, %s318
    %s333 = sphi 0, %s319
    %s337 = sphi 0, %s337
    %s339 = sphi 0, %s337
    %s340 = sphi 0, %s339
    %s354 = sphi 0, %s340
    %s358 = sphi 0, %s358
    %s360 = sphi 0, %s358
    %s361 = sphi 0, %s360
    %s375 = sphi 0, %s361
    %s379 = sphi 0, %s379
    %s381 = sphi 0, %s379
    %s382 = sphi 0, %s381
    %s396 = sphi 0, %s382
    %s400 = sphi 0, %s400
    %s402 = sphi 0, %s400
    %s403 = sphi 0, %s402
    %s417 = sphi 0, %s403
    %s421 = sphi 0, %s421
    %s423 = sphi 0, %s421
    %s424 = sphi 0, %s423
    %s438 = sphi 0, %s424
    %s444 = sphi 0, %s446
    %s447 = sphi 0, %s444
    %s448 = sphi 0, %s447
    %s464 = sphi 0, %s448
  $region4: #{ffno2d_block_forward.3} parent=0 // loop_header_branch
    %28 = sbr.rel (%p26) target = $region8
  $region5: #{ffno2d_block_forward.3} parent=0 // loop_body
    %s30 = ssub.s32 %s25, 1
    %s31 = ssub.s32 %s25, 2
    %s32 = sadd.s32 %s25, 1
    %s33 = ssub.s32 %s25, %s32
    %p34 = scmp.eq.s32.totalorder %s33, 0
    %s36 = sadd.s32 %s35, 1
    %s37 = scalar_select %p34, %s35, %s36
    %p40 = pneg %p34
    %p41 = scmp.eq.s32.totalorder %s25, 1
    %p42 = por %p40, %p41
    %p43 = scmp.ne.s32.totalorder %s35, %s38
    %p44 = scmp.eq.s32.totalorder %s25, 0
    %p45 = por %p43, %p44
    %p46 = scmp.ne.s32.totalorder %s35, %s38
    %p47 = scmp.eq.s32.totalorder %s30, 1
    %p48 = por %p46, %p47
    %p49 = scmp.ne.s32.totalorder %s38, %s39
    %p50 = scmp.eq.s32.totalorder %s30, 0
    %p51 = por %p49, %p50
    %p52 = scmp.ne.s32.totalorder %s38, %s39
    %p53 = scmp.eq.s32.totalorder %s31, 1
    %p54 = por %p52, %p53
    %p56 = scmp.ne.s32.totalorder %s39, %s55
    %p57 = scmp.eq.s32.totalorder %s31, 0
    %p58 = por %p56, %p57
    %s59 = ssub.s32 %s25, %s32
    %p60 = scmp.eq.s32.totalorder %s59, 0
    %s62 = sadd.s32 %s61, 1
    %s63 = scalar_select %p60, %s61, %s62
    %p66 = pneg %p60
    %p67 = scmp.eq.s32.totalorder %s25, 1
    %p68 = por %p66, %p67
    %p69 = scmp.ne.s32.totalorder %s61, %s64
    %p70 = scmp.eq.s32.totalorder %s25, 0
    %p71 = por %p69, %p70
    %p72 = scmp.ne.s32.totalorder %s61, %s64
    %p73 = scmp.eq.s32.totalorder %s30, 1
    %p74 = por %p72, %p73
    %p75 = scmp.ne.s32.totalorder %s64, %s65
    %p76 = scmp.eq.s32.totalorder %s30, 0
    %p77 = por %p75, %p76
    %p78 = scmp.ne.s32.totalorder %s64, %s65
    %p79 = scmp.eq.s32.totalorder %s31, 1
    %p80 = por %p78, %p79
    %p82 = scmp.ne.s32.totalorder %s65, %s81
    %p83 = scmp.eq.s32.totalorder %s31, 0
    %p84 = por %p82, %p83
    %s86 = sadd.s32 %s85, 1
    %p89 = scmp.eq.s32.totalorder %s25, 1
    %p90 = scmp.ne.s32.totalorder %s85, %s87
    %p91 = scmp.eq.s32.totalorder %s25, 0
    %p92 = por %p90, %p91
    %p93 = scmp.ne.s32.totalorder %s85, %s87
    %p94 = scmp.eq.s32.totalorder %s30, 1
    %p95 = por %p93, %p94
    %p96 = scmp.ne.s32.totalorder %s87, %s88
    %p97 = scmp.eq.s32.totalorder %s30, 0
    %p98 = por %p96, %p97
    %p99 = scmp.ne.s32.totalorder %s87, %s88
    %p100 = scmp.eq.s32.totalorder %s31, 1
    %p101 = por %p99, %p100
    %p103 = scmp.ne.s32.totalorder %s88, %s102
    %p104 = scmp.eq.s32.totalorder %s31, 0
    %p105 = por %p103, %p104
    %s107 = sadd.s32 %s106, 1
    %p110 = scmp.eq.s32.totalorder %s25, 1
    %p111 = scmp.ne.s32.totalorder %s106, %s108
    %p112 = scmp.eq.s32.totalorder %s25, 0
    %p113 = por %p111, %p112
    %p114 = scmp.ne.s32.totalorder %s106, %s108
    %p115 = scmp.eq.s32.totalorder %s30, 1
    %p116 = por %p114, %p115
    %p117 = scmp.ne.s32.totalorder %s108, %s109
    %p118 = scmp.eq.s32.totalorder %s30, 0
    %p119 = por %p117, %p118
    %p120 = scmp.ne.s32.totalorder %s108, %s109
    %p121 = scmp.eq.s32.totalorder %s31, 1
    %p122 = por %p120, %p121
    %p124 = scmp.ne.s32.totalorder %s109, %s123
    %p125 = scmp.eq.s32.totalorder %s31, 0
    %p126 = por %p124, %p125
    %s128 = sadd.s32 %s127, 1
    %p131 = scmp.eq.s32.totalorder %s25, 1
    %p132 = scmp.ne.s32.totalorder %s127, %s129
    %p133 = scmp.eq.s32.totalorder %s25, 0
    %p134 = por %p132, %p133
    %p135 = scmp.ne.s32.totalorder %s127, %s129
    %p136 = scmp.eq.s32.totalorder %s30, 1
    %p137 = por %p135, %p136
    %p138 = scmp.ne.s32.totalorder %s129, %s130
    %p139 = scmp.eq.s32.totalorder %s30, 0
    %p140 = por %p138, %p139
    %p141 = scmp.ne.s32.totalorder %s129, %s130
    %p142 = scmp.eq.s32.totalorder %s31, 1
    %p143 = por %p141, %p142
    %p145 = scmp.ne.s32.totalorder %s130, %s144
    %p146 = scmp.eq.s32.totalorder %s31, 0
    %p147 = por %p145, %p146
    %s149 = sadd.s32 %s148, 1
    %p152 = scmp.eq.s32.totalorder %s25, 1
    %p153 = scmp.ne.s32.totalorder %s148, %s150
    %p154 = scmp.eq.s32.totalorder %s25, 0
    %p155 = por %p153, %p154
    %p156 = scmp.ne.s32.totalorder %s148, %s150
    %p157 = scmp.eq.s32.totalorder %s30, 1
    %p158 = por %p156, %p157
    %p159 = scmp.ne.s32.totalorder %s150, %s151
    %p160 = scmp.eq.s32.totalorder %s30, 0
    %p161 = por %p159, %p160
    %p162 = scmp.ne.s32.totalorder %s150, %s151
    %p163 = scmp.eq.s32.totalorder %s31, 1
    %p164 = por %p162, %p163
    %p166 = scmp.ne.s32.totalorder %s151, %s165
    %p167 = scmp.eq.s32.totalorder %s31, 0
    %p168 = por %p166, %p167
    %s170 = sadd.s32 %s169, 1
    %p173 = scmp.eq.s32.totalorder %s25, 1
    %p174 = scmp.ne.s32.totalorder %s169, %s171
    %p175 = scmp.eq.s32.totalorder %s25, 0
    %p176 = por %p174, %p175
    %p177 = scmp.ne.s32.totalorder %s169, %s171
    %p178 = scmp.eq.s32.totalorder %s30, 1
    %p179 = por %p177, %p178
    %p180 = scmp.ne.s32.totalorder %s171, %s172
    %p181 = scmp.eq.s32.totalorder %s30, 0
    %p182 = por %p180, %p181
    %p183 = scmp.ne.s32.totalorder %s171, %s172
    %p184 = scmp.eq.s32.totalorder %s31, 1
    %p185 = por %p183, %p184
    %p187 = scmp.ne.s32.totalorder %s172, %s186
    %p188 = scmp.eq.s32.totalorder %s31, 0
    %p189 = por %p187, %p188
    %s191 = sadd.s32 %s190, 1
    %p194 = scmp.eq.s32.totalorder %s25, 1
    %p195 = scmp.ne.s32.totalorder %s190, %s192
    %p196 = scmp.eq.s32.totalorder %s25, 0
    %p197 = por %p195, %p196
    %p198 = scmp.ne.s32.totalorder %s190, %s192
    %p199 = scmp.eq.s32.totalorder %s30, 1
    %p200 = por %p198, %p199
    %p201 = scmp.ne.s32.totalorder %s192, %s193
    %p202 = scmp.eq.s32.totalorder %s30, 0
    %p203 = por %p201, %p202
    %p204 = scmp.ne.s32.totalorder %s192, %s193
    %p205 = scmp.eq.s32.totalorder %s31, 1
    %p206 = por %p204, %p205
    %p208 = scmp.ne.s32.totalorder %s193, %s207
    %p209 = scmp.eq.s32.totalorder %s31, 0
    %p210 = por %p208, %p209
    %s212 = sadd.s32 %s211, 1
    %p215 = scmp.eq.s32.totalorder %s25, 1
    %p216 = scmp.ne.s32.totalorder %s211, %s213
    %p217 = scmp.eq.s32.totalorder %s25, 0
    %p218 = por %p216, %p217
    %p219 = scmp.ne.s32.totalorder %s211, %s213
    %p220 = scmp.eq.s32.totalorder %s30, 1
    %p221 = por %p219, %p220
    %p222 = scmp.ne.s32.totalorder %s213, %s214
    %p223 = scmp.eq.s32.totalorder %s30, 0
    %p224 = por %p222, %p223
    %p225 = scmp.ne.s32.totalorder %s213, %s214
    %p226 = scmp.eq.s32.totalorder %s31, 1
    %p227 = por %p225, %p226
    %p229 = scmp.ne.s32.totalorder %s214, %s228
    %p230 = scmp.eq.s32.totalorder %s31, 0
    %p231 = por %p229, %p230
    %s233 = sadd.s32 %s232, 1
    %p236 = scmp.eq.s32.totalorder %s25, 1
    %p237 = scmp.ne.s32.totalorder %s232, %s234
    %p238 = scmp.eq.s32.totalorder %s25, 0
    %p239 = por %p237, %p238
    %p240 = scmp.ne.s32.totalorder %s232, %s234
    %p241 = scmp.eq.s32.totalorder %s30, 1
    %p242 = por %p240, %p241
    %p243 = scmp.ne.s32.totalorder %s234, %s235
    %p244 = scmp.eq.s32.totalorder %s30, 0
    %p245 = por %p243, %p244
    %p246 = scmp.ne.s32.totalorder %s234, %s235
    %p247 = scmp.eq.s32.totalorder %s31, 1
    %p248 = por %p246, %p247
    %p250 = scmp.ne.s32.totalorder %s235, %s249
    %p251 = scmp.eq.s32.totalorder %s31, 0
    %p252 = por %p250, %p251
    %s254 = sadd.s32 %s253, 1
    %p257 = scmp.eq.s32.totalorder %s25, 1
    %p258 = scmp.ne.s32.totalorder %s253, %s255
    %p259 = scmp.eq.s32.totalorder %s25, 0
    %p260 = por %p258, %p259
    %p261 = scmp.ne.s32.totalorder %s253, %s255
    %p262 = scmp.eq.s32.totalorder %s30, 1
    %p263 = por %p261, %p262
    %p264 = scmp.ne.s32.totalorder %s255, %s256
    %p265 = scmp.eq.s32.totalorder %s30, 0
    %p266 = por %p264, %p265
    %p267 = scmp.ne.s32.totalorder %s255, %s256
    %p268 = scmp.eq.s32.totalorder %s31, 1
    %p269 = por %p267, %p268
    %p271 = scmp.ne.s32.totalorder %s256, %s270
    %p272 = scmp.eq.s32.totalorder %s31, 0
    %p273 = por %p271, %p272
    %s275 = sadd.s32 %s274, 1
    %p278 = scmp.eq.s32.totalorder %s25, 1
    %p279 = scmp.ne.s32.totalorder %s274, %s276
    %p280 = scmp.eq.s32.totalorder %s25, 0
    %p281 = por %p279, %p280
    %p282 = scmp.ne.s32.totalorder %s274, %s276
    %p283 = scmp.eq.s32.totalorder %s30, 1
    %p284 = por %p282, %p283
    %p285 = scmp.ne.s32.totalorder %s276, %s277
    %p286 = scmp.eq.s32.totalorder %s30, 0
    %p287 = por %p285, %p286
    %p288 = scmp.ne.s32.totalorder %s276, %s277
    %p289 = scmp.eq.s32.totalorder %s31, 1
    %p290 = por %p288, %p289
    %p292 = scmp.ne.s32.totalorder %s277, %s291
    %p293 = scmp.eq.s32.totalorder %s31, 0
    %p294 = por %p292, %p293
    %s296 = sadd.s32 %s295, 1
    %p299 = scmp.eq.s32.totalorder %s25, 1
    %p300 = scmp.ne.s32.totalorder %s295, %s297
    %p301 = scmp.eq.s32.totalorder %s25, 0
    %p302 = por %p300, %p301
    %p303 = scmp.ne.s32.totalorder %s295, %s297
    %p304 = scmp.eq.s32.totalorder %s30, 1
    %p305 = por %p303, %p304
    %p306 = scmp.ne.s32.totalorder %s297, %s298
    %p307 = scmp.eq.s32.totalorder %s30, 0
    %p308 = por %p306, %p307
    %p309 = scmp.ne.s32.totalorder %s297, %s298
    %p310 = scmp.eq.s32.totalorder %s31, 1
    %p311 = por %p309, %p310
    %p313 = scmp.ne.s32.totalorder %s298, %s312
    %p314 = scmp.eq.s32.totalorder %s31, 0
    %p315 = por %p313, %p314
    %s317 = sadd.s32 %s316, 1
    %p320 = scmp.eq.s32.totalorder %s25, 1
    %p321 = scmp.ne.s32.totalorder %s316, %s318
    %p322 = scmp.eq.s32.totalorder %s25, 0
    %p323 = por %p321, %p322
    %p324 = scmp.ne.s32.totalorder %s316, %s318
    %p325 = scmp.eq.s32.totalorder %s30, 1
    %p326 = por %p324, %p325
    %p327 = scmp.ne.s32.totalorder %s318, %s319
    %p328 = scmp.eq.s32.totalorder %s30, 0
    %p329 = por %p327, %p328
    %p330 = scmp.ne.s32.totalorder %s318, %s319
    %p331 = scmp.eq.s32.totalorder %s31, 1
    %p332 = por %p330, %p331
    %p334 = scmp.ne.s32.totalorder %s319, %s333
    %p335 = scmp.eq.s32.totalorder %s31, 0
    %p336 = por %p334, %p335
    %s338 = sadd.s32 %s337, 1
    %p341 = scmp.eq.s32.totalorder %s25, 1
    %p342 = scmp.ne.s32.totalorder %s337, %s339
    %p343 = scmp.eq.s32.totalorder %s25, 0
    %p344 = por %p342, %p343
    %p345 = scmp.ne.s32.totalorder %s337, %s339
    %p346 = scmp.eq.s32.totalorder %s30, 1
    %p347 = por %p345, %p346
    %p348 = scmp.ne.s32.totalorder %s339, %s340
    %p349 = scmp.eq.s32.totalorder %s30, 0
    %p350 = por %p348, %p349
    %p351 = scmp.ne.s32.totalorder %s339, %s340
    %p352 = scmp.eq.s32.totalorder %s31, 1
    %p353 = por %p351, %p352
    %p355 = scmp.ne.s32.totalorder %s340, %s354
    %p356 = scmp.eq.s32.totalorder %s31, 0
    %p357 = por %p355, %p356
    %s359 = sadd.s32 %s358, 1
    %p362 = scmp.eq.s32.totalorder %s25, 1
    %p363 = scmp.ne.s32.totalorder %s358, %s360
    %p364 = scmp.eq.s32.totalorder %s25, 0
    %p365 = por %p363, %p364
    %p366 = scmp.ne.s32.totalorder %s358, %s360
    %p367 = scmp.eq.s32.totalorder %s30, 1
    %p368 = por %p366, %p367
    %p369 = scmp.ne.s32.totalorder %s360, %s361
    %p370 = scmp.eq.s32.totalorder %s30, 0
    %p371 = por %p369, %p370
    %p372 = scmp.ne.s32.totalorder %s360, %s361
    %p373 = scmp.eq.s32.totalorder %s31, 1
    %p374 = por %p372, %p373
    %p376 = scmp.ne.s32.totalorder %s361, %s375
    %p377 = scmp.eq.s32.totalorder %s31, 0
    %p378 = por %p376, %p377
    %s380 = sadd.s32 %s379, 1
    %p383 = scmp.eq.s32.totalorder %s25, 1
    %p384 = scmp.ne.s32.totalorder %s379, %s381
    %p385 = scmp.eq.s32.totalorder %s25, 0
    %p386 = por %p384, %p385
    %p387 = scmp.ne.s32.totalorder %s379, %s381
    %p388 = scmp.eq.s32.totalorder %s30, 1
    %p389 = por %p387, %p388
    %p390 = scmp.ne.s32.totalorder %s381, %s382
    %p391 = scmp.eq.s32.totalorder %s30, 0
    %p392 = por %p390, %p391
    %p393 = scmp.ne.s32.totalorder %s381, %s382
    %p394 = scmp.eq.s32.totalorder %s31, 1
    %p395 = por %p393, %p394
    %p397 = scmp.ne.s32.totalorder %s382, %s396
    %p398 = scmp.eq.s32.totalorder %s31, 0
    %p399 = por %p397, %p398
    %s401 = sadd.s32 %s400, 1
    %p404 = scmp.eq.s32.totalorder %s25, 1
    %p405 = scmp.ne.s32.totalorder %s400, %s402
    %p406 = scmp.eq.s32.totalorder %s25, 0
    %p407 = por %p405, %p406
    %p408 = scmp.ne.s32.totalorder %s400, %s402
    %p409 = scmp.eq.s32.totalorder %s30, 1
    %p410 = por %p408, %p409
    %p411 = scmp.ne.s32.totalorder %s402, %s403
    %p412 = scmp.eq.s32.totalorder %s30, 0
    %p413 = por %p411, %p412
    %p414 = scmp.ne.s32.totalorder %s402, %s403
    %p415 = scmp.eq.s32.totalorder %s31, 1
    %p416 = por %p414, %p415
    %p418 = scmp.ne.s32.totalorder %s403, %s417
    %p419 = scmp.eq.s32.totalorder %s31, 0
    %p420 = por %p418, %p419
    %s422 = sadd.s32 %s421, 1
    %p425 = scmp.eq.s32.totalorder %s25, 1
    %p426 = scmp.ne.s32.totalorder %s421, %s423
    %p427 = scmp.eq.s32.totalorder %s25, 0
    %p428 = por %p426, %p427
    %p429 = scmp.ne.s32.totalorder %s421, %s423
    %p430 = scmp.eq.s32.totalorder %s30, 1
    %p431 = por %p429, %p430
    %p432 = scmp.ne.s32.totalorder %s423, %s424
    %p433 = scmp.eq.s32.totalorder %s30, 0
    %p434 = por %p432, %p433
    %p435 = scmp.ne.s32.totalorder %s423, %s424
    %p436 = scmp.eq.s32.totalorder %s31, 1
    %p437 = por %p435, %p436
    %p439 = scmp.ne.s32.totalorder %s424, %s438
    %p440 = scmp.eq.s32.totalorder %s31, 0
    %p441 = por %p439, %p440
    %s442 = ssub.s32 %s25, %s32
    %p443 = scmp.eq.s32.totalorder %s442, 0
    %s445 = sadd.s32 %s444, 1
    %s446 = scalar_select %p443, %s444, %s445
    %p449 = pneg %p443
    %p450 = scmp.eq.s32.totalorder %s25, 1
    %p451 = por %p449, %p450
    %p452 = scmp.ne.s32.totalorder %s444, %s447
    %p453 = scmp.eq.s32.totalorder %s25, 0
    %p454 = por %p452, %p453
    %p455 = scmp.ne.s32.totalorder %s444, %s447
    %p456 = scmp.eq.s32.totalorder %s30, 1
    %p457 = por %p455, %p456
    %p458 = scmp.ne.s32.totalorder %s447, %s448
    %p459 = scmp.eq.s32.totalorder %s30, 0
    %p460 = por %p458, %p459
    %p461 = scmp.ne.s32.totalorder %s447, %s448
    %p462 = scmp.eq.s32.totalorder %s31, 1
    %p463 = por %p461, %p462
    %p465 = scmp.ne.s32.totalorder %s448, %s464
    %p466 = scmp.eq.s32.totalorder %s31, 0
    %p467 = por %p465, %p466
    %p468 = scmp.le.s32.totalorder 1, %s25
    %p469 = scmp.lt.s32.totalorder %s25, 3
    %p470 = pnand %p468, %p469
    %p471 = pneg %p470
    // Predicated region
    $region9: #{ffno2d_block_forward.3} parent=5 // pred_check
      _
    $region10: #{ffno2d_block_forward.3} parent=5 // pred_check_branch
      %473 = sbr.rel (%p470) target = $region12
    $region11: #{ffno2d_block_forward.3} parent=5 // pred_region
      %s474 = ssub.s32 %s25, 1
      // Predicated region
      $region13: #{ffno2d_block_forward.3} parent=11 // pred_check
        %p475 = pneg %p98
      $region14: #{ffno2d_block_forward.3} parent=11 // pred_check_branch
        %477 = sbr.rel (%p475) target = $region16
      $region15: #{ffno2d_block_forward.3} parent=11 // pred_region
        _
      $region16: #{ffno2d_block_forward.3} parent=11 // pred_fallthru
        _
      // Predicated region
      $region17: #{ffno2d_block_forward.3} parent=11 // pred_check
        %p478 = pneg %p119
      $region18: #{ffno2d_block_forward.3} parent=11 // pred_check_branch
        %480 = sbr.rel (%p478) target = $region20
      $region19: #{ffno2d_block_forward.3} parent=11 // pred_region
        _
      $region20: #{ffno2d_block_forward.3} parent=11 // pred_fallthru
        _
      // Predicated region
      $region21: #{ffno2d_block_forward.3} parent=11 // pred_check
        %p481 = pneg %p140
      $region22: #{ffno2d_block_forward.3} parent=11 // pred_check_branch
        %483 = sbr.rel (%p481) target = $region24
      $region23: #{ffno2d_block_forward.3} parent=11 // pred_region
        _
      $region24: #{ffno2d_block_forward.3} parent=11 // pred_fallthru
        _
      // Predicated region
      $region25: #{ffno2d_block_forward.3} parent=11 // pred_check
        %p484 = pneg %p161
      $region26: #{ffno2d_block_forward.3} parent=11 // pred_check_branch
        %486 = sbr.rel (%p484) target = $region28
      $region27: #{ffno2d_block_forward.3} parent=11 // pred_region
        _
      $region28: #{ffno2d_block_forward.3} parent=11 // pred_fallthru
        _
      // Predicated region
      $region29: #{ffno2d_block_forward.3} parent=11 // pred_check
        %p487 = pneg %p182
      $region30: #{ffno2d_block_forward.3} parent=11 // pred_check_branch
        %489 = sbr.rel (%p487) target = $region32
      $region31: #{ffno2d_block_forward.3} parent=11 // pred_region
        _
      $region32: #{ffno2d_block_forward.3} parent=11 // pred_fallthru
        _
      // Predicated region
      $region33: #{ffno2d_block_forward.3} parent=11 // pred_check
        %p490 = pneg %p203
      $region34: #{ffno2d_block_forward.3} parent=11 // pred_check_branch
        %492 = sbr.rel (%p490) target = $region36
      $region35: #{ffno2d_block_forward.3} parent=11 // pred_region
        _
      $region36: #{ffno2d_block_forward.3} parent=11 // pred_fallthru
        _
      // Predicated region
      $region37: #{ffno2d_block_forward.3} parent=11 // pred_check
        %p493 = pneg %p224
      $region38: #{ffno2d_block_forward.3} parent=11 // pred_check_branch
        %495 = sbr.rel (%p493) target = $region40
      $region39: #{ffno2d_block_forward.3} parent=11 // pred_region
        _
      $region40: #{ffno2d_block_forward.3} parent=11 // pred_fallthru
        _
      // Predicated region
      $region41: #{ffno2d_block_forward.3} parent=11 // pred_check
        %p496 = pneg %p245
      $region42: #{ffno2d_block_forward.3} parent=11 // pred_check_branch
        %498 = sbr.rel (%p496) target = $region44
      $region43: #{ffno2d_block_forward.3} parent=11 // pred_region
        _
      $region44: #{ffno2d_block_forward.3} parent=11 // pred_fallthru
        _
      // Predicated region
      $region45: #{ffno2d_block_forward.3} parent=11 // pred_check
        %p499 = pneg %p266
      $region46: #{ffno2d_block_forward.3} parent=11 // pred_check_branch
        %501 = sbr.rel (%p499) target = $region48
      $region47: #{ffno2d_block_forward.3} parent=11 // pred_region
        _
      $region48: #{ffno2d_block_forward.3} parent=11 // pred_fallthru
        _
      // Predicated region
      $region49: #{ffno2d_block_forward.3} parent=11 // pred_check
        %p502 = pneg %p287
      $region50: #{ffno2d_block_forward.3} parent=11 // pred_check_branch
        %504 = sbr.rel (%p502) target = $region52
      $region51: #{ffno2d_block_forward.3} parent=11 // pred_region
        _
      $region52: #{ffno2d_block_forward.3} parent=11 // pred_fallthru
        _
      // Predicated region
      $region53: #{ffno2d_block_forward.3} parent=11 // pred_check
        %p505 = pneg %p308
      $region54: #{ffno2d_block_forward.3} parent=11 // pred_check_branch
        %507 = sbr.rel (%p505) target = $region56
      $region55: #{ffno2d_block_forward.3} parent=11 // pred_region
        _
      $region56: #{ffno2d_block_forward.3} parent=11 // pred_fallthru
        _
      // Predicated region
      $region57: #{ffno2d_block_forward.3} parent=11 // pred_check
        %p508 = pneg %p329
      $region58: #{ffno2d_block_forward.3} parent=11 // pred_check_branch
        %510 = sbr.rel (%p508) target = $region60
      $region59: #{ffno2d_block_forward.3} parent=11 // pred_region
        _
      $region60: #{ffno2d_block_forward.3} parent=11 // pred_fallthru
        _
      // Predicated region
      $region61: #{ffno2d_block_forward.3} parent=11 // pred_check
        %p511 = pneg %p350
      $region62: #{ffno2d_block_forward.3} parent=11 // pred_check_branch
        %513 = sbr.rel (%p511) target = $region64
      $region63: #{ffno2d_block_forward.3} parent=11 // pred_region
        _
      $region64: #{ffno2d_block_forward.3} parent=11 // pred_fallthru
        _
      // Predicated region
      $region65: #{ffno2d_block_forward.3} parent=11 // pred_check
        %p514 = pneg %p371
      $region66: #{ffno2d_block_forward.3} parent=11 // pred_check_branch
        %516 = sbr.rel (%p514) target = $region68
      $region67: #{ffno2d_block_forward.3} parent=11 // pred_region
        _
      $region68: #{ffno2d_block_forward.3} parent=11 // pred_fallthru
        _
      // Predicated region
      $region69: #{ffno2d_block_forward.3} parent=11 // pred_check
        %p517 = pneg %p392
      $region70: #{ffno2d_block_forward.3} parent=11 // pred_check_branch
        %519 = sbr.rel (%p517) target = $region72
      $region71: #{ffno2d_block_forward.3} parent=11 // pred_region
        _
      $region72: #{ffno2d_block_forward.3} parent=11 // pred_fallthru
        _
      // Predicated region
      $region73: #{ffno2d_block_forward.3} parent=11 // pred_check
        %p520 = pneg %p413
      $region74: #{ffno2d_block_forward.3} parent=11 // pred_check_branch
        %522 = sbr.rel (%p520) target = $region76
      $region75: #{ffno2d_block_forward.3} parent=11 // pred_region
        _
      $region76: #{ffno2d_block_forward.3} parent=11 // pred_fallthru
        _
      // Predicated region
      $region77: #{ffno2d_block_forward.3} parent=11 // pred_check
        %p523 = pneg %p434
      $region78: #{ffno2d_block_forward.3} parent=11 // pred_check_branch
        %525 = sbr.rel (%p523) target = $region80
      $region79: #{ffno2d_block_forward.3} parent=11 // pred_region
        _
      $region80: #{ffno2d_block_forward.3} parent=11 // pred_fallthru
        _
    $region12: #{ffno2d_block_forward.3} parent=5 // pred_fallthru
      _
    %p526 = scmp.lt.s32.totalorder %s25, 2
    // Predicated region
    $region81: #{ffno2d_block_forward.3} parent=5 // pred_check
      %p527 = pneg %p526
    $region82: #{ffno2d_block_forward.3} parent=5 // pred_check_branch
      %529 = sbr.rel (%p527) target = $region84
    $region83: #{ffno2d_block_forward.3} parent=5 // pred_region
      // Predicated region
      $region85: #{ffno2d_block_forward.3} parent=83 // pred_check
        %p530 = pneg %p45
      $region86: #{ffno2d_block_forward.3} parent=83 // pred_check_branch
        %532 = sbr.rel (%p530) target = $region88
      $region87: #{ffno2d_block_forward.3} parent=83 // pred_region
        %p533 = scmp.lt.s32.totalorder %s25, 1
        %s534 = scalar_select %p533, %s25, 1
        %s535 = smul.addr %s534, 2
        %s536 = smul.addr %s535, 4
        %s537 = scalar_lea.vmem %s0, %s536
      $region88: #{ffno2d_block_forward.3} parent=83 // pred_fallthru
        _
      // Predicated region
      $region89: #{ffno2d_block_forward.3} parent=83 // pred_check
        %p538 = pneg %p71
      $region90: #{ffno2d_block_forward.3} parent=83 // pred_check_branch
        %540 = sbr.rel (%p538) target = $region92
      $region91: #{ffno2d_block_forward.3} parent=83 // pred_region
        %p541 = scmp.lt.s32.totalorder %s25, 1
        %s542 = scalar_select %p541, %s25, 1
        %s543 = smul.addr %s542, 2
        %s544 = smul.addr %s543, 4
        %s545 = scalar_lea.vmem %s1, %s544
      $region92: #{ffno2d_block_forward.3} parent=83 // pred_fallthru
        _
    $region84: #{ffno2d_block_forward.3} parent=5 // pred_fallthru
      _
    %p546 = scmp.le.s32.totalorder 1, %s25
    %p547 = scmp.lt.s32.totalorder %s25, 3
    %p548 = pnand %p546, %p547
    %p549 = pneg %p548
    // Predicated region
    $region93: #{ffno2d_block_forward.3} parent=5 // pred_check
      _
    $region94: #{ffno2d_block_forward.3} parent=5 // pred_check_branch
      %551 = sbr.rel (%p548) target = $region96
    $region95: #{ffno2d_block_forward.3} parent=5 // pred_region
      %s552 = ssub.s32 %s25, 1
      %p553 = scmp.lt.s32.totalorder %s30, 1
      %s554 = scalar_select %p553, %s30, 1
      %s555 = smul.addr %s554, 2
      %s556 = smul.addr %s555, 4
      %s557 = scalar_lea.vmem %s0, %s556
      %p558 = pneg %p51
      %p559 = pneg %p48
      %p560 = scmp.lt.s32.totalorder %s30, 1
      %s561 = scalar_select %p560, %s30, 1
      %s562 = smul.addr %s561, 2
      %s563 = smul.addr %s562, 4
      %s564 = scalar_lea.vmem %s1, %s563
      %p565 = pneg %p77
      %p566 = pneg %p74
      %p567 = pneg %p98
      %p568 = pneg %p95
      %p569 = pneg %p119
      %p570 = pneg %p116
      %p571 = pneg %p140
      %p572 = pneg %p137
      %p573 = pneg %p161
      %p574 = pneg %p158
      %p575 = pneg %p182
      %p576 = pneg %p179
      %p577 = pneg %p203
      %p578 = pneg %p200
      %p579 = pneg %p224
      %p580 = pneg %p221
      %p581 = pneg %p245
      %p582 = pneg %p242
      %p583 = pneg %p266
      %p584 = pneg %p263
      %p585 = pneg %p287
      %p586 = pneg %p284
      %p587 = pneg %p308
      %p588 = pneg %p305
      %p589 = pneg %p329
      %p590 = pneg %p326
      %p591 = pneg %p350
      %p592 = pneg %p347
      %p593 = pneg %p371
      %p594 = pneg %p368
      %p595 = pneg %p392
      %p596 = pneg %p389
      %p597 = pneg %p413
      %p598 = pneg %p410
      %p599 = pneg %p434
      %p600 = pneg %p431
      %p601 = pneg %p460
      %p602 = pneg %p457
      %p603 = scmp.lt.s32.totalorder %s30, 1
      %s604 = scalar_select %p603, %s30, 1
      %s605 = smul.addr %s604, 2
      %s606 = smul.addr %s605, 4
      %s607 = scalar_lea.vmem %s19, %s606
      %p608 = scmp.lt.s32.totalorder %s30, 1
      %s609 = scalar_select %p608, %s30, 1
      %s610 = smul.addr %s609, 2
      %s611 = smul.addr %s610, 4
      %s612 = scalar_lea.vmem %s0, %s611
      %p613 = scmp.lt.s32.totalorder %s30, 1
      %s614 = scalar_select %p613, %s30, 1
      %s615 = smul.addr %s614, 2
      %s616 = smul.addr %s615, 4
      %s617 = scalar_lea.vmem %s1, %s616
      %p618 = scmp.lt.s32.totalorder %s30, 1
      %s619 = scalar_select %p618, %s30, 1
      %s620 = smul.addr %s619, 2
      %s621 = smul.addr %s620, 4
      %s622 = scalar_lea.vmem %s19, %s621
      %v623 = vld [vmem:[%s612] sm:$0xff]
      %v624 = vld [vmem:[%s617] sm:$0xff]
      %v625 = vld [vmem:[%s2] sm:$0xff]
      %v626 = vld [vmem:[%s2 + $0x8] sm:$0xff]
      %v627 = vld [vmem:[%s2 + $0x10] sm:$0x1]
      %v628 = vld [vmem:[%s2 + $0x18] sm:$0x1]
      %v630 = vcombine.high %v623, %v623
      %vm632 = vcmask 1043456
      %v633 = vsel %vm632, %v623, 0.0
      %v634 = vrot.slane %v633, 4
      %v635 = vadd.f32 %v633, %v634
      %v636 = vrot.slane %v635, 2
      %v637 = vadd.f32 %v635, %v636
      %v638 = vrot.slane %v637, 1
      %v639 = vadd.f32 %v637, %v638
      %v640 = vsel %vm632, %v630, 0.0
      %v641 = vrot.slane %v640, 4
      %v642 = vadd.f32 %v640, %v641
      %v643 = vrot.slane %v642, 2
      %v644 = vadd.f32 %v642, %v643
      %v645 = vrot.slane %v644, 1
      %v646 = vadd.f32 %v644, %v645
      %v647 = vrcp.pop 4.0
      %v648 = vmul.f32 %v639, %v647
      %v649 = vmul.f32 %v646, %v647
      %v652 = vcombine.low %v648, %v649
      %v654 = vsub.f32 %v623, %v652
      %v655 = vmul.f32 %v654, %v654
      %v657 = vcombine.high %v655, %v655
      %v659 = vsel %vm632, %v655, 0.0
      %v660 = vrot.slane %v659, 4
      %v661 = vadd.f32 %v659, %v660
      %v662 = vrot.slane %v661, 2
      %v663 = vadd.f32 %v661, %v662
      %v664 = vrot.slane %v663, 1
      %v665 = vadd.f32 %v663, %v664
      %v666 = vsel %vm632, %v657, 0.0
      %v667 = vrot.slane %v666, 4
      %v668 = vadd.f32 %v666, %v667
      %v669 = vrot.slane %v668, 2
      %v670 = vadd.f32 %v668, %v669
      %v671 = vrot.slane %v670, 1
      %v672 = vadd.f32 %v670, %v671
      %v673 = vmul.f32 %v665, %v647
      %v674 = vmul.f32 %v672, %v647
      %v675 = vadd.f32 %v673, 1e-06
      %v676 = vadd.f32 %v674, 1e-06
      %v677 = vrsqrt.pop %v675
      %v678 = vrsqrt.pop %v676
      %v681 = vcombine.low %v677, %v678
      %v683 = vmul.f32 %v654, %v681
      %v684 = vld [vmem:[%s3] sm:$0xf]
      %686 = vset.pattern.permute.xlu0 0
      %687 = vperm.xlu0 %686, %v684
      %v688 = vpop.permute.xlu0 %687
      %v690 = vunpack.c.l.s4 839922192
      %v691 = vunpack.c.0.s8 %v690
      %v692 = vlaneseq
      %v693 = vshrl.u32 %v692, 7
      %v694 = vsub.s32 %v691, %v693
      %v695 = vrot.slane %v688, %v694
      %v697 = vmul.f32 %v683, %v695
      %v698 = vld [vmem:[%s4] sm:$0xf]
      %700 = vset.pattern.permute.xlu0 0
      %701 = vperm.xlu0 %700, %v698
      %v702 = vpop.permute.xlu0 %701
      %v704 = vunpack.c.l.s4 839922192
      %v705 = vunpack.c.0.s8 %v704
      %v706 = vlaneseq
      %v707 = vshrl.u32 %v706, 7
      %v708 = vsub.s32 %v705, %v707
      %v709 = vrot.slane %v702, %v708
      %v711 = vadd.f32 %v697, %v709
      %v712 = vld [vmem:[%s5] sm:$0xff]
      %v713 = vld [vmem:[%s6] sm:$0xff]
      %715 = vset.pattern.permute.xlu0 0
      %716 = vperm.xlu0 %715, %v713
      %v717 = vpop.permute.xlu0 %716
      %v720 = vcombine.high %v711, %v711
      %vm721 = vcmask 31744
      %v723 = vsel %vm721, %v712, 0
      %v725 = vsel %vm632, %v711, 0
      %v727 = vsel %vm632, %v720, 0
      %729 = vmatprep.subr.mxu0 %v727
      %730 = vmatpush1.msra.mxu0 %v725
      %731 = vmatprep.subr.mxu0 0.0
      %732 = vmatpush1.msra.mxu0 0.0
      %733 = vmatprep.subr.mxu0 0.0
      %734 = vmatpush1.msra.mxu0 0.0
      %735 = vmatprep.subr.mxu0 0.0
      %736 = vmatpush1.msra.mxu0 0.0
      %737 = vmatprep.subr.mxu0 0.0
      %738 = vmatpush1.msra.mxu0 0.0
      %739 = vmatprep.subr.mxu0 0.0
      %740 = vmatpush1.msra.mxu0 0.0
      %741 = vmatprep.subr.mxu0 0.0
      %742 = vmatpush1.msra.mxu0 0.0
      %743 = vmatprep.subr.mxu0 0.0
      %744 = vmatpush1.msra.mxu0 0.0
      %745 = vmatprep.subr.mxu0 0.0
      %746 = vmatpush1.msra.mxu0 0.0
      %747 = vmatprep.subr.mxu0 0.0
      %748 = vmatpush1.msra.mxu0 0.0
      %749 = vmatprep.subr.mxu0 0.0
      %750 = vmatpush1.msra.mxu0 0.0
      %751 = vmatprep.subr.mxu0 0.0
      %752 = vmatpush1.msra.mxu0 0.0
      %753 = vmatprep.subr.mxu0 0.0
      %754 = vmatpush1.msra.mxu0 0.0
      %755 = vmatprep.subr.mxu0 0.0
      %756 = vmatpush1.msra.mxu0 0.0
      %757 = vmatprep.subr.mxu0 0.0
      %758 = vmatpush1.msra.mxu0 0.0
      %759 = vmatprep.subr.mxu0 0.0
      %760 = vmatpush1.msra.mxu0 0.0
      %761 = vmatprep.subr.mxu0 0.0
      %762 = vmatpush1.msra.mxu0 0.0
      %763 = vmatprep.subr.mxu0 0.0
      %764 = vmatpush1.msra.mxu0 0.0
      %765 = vmatprep.subr.mxu0 0.0
      %766 = vmatpush1.msra.mxu0 0.0
      %767 = vmatprep.subr.mxu0 0.0
      %768 = vmatpush1.msra.mxu0 0.0
      %769 = vmatprep.subr.mxu0 0.0
      %770 = vmatpush1.msra.mxu0 0.0
      %771 = vmatprep.subr.mxu0 0.0
      %772 = vmatpush1.msra.mxu0 0.0
      %773 = vmatprep.subr.mxu0 0.0
      %774 = vmatpush1.msra.mxu0 0.0
      %775 = vmatprep.subr.mxu0 0.0
      %776 = vmatpush1.msra.mxu0 0.0
      %777 = vmatprep.subr.mxu0 0.0
      %778 = vmatpush1.msra.mxu0 0.0
      %779 = vmatprep.subr.mxu0 0.0
      %780 = vmatpush1.msra.mxu0 0.0
      %781 = vmatprep.subr.mxu0 0.0
      %782 = vmatpush1.msra.mxu0 0.0
      %783 = vmatprep.subr.mxu0 0.0
      %784 = vmatpush1.msra.mxu0 0.0
      %785 = vmatprep.subr.mxu0 0.0
      %786 = vmatpush1.msra.mxu0 0.0
      %787 = vmatprep.subr.mxu0 0.0
      %788 = vmatpush1.msra.mxu0 0.0
      %789 = vmatprep.subr.mxu0 0.0
      %790 = vmatpush1.msra.mxu0 0.0
      %791 = vmatprep.subr.mxu0 0.0
      %792 = vmatpush1.msra.mxu0 0.0
      %793 = vmatprep.mubr.f32.mxu0 0.0
      %794 = vmatmul.mubr.f32.gmra.mrb[0].mxu0 %v723
      %v795 = vpop.f32.mrb[0].mxu0
      %v796 = vadd.f32 %v717, %v795
      %v797 = vpop.f32.mrb[0].mxu0
      %v798 = vadd.f32 %v717, %v797
      %799 = vdwg.mxu0
      %v800 = vld [vmem:[%s7] sm:$0xff]
      %802 = vset.pattern.permute.xlu0 4
      %803 = vperm.xlu0 %802, %v800
      %v804 = vpop.permute.xlu0 %803
      %v806 = vmul.f32 %v796, %v804
      %v807 = vmul.f32 %v798, %v804
      %808 = vrot.lane.b32.xlu0 %v796, 17
      %v809 = vpop.permute.xlu0 %808
      %810 = vrot.lane.b32.xlu0 %v798, 17
      %v811 = vpop.permute.xlu0 %810
      %v812 = vlaneseq
      %v813 = vand.u32 %v812, 127
      %vm814 = vcmp.lt.s32.totalorder %v813, 17
      %v815 = vsel %vm814, %v809, %v811
      %v816 = vsel %vm814, %v811, %v809
      %v817 = vlaneseq
      %v818 = vshrl.u32 %v817, 7
      %v819 = vsub.s32 0, %v818
      %v820 = vrot.slane %v625, %v819
      %v821 = vlaneseq
      %v822 = vshrl.u32 %v821, 7
      %v823 = vsub.s32 0, %v822
      %v824 = vrot.slane %v626, %v823
      %v825 = vmul.f32 %v816, %v820
      %v826 = vmul.f32 %v815, %v824
      %827 = vset.pattern.permute.xlu0 0
      %828 = vperm.xlu0 %827, %v800
      %v829 = vpop.permute.xlu0 %828
      %v831 = vmul.f32 %v825, %v829
      %v832 = vmul.f32 %v826, %v829
      %v833 = vadd.f32 %v806, %v831
      %v834 = vadd.f32 %v807, %v832
      %835 = vrot.lane.b32.xlu0 %v796, 16
      %v836 = vpop.permute.xlu0 %835
      %837 = vrot.lane.b32.xlu0 %v798, 16
      %v838 = vpop.permute.xlu0 %837
      %vm839 = vcmp.lt.s32.totalorder %v813, 16
      %v840 = vsel %vm839, %v836, %v838
      %v841 = vsel %vm839, %v838, %v836
      %v842 = vlaneseq
      %v843 = vshrl.u32 %v842, 7
      %v844 = vsub.s32 1, %v843
      %v845 = vrot.slane %v625, %v844
      %v846 = vlaneseq
      %v847 = vshrl.u32 %v846, 7
      %v848 = vsub.s32 1, %v847
      %v849 = vrot.slane %v626, %v848
      %v850 = vmul.f32 %v841, %v845
      %v851 = vmul.f32 %v840, %v849
      %852 = vset.pattern.permute.xlu0 1
      %853 = vperm.xlu0 %852, %v800
      %v854 = vpop.permute.xlu0 %853
      %v856 = vmul.f32 %v850, %v854
      %v857 = vmul.f32 %v851, %v854
      %v858 = vadd.f32 %v833, %v856
      %v859 = vadd.f32 %v834, %v857
      %860 = vrot.lane.b32.xlu0 %v796, 15
      %v861 = vpop.permute.xlu0 %860
      %862 = vrot.lane.b32.xlu0 %v798, 15
      %v863 = vpop.permute.xlu0 %862
      %vm864 = vcmp.lt.s32.totalorder %v813, 15
      %v865 = vsel %vm864, %v861, %v863
      %v866 = vsel %vm864, %v863, %v861
      %v867 = vlaneseq
      %v868 = vshrl.u32 %v867, 7
      %v869 = vsub.s32 2, %v868
      %v870 = vrot.slane %v625, %v869
      %v871 = vlaneseq
      %v872 = vshrl.u32 %v871, 7
      %v873 = vsub.s32 2, %v872
      %v874 = vrot.slane %v626, %v873
      %v875 = vmul.f32 %v866, %v870
      %v876 = vmul.f32 %v865, %v874
      %877 = vset.pattern.permute.xlu0 2
      %878 = vperm.xlu0 %877, %v800
      %v879 = vpop.permute.xlu0 %878
      %v881 = vmul.f32 %v875, %v879
      %v882 = vmul.f32 %v876, %v879
      %v883 = vadd.f32 %v858, %v881
      %v884 = vadd.f32 %v859, %v882
      %885 = vrot.lane.b32.xlu0 %v796, 1
      %v886 = vpop.permute.xlu0 %885
      %887 = vrot.lane.b32.xlu0 %v798, 1
      %v888 = vpop.permute.xlu0 %887
      %vm889 = vcmp.lt.s32.totalorder %v813, 1
      %v890 = vsel %vm889, %v886, %v888
      %v891 = vsel %vm889, %v888, %v886
      %v892 = vlaneseq
      %v893 = vshrl.u32 %v892, 7
      %v894 = vsub.s32 3, %v893
      %v895 = vrot.slane %v625, %v894
      %v896 = vlaneseq
      %v897 = vshrl.u32 %v896, 7
      %v898 = vsub.s32 3, %v897
      %v899 = vrot.slane %v626, %v898
      %v900 = vmul.f32 %v891, %v895
      %v901 = vmul.f32 %v890, %v899
      %902 = vset.pattern.permute.xlu0 3
      %903 = vperm.xlu0 %902, %v800
      %v904 = vpop.permute.xlu0 %903
      %v906 = vmul.f32 %v900, %v904
      %v907 = vmul.f32 %v901, %v904
      %v908 = vadd.f32 %v883, %v906
      %v909 = vadd.f32 %v884, %v907
      %910 = vrot.lane.b32.xlu0 %v796, 127
      %v911 = vpop.permute.xlu0 %910
      %912 = vrot.lane.b32.xlu0 %v798, 127
      %v913 = vpop.permute.xlu0 %912
      %vm914 = vcmp.lt.s32.totalorder %v813, 127
      %v915 = vsel %vm914, %v911, %v913
      %v916 = vsel %vm914, %v913, %v911
      %v917 = vlaneseq
      %v918 = vshrl.u32 %v917, 7
      %v919 = vsub.s32 5, %v918
      %v920 = vrot.slane %v625, %v919
      %v921 = vlaneseq
      %v922 = vshrl.u32 %v921, 7
      %v923 = vsub.s32 5, %v922
      %v924 = vrot.slane %v626, %v923
      %v925 = vmul.f32 %v915, %v920
      %v926 = vmul.f32 %v916, %v924
      %927 = vset.pattern.permute.xlu0 5
      %928 = vperm.xlu0 %927, %v800
      %v929 = vpop.permute.xlu0 %928
      %v931 = vmul.f32 %v925, %v929
      %v932 = vmul.f32 %v926, %v929
      %v933 = vadd.f32 %v908, %v931
      %v934 = vadd.f32 %v909, %v932
      %935 = vrot.lane.b32.xlu0 %v796, 113
      %v936 = vpop.permute.xlu0 %935
      %937 = vrot.lane.b32.xlu0 %v798, 113
      %v938 = vpop.permute.xlu0 %937
      %vm939 = vcmp.lt.s32.totalorder %v813, 113
      %v940 = vsel %vm939, %v936, %v938
      %v941 = vsel %vm939, %v938, %v936
      %v942 = vlaneseq
      %v943 = vshrl.u32 %v942, 7
      %v944 = vsub.s32 6, %v943
      %v945 = vrot.slane %v625, %v944
      %v946 = vlaneseq
      %v947 = vshrl.u32 %v946, 7
      %v948 = vsub.s32 6, %v947
      %v949 = vrot.slane %v626, %v948
      %v950 = vmul.f32 %v940, %v945
      %v951 = vmul.f32 %v941, %v949
      %952 = vset.pattern.permute.xlu0 6
      %953 = vperm.xlu0 %952, %v800
      %v954 = vpop.permute.xlu0 %953
      %v956 = vmul.f32 %v950, %v954
      %v957 = vmul.f32 %v951, %v954
      %v958 = vadd.f32 %v933, %v956
      %v959 = vadd.f32 %v934, %v957
      %960 = vrot.lane.b32.xlu0 %v796, 112
      %v961 = vpop.permute.xlu0 %960
      %962 = vrot.lane.b32.xlu0 %v798, 112
      %v963 = vpop.permute.xlu0 %962
      %vm964 = vcmp.lt.s32.totalorder %v813, 112
      %v965 = vsel %vm964, %v961, %v963
      %v966 = vsel %vm964, %v963, %v961
      %v967 = vlaneseq
      %v968 = vshrl.u32 %v967, 7
      %v969 = vsub.s32 7, %v968
      %v970 = vrot.slane %v625, %v969
      %v971 = vlaneseq
      %v972 = vshrl.u32 %v971, 7
      %v973 = vsub.s32 7, %v972
      %v974 = vrot.slane %v626, %v973
      %v975 = vmul.f32 %v965, %v970
      %v976 = vmul.f32 %v966, %v974
      %977 = vset.pattern.permute.xlu0 7
      %978 = vperm.xlu0 %977, %v800
      %v979 = vpop.permute.xlu0 %978
      %v981 = vmul.f32 %v975, %v979
      %v982 = vmul.f32 %v976, %v979
      %v983 = vadd.f32 %v958, %v981
      %v984 = vadd.f32 %v959, %v982
      %985 = vrot.lane.b32.xlu0 %v796, 111
      %v986 = vpop.permute.xlu0 %985
      %987 = vrot.lane.b32.xlu0 %v798, 111
      %v988 = vpop.permute.xlu0 %987
      %vm989 = vcmp.lt.s32.totalorder %v813, 111
      %v990 = vsel %vm989, %v986, %v988
      %v991 = vsel %vm989, %v988, %v986
      %v992 = vlaneseq
      %v993 = vshrl.u32 %v992, 7
      %v994 = vsub.s32 0, %v993
      %v995 = vrot.slane %v627, %v994
      %v996 = vlaneseq
      %v997 = vshrl.u32 %v996, 7
      %v998 = vsub.s32 0, %v997
      %v999 = vrot.slane %v628, %v998
      %v1000 = vmul.f32 %v990, %v995
      %v1001 = vmul.f32 %v991, %v999
      %1002 = vset.pattern.permute.xlu0 8
      %1003 = vperm.xlu0 %1002, %v800
      %v1004 = vpop.permute.xlu0 %1003
      %v1006 = vmul.f32 %v1000, %v1004
      %v1007 = vmul.f32 %v1001, %v1004
      %v1008 = vadd.f32 %v983, %v1006
      %v1009 = vadd.f32 %v984, %v1007
      %v1010 = vld [vmem:[%s8] sm:$0xff]
      %1012 = vset.pattern.permute.xlu0 0
      %1013 = vperm.xlu0 %1012, %v1010
      %v1014 = vpop.permute.xlu0 %1013
      %v1016 = vadd.f32 %v1008, %v1014
      %v1017 = vadd.f32 %v1009, %v1014
      %v1018 = vrot.slane %v1016, 4
      %v1019 = vadd.f32 %v1016, %v1018
      %v1020 = vrot.slane %v1019, 2
      %v1021 = vadd.f32 %v1019, %v1020
      %v1022 = vrot.slane %v1021, 1
      %v1023 = vadd.f32 %v1021, %v1022
      %v1024 = vrot.slane %v1017, 4
      %v1025 = vadd.f32 %v1017, %v1024
      %v1026 = vrot.slane %v1025, 2
      %v1027 = vadd.f32 %v1025, %v1026
      %v1028 = vrot.slane %v1027, 1
      %v1029 = vadd.f32 %v1027, %v1028
      %v1030 = vrcp.pop 8.0
      %v1031 = vmul.f32 %v1023, %v1030
      %v1032 = vmul.f32 %v1029, %v1030
      %v1033 = vsub.f32 %v1016, %v1031
      %v1034 = vsub.f32 %v1017, %v1032
      %v1035 = vmul.f32 %v1033, %v1033
      %v1036 = vmul.f32 %v1034, %v1034
      %v1037 = vrot.slane %v1035, 4
      %v1038 = vadd.f32 %v1035, %v1037
      %v1039 = vrot.slane %v1038, 2
      %v1040 = vadd.f32 %v1038, %v1039
      %v1041 = vrot.slane %v1040, 1
      %v1042 = vadd.f32 %v1040, %v1041
      %v1043 = vrot.slane %v1036, 4
      %v1044 = vadd.f32 %v1036, %v1043
      %v1045 = vrot.slane %v1044, 2
      %v1046 = vadd.f32 %v1044, %v1045
      %v1047 = vrot.slane %v1046, 1
      %v1048 = vadd.f32 %v1046, %v1047
      %v1049 = vmul.f32 %v1042, %v1030
      %v1050 = vmul.f32 %v1048, %v1030
      %v1051 = vadd.f32 %v1049, 1e-06
      %v1052 = vadd.f32 %v1050, 1e-06
      %v1053 = vrsqrt.pop %v1051
      %v1054 = vrsqrt.pop %v1052
      %v1055 = vmul.f32 %v1033, %v1053
      %v1056 = vmul.f32 %v1034, %v1054
      %v1057 = vld [vmem:[%s9] sm:$0xff]
      %1059 = vset.pattern.permute.xlu0 0
      %1060 = vperm.xlu0 %1059, %v1057
      %v1061 = vpop.permute.xlu0 %1060
      %v1063 = vmul.f32 %v1055, %v1061
      %v1064 = vmul.f32 %v1056, %v1061
      %v1065 = vld [vmem:[%s10] sm:$0xff]
      %1067 = vset.pattern.permute.xlu0 0
      %1068 = vperm.xlu0 %1067, %v1065
      %v1069 = vpop.permute.xlu0 %1068
      %v1071 = vadd.f32 %v1063, %v1069
      %v1072 = vadd.f32 %v1064, %v1069
      %v1073 = vmul.f32 %v1071, 0.5
      %v1074 = vmul.f32 %v1072, 0.5
      %v1075 = vmul.f32 %v1071, 0.044715
      %v1076 = vmul.f32 %v1072, 0.044715
      %v1077 = vmul.f32 %v1075, %v1071
      %v1078 = vmul.f32 %v1076, %v1072
      %v1079 = vmul.f32 %v1077, %v1071
      %v1080 = vmul.f32 %v1078, %v1072
      %v1081 = vadd.f32 %v1071, %v1079
      %v1082 = vadd.f32 %v1072, %v1080
      %v1083 = vmul.f32 %v1081, 0.7978846
      %v1084 = vmul.f32 %v1082, 0.7978846
      %v1085 = vtanh.pop %v1083
      %v1086 = vtanh.pop %v1084
      %v1087 = vadd.f32 %v1085, 1.0
      %v1088 = vadd.f32 %v1086, 1.0
      %v1089 = vmul.f32 %v1073, %v1087
      %v1090 = vmul.f32 %v1074, %v1088
      %v1091 = vld [vmem:[%s11] sm:$0xf]
      %v1092 = vld [vmem:[%s12] sm:$0xf]
      %1094 = vset.pattern.permute.xlu0 0
      %1095 = vperm.xlu0 %1094, %v1092
      %v1096 = vpop.permute.xlu0 %1095
      %vm1098 = vcmask 64512
      %v1100 = vsel %vm1098, %v1091, 0
      %1102 = vmatprep.subr.mxu0 %v1090
      %1103 = vmatpush1.msra.mxu0 %v1089
      %1104 = vmatprep.subr.mxu0 0.0
      %1105 = vmatpush1.msra.mxu0 0.0
      %1106 = vmatprep.subr.mxu0 0.0
      %1107 = vmatpush1.msra.mxu0 0.0
      %1108 = vmatprep.subr.mxu0 0.0
      %1109 = vmatpush1.msra.mxu0 0.0
      %1110 = vmatprep.subr.mxu0 0.0
      %1111 = vmatpush1.msra.mxu0 0.0
      %1112 = vmatprep.subr.mxu0 0.0
      %1113 = vmatpush1.msra.mxu0 0.0
      %1114 = vmatprep.subr.mxu0 0.0
      %1115 = vmatpush1.msra.mxu0 0.0
      %1116 = vmatprep.subr.mxu0 0.0
      %1117 = vmatpush1.msra.mxu0 0.0
      %1118 = vmatprep.subr.mxu0 0.0
      %1119 = vmatpush1.msra.mxu0 0.0
      %1120 = vmatprep.subr.mxu0 0.0
      %1121 = vmatpush1.msra.mxu0 0.0
      %1122 = vmatprep.subr.mxu0 0.0
      %1123 = vmatpush1.msra.mxu0 0.0
      %1124 = vmatprep.subr.mxu0 0.0
      %1125 = vmatpush1.msra.mxu0 0.0
      %1126 = vmatprep.subr.mxu0 0.0
      %1127 = vmatpush1.msra.mxu0 0.0
      %1128 = vmatprep.subr.mxu0 0.0
      %1129 = vmatpush1.msra.mxu0 0.0
      %1130 = vmatprep.subr.mxu0 0.0
      %1131 = vmatpush1.msra.mxu0 0.0
      %1132 = vmatprep.subr.mxu0 0.0
      %1133 = vmatpush1.msra.mxu0 0.0
      %1134 = vmatprep.subr.mxu0 0.0
      %1135 = vmatpush1.msra.mxu0 0.0
      %1136 = vmatprep.subr.mxu0 0.0
      %1137 = vmatpush1.msra.mxu0 0.0
      %1138 = vmatprep.subr.mxu0 0.0
      %1139 = vmatpush1.msra.mxu0 0.0
      %1140 = vmatprep.subr.mxu0 0.0
      %1141 = vmatpush1.msra.mxu0 0.0
      %1142 = vmatprep.subr.mxu0 0.0
      %1143 = vmatpush1.msra.mxu0 0.0
      %1144 = vmatprep.subr.mxu0 0.0
      %1145 = vmatpush1.msra.mxu0 0.0
      %1146 = vmatprep.subr.mxu0 0.0
      %1147 = vmatpush1.msra.mxu0 0.0
      %1148 = vmatprep.subr.mxu0 0.0
      %1149 = vmatpush1.msra.mxu0 0.0
      %1150 = vmatprep.subr.mxu0 0.0
      %1151 = vmatpush1.msra.mxu0 0.0
      %1152 = vmatprep.subr.mxu0 0.0
      %1153 = vmatpush1.msra.mxu0 0.0
      %1154 = vmatprep.subr.mxu0 0.0
      %1155 = vmatpush1.msra.mxu0 0.0
      %1156 = vmatprep.subr.mxu0 0.0
      %1157 = vmatpush1.msra.mxu0 0.0
      %1158 = vmatprep.subr.mxu0 0.0
      %1159 = vmatpush1.msra.mxu0 0.0
      %1160 = vmatprep.subr.mxu0 0.0
      %1161 = vmatpush1.msra.mxu0 0.0
      %1162 = vmatprep.subr.mxu0 0.0
      %1163 = vmatpush1.msra.mxu0 0.0
      %1164 = vmatprep.subr.mxu0 0.0
      %1165 = vmatpush1.msra.mxu0 0.0
      %1166 = vmatprep.mubr.f32.mxu0 0.0
      %1167 = vmatmul.mubr.f32.gmra.mrb[0].mxu0 %v1100
      %v1168 = vpop.f32.mrb[0].mxu0
      %v1169 = vadd.f32 %v1096, %v1168
      %v1170 = vpop.f32.mrb[0].mxu0
      %v1171 = vadd.f32 %v1096, %v1170
      %1172 = vdwg.mxu0
      %v1173 = vld [vmem:[%s15] sm:$0xf]
      %v1174 = vld [vmem:[%s16] sm:$0xf]
      %1176 = vset.pattern.permute.xlu0 0
      %1177 = vperm.xlu0 %1176, %v1174
      %v1178 = vpop.permute.xlu0 %1177
      %v1181 = vcombine.high %v624, %v624
      %v1183 = vsel %vm721, %v1173, 0
      %v1185 = vsel %vm632, %v624, 0
      %v1187 = vsel %vm632, %v1181, 0
      %1189 = vmatprep.subr.mxu0 %v1187
      %1190 = vmatpush1.msra.mxu0 %v1185
      %1191 = vmatprep.subr.mxu0 0.0
      %1192 = vmatpush1.msra.mxu0 0.0
      %1193 = vmatprep.subr.mxu0 0.0
      %1194 = vmatpush1.msra.mxu0 0.0
      %1195 = vmatprep.subr.mxu0 0.0
      %1196 = vmatpush1.msra.mxu0 0.0
      %1197 = vmatprep.subr.mxu0 0.0
      %1198 = vmatpush1.msra.mxu0 0.0
      %1199 = vmatprep.subr.mxu0 0.0
      %1200 = vmatpush1.msra.mxu0 0.0
      %1201 = vmatprep.subr.mxu0 0.0
      %1202 = vmatpush1.msra.mxu0 0.0
      %1203 = vmatprep.subr.mxu0 0.0
      %1204 = vmatpush1.msra.mxu0 0.0
      %1205 = vmatprep.subr.mxu0 0.0
      %1206 = vmatpush1.msra.mxu0 0.0
      %1207 = vmatprep.subr.mxu0 0.0
      %1208 = vmatpush1.msra.mxu0 0.0
      %1209 = vmatprep.subr.mxu0 0.0
      %1210 = vmatpush1.msra.mxu0 0.0
      %1211 = vmatprep.subr.mxu0 0.0
      %1212 = vmatpush1.msra.mxu0 0.0
      %1213 = vmatprep.subr.mxu0 0.0
      %1214 = vmatpush1.msra.mxu0 0.0
      %1215 = vmatprep.subr.mxu0 0.0
      %1216 = vmatpush1.msra.mxu0 0.0
      %1217 = vmatprep.subr.mxu0 0.0
      %1218 = vmatpush1.msra.mxu0 0.0
      %1219 = vmatprep.subr.mxu0 0.0
      %1220 = vmatpush1.msra.mxu0 0.0
      %1221 = vmatprep.subr.mxu0 0.0
      %1222 = vmatpush1.msra.mxu0 0.0
      %1223 = vmatprep.subr.mxu0 0.0
      %1224 = vmatpush1.msra.mxu0 0.0
      %1225 = vmatprep.subr.mxu0 0.0
      %1226 = vmatpush1.msra.mxu0 0.0
      %1227 = vmatprep.subr.mxu0 0.0
      %1228 = vmatpush1.msra.mxu0 0.0
      %1229 = vmatprep.subr.mxu0 0.0
      %1230 = vmatpush1.msra.mxu0 0.0
      %1231 = vmatprep.subr.mxu0 0.0
      %1232 = vmatpush1.msra.mxu0 0.0
      %1233 = vmatprep.subr.mxu0 0.0
      %1234 = vmatpush1.msra.mxu0 0.0
      %1235 = vmatprep.subr.mxu0 0.0
      %1236 = vmatpush1.msra.mxu0 0.0
      %1237 = vmatprep.subr.mxu0 0.0
      %1238 = vmatpush1.msra.mxu0 0.0
      %1239 = vmatprep.subr.mxu0 0.0
      %1240 = vmatpush1.msra.mxu0 0.0
      %1241 = vmatprep.subr.mxu0 0.0
      %1242 = vmatpush1.msra.mxu0 0.0
      %1243 = vmatprep.subr.mxu0 0.0
      %1244 = vmatpush1.msra.mxu0 0.0
      %1245 = vmatprep.subr.mxu0 0.0
      %1246 = vmatpush1.msra.mxu0 0.0
      %1247 = vmatprep.subr.mxu0 0.0
      %1248 = vmatpush1.msra.mxu0 0.0
      %1249 = vmatprep.subr.mxu0 0.0
      %1250 = vmatpush1.msra.mxu0 0.0
      %1251 = vmatprep.subr.mxu0 0.0
      %1252 = vmatpush1.msra.mxu0 0.0
      %1253 = vmatprep.mubr.f32.mxu0 0.0
      %1254 = vmatmul.mubr.f32.gmra.mrb[0].mxu0 %v1183
      %v1255 = vpop.f32.mrb[0].mxu0
      %v1256 = vadd.f32 %v1178, %v1255
      %v1257 = vpop.f32.mrb[0].mxu0
      %v1258 = vadd.f32 %v1178, %v1257
      %1259 = vdwg.mxu0
      %v1260 = vld [vmem:[%s17] sm:$0xf]
      %1262 = vset.pattern.permute.xlu0 4
      %1263 = vperm.xlu0 %1262, %v1260
      %v1264 = vpop.permute.xlu0 %1263
      %v1266 = vmul.f32 %v1256, %v1264
      %v1267 = vmul.f32 %v1258, %v1264
      %1268 = vrot.lane.b32.xlu0 %v1256, 17
      %v1269 = vpop.permute.xlu0 %1268
      %1270 = vrot.lane.b32.xlu0 %v1258, 17
      %v1271 = vpop.permute.xlu0 %1270
      %v1272 = vsel %vm814, %v1269, %v1271
      %v1273 = vsel %vm814, %v1271, %v1269
      %v1274 = vmul.f32 %v1273, %v820
      %v1275 = vmul.f32 %v1272, %v824
      %1276 = vset.pattern.permute.xlu0 0
      %1277 = vperm.xlu0 %1276, %v1260
      %v1278 = vpop.permute.xlu0 %1277
      %v1280 = vmul.f32 %v1274, %v1278
      %v1281 = vmul.f32 %v1275, %v1278
      %v1282 = vadd.f32 %v1266, %v1280
      %v1283 = vadd.f32 %v1267, %v1281
      %1284 = vrot.lane.b32.xlu0 %v1256, 16
      %v1285 = vpop.permute.xlu0 %1284
      %1286 = vrot.lane.b32.xlu0 %v1258, 16
      %v1287 = vpop.permute.xlu0 %1286
      %v1288 = vsel %vm839, %v1285, %v1287
      %v1289 = vsel %vm839, %v1287, %v1285
      %v1290 = vmul.f32 %v1289, %v845
      %v1291 = vmul.f32 %v1288, %v849
      %1292 = vset.pattern.permute.xlu0 1
      %1293 = vperm.xlu0 %1292, %v1260
      %v1294 = vpop.permute.xlu0 %1293
      %v1296 = vmul.f32 %v1290, %v1294
      %v1297 = vmul.f32 %v1291, %v1294
      %v1298 = vadd.f32 %v1282, %v1296
      %v1299 = vadd.f32 %v1283, %v1297
      %1300 = vrot.lane.b32.xlu0 %v1256, 15
      %v1301 = vpop.permute.xlu0 %1300
      %1302 = vrot.lane.b32.xlu0 %v1258, 15
      %v1303 = vpop.permute.xlu0 %1302
      %v1304 = vsel %vm864, %v1301, %v1303
      %v1305 = vsel %vm864, %v1303, %v1301
      %v1306 = vmul.f32 %v1305, %v870
      %v1307 = vmul.f32 %v1304, %v874
      %1308 = vset.pattern.permute.xlu0 2
      %1309 = vperm.xlu0 %1308, %v1260
      %v1310 = vpop.permute.xlu0 %1309
      %v1312 = vmul.f32 %v1306, %v1310
      %v1313 = vmul.f32 %v1307, %v1310
      %v1314 = vadd.f32 %v1298, %v1312
      %v1315 = vadd.f32 %v1299, %v1313
      %1316 = vrot.lane.b32.xlu0 %v1256, 1
      %v1317 = vpop.permute.xlu0 %1316
      %1318 = vrot.lane.b32.xlu0 %v1258, 1
      %v1319 = vpop.permute.xlu0 %1318
      %v1320 = vsel %vm889, %v1317, %v1319
      %v1321 = vsel %vm889, %v1319, %v1317
      %v1322 = vmul.f32 %v1321, %v895
      %v1323 = vmul.f32 %v1320, %v899
      %1324 = vset.pattern.permute.xlu0 3
      %1325 = vperm.xlu0 %1324, %v1260
      %v1326 = vpop.permute.xlu0 %1325
      %v1328 = vmul.f32 %v1322, %v1326
      %v1329 = vmul.f32 %v1323, %v1326
      %v1330 = vadd.f32 %v1314, %v1328
      %v1331 = vadd.f32 %v1315, %v1329
      %1332 = vrot.lane.b32.xlu0 %v1256, 127
      %v1333 = vpop.permute.xlu0 %1332
      %1334 = vrot.lane.b32.xlu0 %v1258, 127
      %v1335 = vpop.permute.xlu0 %1334
      %v1336 = vsel %vm914, %v1333, %v1335
      %v1337 = vsel %vm914, %v1335, %v1333
      %v1338 = vmul.f32 %v1336, %v920
      %v1339 = vmul.f32 %v1337, %v924
      %1340 = vset.pattern.permute.xlu0 5
      %1341 = vperm.xlu0 %1340, %v1260
      %v1342 = vpop.permute.xlu0 %1341
      %v1344 = vmul.f32 %v1338, %v1342
      %v1345 = vmul.f32 %v1339, %v1342
      %v1346 = vadd.f32 %v1330, %v1344
      %v1347 = vadd.f32 %v1331, %v1345
      %1348 = vrot.lane.b32.xlu0 %v1256, 113
      %v1349 = vpop.permute.xlu0 %1348
      %1350 = vrot.lane.b32.xlu0 %v1258, 113
      %v1351 = vpop.permute.xlu0 %1350
      %v1352 = vsel %vm939, %v1349, %v1351
      %v1353 = vsel %vm939, %v1351, %v1349
      %v1354 = vmul.f32 %v1352, %v945
      %v1355 = vmul.f32 %v1353, %v949
      %1356 = vset.pattern.permute.xlu0 6
      %1357 = vperm.xlu0 %1356, %v1260
      %v1358 = vpop.permute.xlu0 %1357
      %v1360 = vmul.f32 %v1354, %v1358
      %v1361 = vmul.f32 %v1355, %v1358
      %v1362 = vadd.f32 %v1346, %v1360
      %v1363 = vadd.f32 %v1347, %v1361
      %1364 = vrot.lane.b32.xlu0 %v1256, 112
      %v1365 = vpop.permute.xlu0 %1364
      %1366 = vrot.lane.b32.xlu0 %v1258, 112
      %v1367 = vpop.permute.xlu0 %1366
      %v1368 = vsel %vm964, %v1365, %v1367
      %v1369 = vsel %vm964, %v1367, %v1365
      %v1370 = vmul.f32 %v1368, %v970
      %v1371 = vmul.f32 %v1369, %v974
      %1372 = vset.pattern.permute.xlu0 7
      %1373 = vperm.xlu0 %1372, %v1260
      %v1374 = vpop.permute.xlu0 %1373
      %v1376 = vmul.f32 %v1370, %v1374
      %v1377 = vmul.f32 %v1371, %v1374
      %v1378 = vadd.f32 %v1362, %v1376
      %v1379 = vadd.f32 %v1363, %v1377
      %1380 = vrot.lane.b32.xlu0 %v1256, 111
      %v1381 = vpop.permute.xlu0 %1380
      %1382 = vrot.lane.b32.xlu0 %v1258, 111
      %v1383 = vpop.permute.xlu0 %1382
      %v1384 = vsel %vm989, %v1381, %v1383
      %v1385 = vsel %vm989, %v1383, %v1381
      %v1386 = vmul.f32 %v1384, %v995
      %v1387 = vmul.f32 %v1385, %v999
      %1388 = vset.pattern.permute.xlu0 8
      %1389 = vperm.xlu0 %1388, %v1260
      %v1390 = vpop.permute.xlu0 %1389
      %v1392 = vmul.f32 %v1386, %v1390
      %v1393 = vmul.f32 %v1387, %v1390
      %v1394 = vadd.f32 %v1378, %v1392
      %v1395 = vadd.f32 %v1379, %v1393
      %v1396 = vld [vmem:[%s18] sm:$0xf]
      %1398 = vset.pattern.permute.xlu0 0
      %1399 = vperm.xlu0 %1398, %v1396
      %v1400 = vpop.permute.xlu0 %1399
      %v1402 = vadd.f32 %v1394, %v1400
      %v1403 = vadd.f32 %v1395, %v1400
      %v1404 = vmul.f32 %v1402, 0.5
      %v1405 = vmul.f32 %v1403, 0.5
      %v1406 = vmul.f32 %v1402, 0.044715
      %v1407 = vmul.f32 %v1403, 0.044715
      %v1408 = vmul.f32 %v1406, %v1402
      %v1409 = vmul.f32 %v1407, %v1403
      %v1410 = vmul.f32 %v1408, %v1402
      %v1411 = vmul.f32 %v1409, %v1403
      %v1412 = vadd.f32 %v1402, %v1410
      %v1413 = vadd.f32 %v1403, %v1411
      %v1414 = vmul.f32 %v1412, 0.7978846
      %v1415 = vmul.f32 %v1413, 0.7978846
      %v1416 = vtanh.pop %v1414
      %v1417 = vtanh.pop %v1415
      %v1418 = vadd.f32 %v1416, 1.0
      %v1419 = vadd.f32 %v1417, 1.0
      %v1420 = vmul.f32 %v1404, %v1418
      %v1421 = vmul.f32 %v1405, %v1419
      %v1422 = vsel %vm632, %v1169, 0.0
      %v1423 = vrot.slane %v1422, 4
      %v1424 = vadd.f32 %v1422, %v1423
      %v1425 = vrot.slane %v1424, 2
      %v1426 = vadd.f32 %v1424, %v1425
      %v1427 = vrot.slane %v1426, 1
      %v1428 = vadd.f32 %v1426, %v1427
      %v1429 = vsel %vm632, %v1171, 0.0
      %v1430 = vrot.slane %v1429, 4
      %v1431 = vadd.f32 %v1429, %v1430
      %v1432 = vrot.slane %v1431, 2
      %v1433 = vadd.f32 %v1431, %v1432
      %v1434 = vrot.slane %v1433, 1
      %v1435 = vadd.f32 %v1433, %v1434
      %v1436 = vmul.f32 %v1428, %v647
      %v1437 = vmul.f32 %v1435, %v647
      %v1438 = vsub.f32 %v1169, %v1436
      %v1439 = vsub.f32 %v1171, %v1437
      %v1440 = vmul.f32 %v1438, %v1438
      %v1441 = vmul.f32 %v1439, %v1439
      %v1442 = vsel %vm632, %v1440, 0.0
      %v1443 = vrot.slane %v1442, 4
      %v1444 = vadd.f32 %v1442, %v1443
      %v1445 = vrot.slane %v1444, 2
      %v1446 = vadd.f32 %v1444, %v1445
      %v1447 = vrot.slane %v1446, 1
      %v1448 = vadd.f32 %v1446, %v1447
      %v1449 = vsel %vm632, %v1441, 0.0
      %v1450 = vrot.slane %v1449, 4
      %v1451 = vadd.f32 %v1449, %v1450
      %v1452 = vrot.slane %v1451, 2
      %v1453 = vadd.f32 %v1451, %v1452
      %v1454 = vrot.slane %v1453, 1
      %v1455 = vadd.f32 %v1453, %v1454
      %v1456 = vmul.f32 %v1448, %v647
      %v1457 = vmul.f32 %v1455, %v647
      %v1458 = vadd.f32 %v1456, 1e-06
      %v1459 = vadd.f32 %v1457, 1e-06
      %v1460 = vrsqrt.pop %v1458
      %v1461 = vrsqrt.pop %v1459
      %v1462 = vmul.f32 %v1438, %v1460
      %v1463 = vmul.f32 %v1439, %v1461
      %v1464 = vld [vmem:[%s13] sm:$0xf]
      %1466 = vset.pattern.permute.xlu0 0
      %1467 = vperm.xlu0 %1466, %v1464
      %v1468 = vpop.permute.xlu0 %1467
      %v1470 = vmul.f32 %v1462, %v1468
      %v1471 = vmul.f32 %v1463, %v1468
      %v1472 = vld [vmem:[%s14] sm:$0xf]
      %1474 = vset.pattern.permute.xlu0 0
      %1475 = vperm.xlu0 %1474, %v1472
      %v1476 = vpop.permute.xlu0 %1475
      %v1478 = vadd.f32 %v1470, %v1476
      %v1479 = vadd.f32 %v1471, %v1476
      %v1481 = vadd.f32 %v1478, %v624
      %v1482 = vadd.f32 %v1479, %v1181
      %v1483 = vadd.f32 %v1481, %v1420
      %v1484 = vadd.f32 %v1482, %v1421
      %v1487 = vcombine.low %v1483, %v1484
      %1489 = vst [vmem:[%s622] sm:$0xff] %v1487
      %p1490 = scmp.lt.s32.totalorder %s30, 1
      %s1491 = scalar_select %p1490, %s30, 1
      %s1492 = smul.addr %s1491, 2
      %s1493 = smul.addr %s1492, 4
      %s1494 = scalar_lea.vmem %s19, %s1493
      // Predicated region
      $region97: #{ffno2d_block_forward.3} parent=95 // pred_check
        %p1495 = pneg %p457
      $region98: #{ffno2d_block_forward.3} parent=95 // pred_check_branch
        %1497 = sbr.rel (%p1495) target = $region100
      $region99: #{ffno2d_block_forward.3} parent=95 // pred_region
        _
      $region100: #{ffno2d_block_forward.3} parent=95 // pred_fallthru
        _
    $region96: #{ffno2d_block_forward.3} parent=5 // pred_fallthru
      _
    %p1498 = scmp.le.s32.totalorder 2, %s25
    // Predicated region
    $region101: #{ffno2d_block_forward.3} parent=5 // pred_check
      %p1499 = pneg %p1498
    $region102: #{ffno2d_block_forward.3} parent=5 // pred_check_branch
      %1501 = sbr.rel (%p1499) target = $region104
    $region103: #{ffno2d_block_forward.3} parent=5 // pred_region
      %s1502 = ssub.s32 %s25, 2
      // Predicated region
      $region105: #{ffno2d_block_forward.3} parent=103 // pred_check
        %p1503 = pneg %p463
      $region106: #{ffno2d_block_forward.3} parent=103 // pred_check_branch
        %1505 = sbr.rel (%p1503) target = $region108
      $region107: #{ffno2d_block_forward.3} parent=103 // pred_region
        %p1506 = scmp.lt.s32.totalorder %s31, 1
        %s1507 = scalar_select %p1506, %s31, 1
        %s1508 = smul.addr %s1507, 2
        %s1509 = smul.addr %s1508, 4
        %s1510 = scalar_lea.vmem %s19, %s1509
      $region108: #{ffno2d_block_forward.3} parent=103 // pred_fallthru
        _
    $region104: #{ffno2d_block_forward.3} parent=5 // pred_fallthru
      _
  $region6: #{ffno2d_block_forward.3} parent=0 // loop_footer
    %s29 = sadd.s32 1, %s25
  $region7: #{ffno2d_block_forward.3} parent=0 // loop_footer_branch
    %24 = sbr.rel target = $region3
  $region8: #{ffno2d_block_forward.3} parent=0 // loop_exit
    _

</llo_original>
